<compile_context>
chip_gen: v7x
topology: tpu7x:2x2x1
jax: 0.10.0
libtpu: 0.0.40
codegen_flags: <defaults>
</compile_context>

<pallas_src>
import math

import jax
import jax.numpy as jnp
from jax.experimental import pallas as pl
from jax.experimental.pallas import tpu as pltpu


def decoder_kernel(
    x_gates_ref,   # [TT, B, 4H] f32   per time block (hoisted projections)
    h0_ref,        # [B, H]      f32   constant (initial hidden)
    enc_flat_ref,  # [B*S, H]    bf16  constant (context matmul operand)
    enc_t_ref,     # [H, B*S]    bf16  constant (pre-transposed for scores)
    mask_ref,      # [B, B*S]    f32   constant additive block-diagonal mask
    w_ih_ref,      # [H, 4H]     bf16
    w_hh_ref,      # [H, 4H]     bf16
    w_out_ref,     # [H, O]      bf16
    b_out_ref,     # [1, O]      f32
    probs_ref,     # [TT, B, O]  out
    hid_ref,       # [TT, B, H]  out
    h_scratch,     # [B, H]      f32 VMEM carry across grid steps
):
    f32 = jnp.float32
    bf16 = jnp.bfloat16
    H = h_scratch.shape[1]
    TT = x_gates_ref.shape[0]
    inv_sqrt_h = 1.0 / math.sqrt(H)

    # First time block: load the initial hidden state into the VMEM carry.
    @pl.when(pl.program_id(0) == 0)
    def _():
        h_scratch[...] = h0_ref[...].astype(f32)

    # Constants (VMEM-resident across the whole grid via constant index_maps).
    enc_flat = enc_flat_ref[...]
    enc_t = enc_t_ref[...]
    mask = mask_ref[...]
    w_ih = w_ih_ref[...]
    w_hh = w_hh_ref[...]
    w_out = w_out_ref[...]
    b_out = b_out_ref[...]

    h = h_scratch[...]                                    # [B, H] f32

    # Statically unrolled inner time loop (LLO sees all TT steps).
    for step in range(TT):
        h_bf = h.astype(bf16)                             # reused twice below

        # ---- synthetic attention: softmax_s( <h, enc[b, s, :]> / sqrt(H) )
        # Single flattened matmul against the pre-transposed constant; the
        # additive mask keeps only same-batch columns.
        scores = (jnp.dot(h_bf, enc_t, preferred_element_type=f32)
                  * inv_sqrt_h + mask)                    # [B, B*S] f32
        scores = scores - jnp.max(scores, axis=-1, keepdims=True)
        e = jnp.exp(scores)
        a = e * pl.reciprocal(jnp.sum(e, axis=-1, keepdims=True), approx=True)

        # ---- context c = a @ enc_output (masked columns contribute 0)
        c = jnp.dot(a.astype(bf16), enc_flat,
                    preferred_element_type=f32)           # [B, H] f32

        # ---- LSTM gates; the h-independent part (fc_in path @ W_ih + biases)
        # was precomputed wrapper-side into x_gates.
        gates = (x_gates_ref[step]
                 + jnp.dot(c.astype(bf16), w_ih, preferred_element_type=f32)
                 + jnp.dot(h_bf, w_hh, preferred_element_type=f32))  # [B, 4H]

        # PyTorch gate order: i, f, g, o ; module sets h_0 = c_0 = h each call.
        i_g = jax.nn.sigmoid(gates[:, 0 * H:1 * H])
        f_g = jax.nn.sigmoid(gates[:, 1 * H:2 * H])
        g_g = jnp.tanh(gates[:, 2 * H:3 * H])
        o_g = jax.nn.sigmoid(gates[:, 3 * H:4 * H])
        c_n = f_g * h + i_g * g_g                         # c_0 = h (module semantics)
        h_n = o_g * jnp.tanh(c_n)                         # rnn_output == dec_hidden

        # ---- dec_output = softmax(fc_out(rnn_output))  -- exact normalization
        logits = jnp.dot(h_n.astype(bf16), w_out,
                         preferred_element_type=f32) + b_out
        logits = logits - jnp.max(logits, axis=-1, keepdims=True)
        ex = jnp.exp(logits)
        probs = ex / jnp.sum(ex, axis=-1, keepdims=True)

        probs_ref[step] = probs.astype(probs_ref.dtype)
        hid_ref[step] = h_n.astype(hid_ref.dtype)
        h = h_n

    h_scratch[...] = h


def _pick_time_block(T, max_tt=4):
    tt = min(T, max_tt)
    while T % tt:
        tt -= 1
    return tt


def decoder_forward(dec_input_seq, h0, enc_output, precursor_seq,
                    successor_seq, raw,
                    trg_time_step=None, enc_src=None, src_timestamp=None,
                    max_steps_per_block=4):
    """Fused T-step decode.  With T == 1 this is exactly Decoder.forward.

    `raw` weights are pre-transposed to [in, out]; b_lstm = b_ih + b_hh.
    """
    del trg_time_step, enc_src, src_timestamp  # only the synthetic attention would use these
    f32, bf16 = jnp.float32, jnp.bfloat16
    T, B, _ = dec_input_seq.shape
    H = h0.shape[1]
    S = enc_output.shape[1]
    O = raw["w_out"].shape[1]
    TT = _pick_time_block(T, max_steps_per_block)

    # ---- Hoisted non-recurrent projections: exact f32, one batched matmul
    # chain over all T*B rows (perf review item 1).
    ps_seq = jnp.concatenate([precursor_seq, successor_seq], axis=-1).astype(f32)
    r = jax.nn.relu(ps_seq @ raw["w_mlp"].astype(f32) + raw["b_mlp"].astype(f32))
    x_in = (r @ raw["w_in_r"].astype(f32)
            + dec_input_seq.astype(f32) @ raw["w_in_d"].astype(f32)
            + raw["b_in"].astype(f32))                               # [T, B, H]
    x_gates = x_in @ raw["w_ih"].astype(f32) + raw["b_lstm"].astype(f32)  # [T,B,4H]

    # ---- Attention constants: flattened + pre-transposed enc_output, and an
    # additive block-diagonal mask built once (perf review items 3, 4).
    enc_flat = enc_output.reshape(B * S, H).astype(bf16)             # [B*S, H]
    enc_t = jnp.transpose(enc_output, (2, 0, 1)).reshape(H, B * S).astype(bf16)
    same = jnp.repeat(jnp.eye(B, dtype=jnp.bool_), S, axis=1)        # [B, B*S]
    mask = jnp.where(same, 0.0, -1e30).astype(f32)

    w_ih = raw["w_ih"].astype(bf16)
    w_hh = raw["w_hh"].astype(bf16)
    w_out = raw["w_out"].astype(bf16)
    b_out = raw["b_out"].astype(f32)

    def const_spec(arr):
        nd = arr.ndim
        return pl.BlockSpec(arr.shape, lambda t, _n=nd: (0,) * _n)

    in_specs = [
        # per-time-block streamed input
        pl.BlockSpec((TT, B, 4 * H), lambda t: (t, 0, 0)),
        # constants: resident in VMEM across all grid steps
        const_spec(h0),
        const_spec(enc_flat),
        const_spec(enc_t),
        const_spec(mask),
        const_spec(w_ih),
        const_spec(w_hh),
        const_spec(w_out),
        const_spec(b_out),
    ]
    out_specs = (
        pl.BlockSpec((TT, B, O), lambda t: (t, 0, 0)),
        pl.BlockSpec((TT, B, H), lambda t: (t, 0, 0)),
    )

    grid_spec = pltpu.PrefetchScalarGridSpec(
        num_scalar_prefetch=0,
        grid=(T // TT,),
        in_specs=in_specs,
        out_specs=out_specs,
        scratch_shapes=[pltpu.VMEM((B, H), jnp.float32)],
    )

    return pl.pallas_call(
        decoder_kernel,
        out_shape=(jax.ShapeDtypeStruct((T, B, O), jnp.float32),
                   jax.ShapeDtypeStruct((T, B, H), jnp.float32)),
        grid_spec=grid_spec,
        compiler_params=pltpu.CompilerParams(
            # hidden state carried in scratch -> the time axis is sequential
            dimension_semantics=("arbitrary",),
            # explicit budget so the resident-weight layout also fits v7x/v5e
            vmem_limit_bytes=32 * 1024 * 1024,
        ),
    )(x_gates, h0, enc_flat, enc_t, mask, w_ih, w_hh, w_out, b_out)


def decoder_reference(dec_input_seq, h0, enc_output, precursor_seq,
                      successor_seq, raw):
    """Pure-JAX f32 reference: the module's forward applied step by step."""
    T = dec_input_seq.shape[0]
    H = h0.shape[1]
    w_in = jnp.concatenate([raw["w_in_r"], raw["w_in_d"]], axis=0)
    h = h0.astype(jnp.float32)
    probs_all, hid_all = [], []
    for t in range(T):
        ps = jnp.concatenate([precursor_seq[t], successor_seq[t]], axis=-1)
        r = jax.nn.relu(ps @ raw["w_mlp"] + raw["b_mlp"])
        x_in = jnp.concatenate([r, dec_input_seq[t]], axis=-1) @ w_in + raw["b_in"]
        scores = jnp.einsum("bh,bsh->bs", h, enc_output) / jnp.sqrt(jnp.float32(H))
        a = jax.nn.softmax(scores, axis=-1)
        c = jnp.einsum("bs,bsh->bh", a, enc_output)
        rnn_in = x_in + c
        gates = rnn_in @ raw["w_ih"] + h @ raw["w_hh"] + raw["b_lstm"]
        i_g = jax.nn.sigmoid(gates[:, 0 * H:1 * H])
        f_g = jax.nn.sigmoid(gates[:, 1 * H:2 * H])
        g_g = jnp.tanh(gates[:, 2 * H:3 * H])
        o_g = jax.nn.sigmoid(gates[:, 3 * H:4 * H])
        c_n = f_g * h + i_g * g_g          # c_0 = h each step (module semantics)
        h_n = o_g * jnp.tanh(c_n)
        probs_all.append(jax.nn.softmax(h_n @ raw["w_out"] + raw["b_out"], axis=-1))
        hid_all.append(h_n)
        h = h_n                            # caller feeds dec_hidden back as h
    return jnp.stack(probs_all), jnp.stack(hid_all)


if __name__ == "__main__":
    # Small shapes consistent with the module's forward:
    #   T=8 decode steps, B=2 batch, S=8 src_len, H=128 hidden (stands in for
    #   512), Din=2 dec_input_dim, P=SU=16, M=64 mlp output, O=256 vocab.
    T, B, S, H = 8, 2, 8, 128
    Din, P, SU, M, O = 2, 16, 16, 64, 256

    key = jax.random.PRNGKey(0)
    ks = jax.random.split(key, 20)

    def rn(k, shape, scale=0.1):
        return jax.random.normal(k, shape, dtype=jnp.float32) * scale

    # forward inputs
    dec_input_seq = rn(ks[0], (T, B, Din), 1.0)
    h0 = rn(ks[1], (B, H), 1.0)
    enc_output = rn(ks[2], (B, S, H), 1.0)
    precursor_seq = rn(ks[3], (T, B, P), 1.0)
    successor_seq = rn(ks[4], (T, B, SU), 1.0)
    trg_time_step = 0
    enc_src = rn(ks[5], (B, S, Din), 1.0)
    src_timestamp = rn(ks[6], (B, S), 1.0)

    # deterministic synthetic parameters (shapes per __init__, pre-transposed)
    raw = dict(
        w_mlp=rn(ks[7], (P + SU, M)),     # mlp: Linear(P+SU -> 64) + ReLU
        b_mlp=rn(ks[8], (1, M)),
        w_in_r=rn(ks[9], (M, H)),         # fc_in: Linear(64 + Din -> H), split
        w_in_d=rn(ks[10], (Din, H)),
        b_in=rn(ks[11], (1, H)),
        w_ih=rn(ks[12], (H, 4 * H)),      # LSTM weights, transposed [in, out]
        w_hh=rn(ks[13], (H, 4 * H)),
        b_lstm=rn(ks[14], (1, 4 * H)),    # b_ih + b_hh pre-summed
        w_out=rn(ks[15], (H, O)),         # fc_out: Linear(H -> O)
        b_out=rn(ks[16], (1, O)),
    )

    probs, dec_hidden = decoder_forward(
        dec_input_seq, h0, enc_output, precursor_seq, successor_seq, raw,
        trg_time_step, enc_src, src_timestamp)
    jax.block_until_ready((probs, dec_hidden))

    assert probs.shape == (T, B, O) and dec_hidden.shape == (T, B, H)
    row_sums = jnp.sum(probs, axis=-1)
    assert bool(jnp.all(jnp.abs(row_sums - 1.0) < 1e-3))   # exact divide now
    assert bool(jnp.all(jnp.isfinite(dec_hidden)))

    # pure-JAX f32 reference; kernel uses bf16 matmul inputs and an approximate
    # reciprocal for the attention softmax, so the tolerance is loose.
    probs_ref, hid_ref = decoder_reference(
        dec_input_seq, h0, enc_output, precursor_seq, successor_seq, raw)
    assert float(jnp.max(jnp.abs(probs - probs_ref))) < 5e-2
    assert float(jnp.max(jnp.abs(dec_hidden - hid_ref))) < 5e-2

    print("KERNEL_OK")
</pallas_src>

<mosaic_0001>
module attributes {stable_mosaic.version = 11 : i64} {
  func.func @decoder_kernel(%arg0: i32, %arg1: memref<4x2x512xf32, #tpu.memory_space<vmem>>, %arg2: memref<2x128xf32, #tpu.memory_space<vmem>>, %arg3: memref<16x128xbf16, #tpu.memory_space<vmem>>, %arg4: memref<128x16xbf16, #tpu.memory_space<vmem>>, %arg5: memref<2x16xf32, #tpu.memory_space<vmem>>, %arg6: memref<128x512xbf16, #tpu.memory_space<vmem>>, %arg7: memref<128x512xbf16, #tpu.memory_space<vmem>>, %arg8: memref<128x256xbf16, #tpu.memory_space<vmem>>, %arg9: memref<1x256xf32, #tpu.memory_space<vmem>>, %arg10: memref<4x2x256xf32, #tpu.memory_space<vmem>>, %arg11: memref<4x2x128xf32, #tpu.memory_space<vmem>>, %arg12: memref<2x128xf32, #tpu.memory_space<vmem>>) attributes {dimension_semantics = [#tpu.dimension_semantics<arbitrary>], iteration_bounds = array<i64: 2>, scalar_prefetch = 0 : i64, scratch_operands = 1 : i64, tpu.core_type = #tpu.core_type<tc>, window_params = [{transform_indices = @transform_0, window_bounds = array<i64: 4, 2, 512>}, {pipeline_mode = #tpu.pipeline_mode<synchronous>, transform_indices = @transform_1, window_bounds = array<i64: 2, 128>}, {pipeline_mode = #tpu.pipeline_mode<synchronous>, transform_indices = @transform_2, window_bounds = array<i64: 16, 128>}, {pipeline_mode = #tpu.pipeline_mode<synchronous>, transform_indices = @transform_3, window_bounds = array<i64: 128, 16>}, {pipeline_mode = #tpu.pipeline_mode<synchronous>, transform_indices = @transform_4, window_bounds = array<i64: 2, 16>}, {pipeline_mode = #tpu.pipeline_mode<synchronous>, transform_indices = @transform_5, window_bounds = array<i64: 128, 512>}, {pipeline_mode = #tpu.pipeline_mode<synchronous>, transform_indices = @transform_6, window_bounds = array<i64: 128, 512>}, {pipeline_mode = #tpu.pipeline_mode<synchronous>, transform_indices = @transform_7, window_bounds = array<i64: 128, 256>}, {pipeline_mode = #tpu.pipeline_mode<synchronous>, transform_indices = @transform_8, window_bounds = array<i64: 1, 256>}, {transform_indices = @transform_9, window_bounds = array<i64: 4, 2, 256>}, {transform_indices = @transform_10, window_bounds = array<i64: 4, 2, 128>}]} {
    %c0_i32 = arith.constant 0 : i32
    %0 = arith.cmpi eq, %arg0, %c0_i32 : i32
    %1 = arith.extui %0 : i1 to i32
    %c0_i32_0 = arith.constant 0 : i32
    %2 = arith.cmpi ne, %1, %c0_i32_0 : i32
    scf.if %2 {
      %c0_102 = arith.constant 0 : index
      %c0_103 = arith.constant 0 : index
      %284 = vector.load %arg2[%c0_102, %c0_103] : memref<2x128xf32, #tpu.memory_space<vmem>>, vector<2x128xf32>
      %c0_104 = arith.constant 0 : index
      %c0_105 = arith.constant 0 : index
      %285 = vector.load %arg12[%c0_104, %c0_105] : memref<2x128xf32, #tpu.memory_space<vmem>>, vector<2x128xf32>
      tpu.vector_store %arg12[%c0_104, %c0_105], %284 {strides = array<i32>} : memref<2x128xf32, #tpu.memory_space<vmem>>, vector<2x128xf32>,
    } else {
    }
    %c0 = arith.constant 0 : index
    %c0_1 = arith.constant 0 : index
    %3 = vector.load %arg3[%c0, %c0_1] : memref<16x128xbf16, #tpu.memory_space<vmem>>, vector<16x128xbf16>
    %c0_2 = arith.constant 0 : index
    %c0_3 = arith.constant 0 : index
    %4 = vector.load %arg4[%c0_2, %c0_3] : memref<128x16xbf16, #tpu.memory_space<vmem>>, vector<128x16xbf16>
    %c0_4 = arith.constant 0 : index
    %c0_5 = arith.constant 0 : index
    %5 = vector.load %arg5[%c0_4, %c0_5] : memref<2x16xf32, #tpu.memory_space<vmem>>, vector<2x16xf32>
    %c0_6 = arith.constant 0 : index
    %c0_7 = arith.constant 0 : index
    %6 = vector.load %arg6[%c0_6, %c0_7] : memref<128x512xbf16, #tpu.memory_space<vmem>>, vector<128x512xbf16>
    %c0_8 = arith.constant 0 : index
    %c0_9 = arith.constant 0 : index
    %7 = vector.load %arg7[%c0_8, %c0_9] : memref<128x512xbf16, #tpu.memory_space<vmem>>, vector<128x512xbf16>
    %c0_10 = arith.constant 0 : index
    %c0_11 = arith.constant 0 : index
    %8 = vector.load %arg8[%c0_10, %c0_11] : memref<128x256xbf16, #tpu.memory_space<vmem>>, vector<128x256xbf16>
    %c0_12 = arith.constant 0 : index
    %c0_13 = arith.constant 0 : index
    %9 = vector.load %arg9[%c0_12, %c0_13] : memref<1x256xf32, #tpu.memory_space<vmem>>, vector<1x256xf32>
    %c0_14 = arith.constant 0 : index
    %c0_15 = arith.constant 0 : index
    %10 = vector.load %arg12[%c0_14, %c0_15] : memref<2x128xf32, #tpu.memory_space<vmem>>, vector<2x128xf32>
    %11 = arith.truncf %10 : vector<2x128xf32> to vector<2x128xbf16>
    %cst = arith.constant dense<0.000000e+00> : vector<2x16xf32>
    %12 = tpu.matmul %11, %4, %cst {dimension_numbers = #tpu.dot_dimension_numbers<[1], [0], [0], [1], [0, 0, 1, 1], [], []>} : vector<2x128xbf16>, vector<128x16xbf16>, vector<2x16xf32> -> vector<2x16xf32>
    %cst_16 = arith.constant 0.0883883461 : f32
    %13 = vector.broadcast %cst_16 : f32 to vector<2x16xf32>
    %14 = arith.mulf %12, %13 : vector<2x16xf32>
    %15 = arith.addf %14, %5 : vector<2x16xf32>
    %cst_17 = arith.constant dense<0xFF800000> : vector<2xf32>
    %16 = vector.multi_reduction <maximumf>, %15, %cst_17 [1] : vector<2x16xf32> to vector<2xf32>
    %17 = vector.shape_cast %16 : vector<2xf32> to vector<2x1xf32>
    %18 = vector.broadcast %17 : vector<2x1xf32> to vector<2x16xf32>
    %19 = arith.subf %15, %18 : vector<2x16xf32>
    %20 = math.exp %19 : vector<2x16xf32>
    %cst_18 = arith.constant dense<0.000000e+00> : vector<2xf32>
    %21 = vector.multi_reduction <add>, %20, %cst_18 [1] : vector<2x16xf32> to vector<2xf32>
    %22 = vector.shape_cast %21 : vector<2xf32> to vector<2x1xf32>
    %23 = tpu.reciprocal %22 {approx = true} : vector<2x1xf32> -> vector<2x1xf32>
    %24 = vector.broadcast %23 : vector<2x1xf32> to vector<2x16xf32>
    %25 = arith.mulf %20, %24 : vector<2x16xf32>
    %26 = arith.truncf %25 : vector<2x16xf32> to vector<2x16xbf16>
    %cst_19 = arith.constant dense<0.000000e+00> : vector<2x128xf32>
    %27 = tpu.matmul %26, %3, %cst_19 {dimension_numbers = #tpu.dot_dimension_numbers<[1], [0], [0], [1], [0, 0, 1, 1], [], []>} : vector<2x16xbf16>, vector<16x128xbf16>, vector<2x128xf32> -> vector<2x128xf32>
    %c0_20 = arith.constant 0 : index
    %c0_21 = arith.constant 0 : index
    %c0_22 = arith.constant 0 : index
    %28 = vector.load %arg1[%c0_20, %c0_21, %c0_22] : memref<4x2x512xf32, #tpu.memory_space<vmem>>, vector<1x2x512xf32>
    %29 = vector.shape_cast %28 : vector<1x2x512xf32> to vector<2x512xf32>
    %30 = arith.truncf %27 : vector<2x128xf32> to vector<2x128xbf16>
    %cst_23 = arith.constant dense<0.000000e+00> : vector<2x512xf32>
    %31 = tpu.matmul %30, %6, %cst_23 {dimension_numbers = #tpu.dot_dimension_numbers<[1], [0], [0], [1], [0, 0, 1, 1], [], []>} : vector<2x128xbf16>, vector<128x512xbf16>, vector<2x512xf32> -> vector<2x512xf32>
    %32 = arith.addf %29, %31 : vector<2x512xf32>
    %cst_24 = arith.constant dense<0.000000e+00> : vector<2x512xf32>
    %33 = tpu.matmul %11, %7, %cst_24 {dimension_numbers = #tpu.dot_dimension_numbers<[1], [0], [0], [1], [0, 0, 1, 1], [], []>} : vector<2x128xbf16>, vector<128x512xbf16>, vector<2x512xf32> -> vector<2x512xf32>
    %34 = arith.addf %32, %33 : vector<2x512xf32>
    %35 = vector.extract_strided_slice %34 {offsets = [0, 0], sizes = [2, 128], strides = [1, 1]} : vector<2x512xf32> to vector<2x128xf32>
    %36 = arith.negf %35 : vector<2x128xf32>
    %37 = math.exp %36 : vector<2x128xf32>
    %cst_25 = arith.constant 1.000000e+00 : f32
    %38 = vector.broadcast %cst_25 : f32 to vector<2x128xf32>
    %39 = arith.addf %38, %37 : vector<2x128xf32>
    %40 = arith.divf %38, %39 : vector<2x128xf32>
    %41 = vector.extract_strided_slice %34 {offsets = [0, 128], sizes = [2, 128], strides = [1, 1]} : vector<2x512xf32> to vector<2x128xf32>
    %42 = arith.negf %41 : vector<2x128xf32>
    %43 = math.exp %42 : vector<2x128xf32>
    %cst_26 = arith.constant 1.000000e+00 : f32
    %44 = vector.broadcast %cst_26 : f32 to vector<2x128xf32>
    %45 = arith.addf %44, %43 : vector<2x128xf32>
    %46 = arith.divf %44, %45 : vector<2x128xf32>
    %47 = vector.extract_strided_slice %34 {offsets = [0, 256], sizes = [2, 128], strides = [1, 1]} : vector<2x512xf32> to vector<2x128xf32>
    %48 = math.tanh %47 : vector<2x128xf32>
    %49 = vector.extract_strided_slice %34 {offsets = [0, 384], sizes = [2, 128], strides = [1, 1]} : vector<2x512xf32> to vector<2x128xf32>
    %50 = arith.negf %49 : vector<2x128xf32>
    %51 = math.exp %50 : vector<2x128xf32>
    %cst_27 = arith.constant 1.000000e+00 : f32
    %52 = vector.broadcast %cst_27 : f32 to vector<2x128xf32>
    %53 = arith.addf %52, %51 : vector<2x128xf32>
    %54 = arith.divf %52, %53 : vector<2x128xf32>
    %55 = arith.mulf %46, %10 : vector<2x128xf32>
    %56 = arith.mulf %40, %48 : vector<2x128xf32>
    %57 = arith.addf %55, %56 : vector<2x128xf32>
    %58 = math.tanh %57 : vector<2x128xf32>
    %59 = arith.mulf %54, %58 : vector<2x128xf32>
    %60 = arith.truncf %59 : vector<2x128xf32> to vector<2x128xbf16>
    %cst_28 = arith.constant dense<0.000000e+00> : vector<2x256xf32>
    %61 = tpu.matmul %60, %8, %cst_28 {dimension_numbers = #tpu.dot_dimension_numbers<[1], [0], [0], [1], [0, 0, 1, 1], [], []>} : vector<2x128xbf16>, vector<128x256xbf16>, vector<2x256xf32> -> vector<2x256xf32>
    %62 = vector.broadcast %9 : vector<1x256xf32> to vector<2x256xf32>
    %63 = arith.addf %61, %62 : vector<2x256xf32>
    %cst_29 = arith.constant dense<0xFF800000> : vector<2xf32>
    %64 = vector.multi_reduction <maximumf>, %63, %cst_29 [1] : vector<2x256xf32> to vector<2xf32>
    %65 = vector.shape_cast %64 : vector<2xf32> to vector<2x1xf32>
    %66 = vector.broadcast %65 : vector<2x1xf32> to vector<2x256xf32>
    %67 = arith.subf %63, %66 : vector<2x256xf32>
    %68 = math.exp %67 : vector<2x256xf32>
    %cst_30 = arith.constant dense<0.000000e+00> : vector<2xf32>
    %69 = vector.multi_reduction <add>, %68, %cst_30 [1] : vector<2x256xf32> to vector<2xf32>
    %70 = vector.shape_cast %69 : vector<2xf32> to vector<2x1xf32>
    %71 = vector.broadcast %70 : vector<2x1xf32> to vector<2x256xf32>
    %72 = arith.divf %68, %71 : vector<2x256xf32>
    %c0_31 = arith.constant 0 : index
    %c0_32 = arith.constant 0 : index
    %c0_33 = arith.constant 0 : index
    %73 = vector.load %arg10[%c0_31, %c0_32, %c0_33] : memref<4x2x256xf32, #tpu.memory_space<vmem>>, vector<1x2x256xf32>
    %74 = vector.shape_cast %73 : vector<1x2x256xf32> to vector<2x256xf32>
    %75 = vector.shape_cast %72 : vector<2x256xf32> to vector<1x2x256xf32>
    tpu.vector_store %arg10[%c0_31, %c0_32, %c0_33], %75 {strides = array<i32>} : memref<4x2x256xf32, #tpu.memory_space<vmem>>, vector<1x2x256xf32>,
    %c0_34 = arith.constant 0 : index
    %c0_35 = arith.constant 0 : index
    %c0_36 = arith.constant 0 : index
    %76 = vector.load %arg11[%c0_34, %c0_35, %c0_36] : memref<4x2x128xf32, #tpu.memory_space<vmem>>, vector<1x2x128xf32>
    %77 = vector.shape_cast %76 : vector<1x2x128xf32> to vector<2x128xf32>
    %78 = vector.shape_cast %59 : vector<2x128xf32> to vector<1x2x128xf32>
    tpu.vector_store %arg11[%c0_34, %c0_35, %c0_36], %78 {strides = array<i32>} : memref<4x2x128xf32, #tpu.memory_space<vmem>>, vector<1x2x128xf32>,
    %79 = arith.truncf %59 : vector<2x128xf32> to vector<2x128xbf16>
    %cst_37 = arith.constant dense<0.000000e+00> : vector<2x16xf32>
    %80 = tpu.matmul %79, %4, %cst_37 {dimension_numbers = #tpu.dot_dimension_numbers<[1], [0], [0], [1], [0, 0, 1, 1], [], []>} : vector<2x128xbf16>, vector<128x16xbf16>, vector<2x16xf32> -> vector<2x16xf32>
    %cst_38 = arith.constant 0.0883883461 : f32
    %81 = vector.broadcast %cst_38 : f32 to vector<2x16xf32>
    %82 = arith.mulf %80, %81 : vector<2x16xf32>
    %83 = arith.addf %82, %5 : vector<2x16xf32>
    %cst_39 = arith.constant dense<0xFF800000> : vector<2xf32>
    %84 = vector.multi_reduction <maximumf>, %83, %cst_39 [1] : vector<2x16xf32> to vector<2xf32>
    %85 = vector.shape_cast %84 : vector<2xf32> to vector<2x1xf32>
    %86 = vector.broadcast %85 : vector<2x1xf32> to vector<2x16xf32>
    %87 = arith.subf %83, %86 : vector<2x16xf32>
    %88 = math.exp %87 : vector<2x16xf32>
    %cst_40 = arith.constant dense<0.000000e+00> : vector<2xf32>
    %89 = vector.multi_reduction <add>, %88, %cst_40 [1] : vector<2x16xf32> to vector<2xf32>
    %90 = vector.shape_cast %89 : vector<2xf32> to vector<2x1xf32>
    %91 = tpu.reciprocal %90 {approx = true} : vector<2x1xf32> -> vector<2x1xf32>
    %92 = vector.broadcast %91 : vector<2x1xf32> to vector<2x16xf32>
    %93 = arith.mulf %88, %92 : vector<2x16xf32>
    %94 = arith.truncf %93 : vector<2x16xf32> to vector<2x16xbf16>
    %cst_41 = arith.constant dense<0.000000e+00> : vector<2x128xf32>
    %95 = tpu.matmul %94, %3, %cst_41 {dimension_numbers = #tpu.dot_dimension_numbers<[1], [0], [0], [1], [0, 0, 1, 1], [], []>} : vector<2x16xbf16>, vector<16x128xbf16>, vector<2x128xf32> -> vector<2x128xf32>
    %c1 = arith.constant 1 : index
    %c0_42 = arith.constant 0 : index
    %c0_43 = arith.constant 0 : index
    %96 = vector.load %arg1[%c1, %c0_42, %c0_43] : memref<4x2x512xf32, #tpu.memory_space<vmem>>, vector<1x2x512xf32>
    %97 = vector.shape_cast %96 : vector<1x2x512xf32> to vector<2x512xf32>
    %98 = arith.truncf %95 : vector<2x128xf32> to vector<2x128xbf16>
    %cst_44 = arith.constant dense<0.000000e+00> : vector<2x512xf32>
    %99 = tpu.matmul %98, %6, %cst_44 {dimension_numbers = #tpu.dot_dimension_numbers<[1], [0], [0], [1], [0, 0, 1, 1], [], []>} : vector<2x128xbf16>, vector<128x512xbf16>, vector<2x512xf32> -> vector<2x512xf32>
    %100 = arith.addf %97, %99 : vector<2x512xf32>
    %cst_45 = arith.constant dense<0.000000e+00> : vector<2x512xf32>
    %101 = tpu.matmul %79, %7, %cst_45 {dimension_numbers = #tpu.dot_dimension_numbers<[1], [0], [0], [1], [0, 0, 1, 1], [], []>} : vector<2x128xbf16>, vector<128x512xbf16>, vector<2x512xf32> -> vector<2x512xf32>
    %102 = arith.addf %100, %101 : vector<2x512xf32>
    %103 = vector.extract_strided_slice %102 {offsets = [0, 0], sizes = [2, 128], strides = [1, 1]} : vector<2x512xf32> to vector<2x128xf32>
    %104 = arith.negf %103 : vector<2x128xf32>
    %105 = math.exp %104 : vector<2x128xf32>
    %cst_46 = arith.constant 1.000000e+00 : f32
    %106 = vector.broadcast %cst_46 : f32 to vector<2x128xf32>
    %107 = arith.addf %106, %105 : vector<2x128xf32>
    %108 = arith.divf %106, %107 : vector<2x128xf32>
    %109 = vector.extract_strided_slice %102 {offsets = [0, 128], sizes = [2, 128], strides = [1, 1]} : vector<2x512xf32> to vector<2x128xf32>
    %110 = arith.negf %109 : vector<2x128xf32>
    %111 = math.exp %110 : vector<2x128xf32>
    %cst_47 = arith.constant 1.000000e+00 : f32
    %112 = vector.broadcast %cst_47 : f32 to vector<2x128xf32>
    %113 = arith.addf %112, %111 : vector<2x128xf32>
    %114 = arith.divf %112, %113 : vector<2x128xf32>
    %115 = vector.extract_strided_slice %102 {offsets = [0, 256], sizes = [2, 128], strides = [1, 1]} : vector<2x512xf32> to vector<2x128xf32>
    %116 = math.tanh %115 : vector<2x128xf32>
    %117 = vector.extract_strided_slice %102 {offsets = [0, 384], sizes = [2, 128], strides = [1, 1]} : vector<2x512xf32> to vector<2x128xf32>
    %118 = arith.negf %117 : vector<2x128xf32>
    %119 = math.exp %118 : vector<2x128xf32>
    %cst_48 = arith.constant 1.000000e+00 : f32
    %120 = vector.broadcast %cst_48 : f32 to vector<2x128xf32>
    %121 = arith.addf %120, %119 : vector<2x128xf32>
    %122 = arith.divf %120, %121 : vector<2x128xf32>
    %123 = arith.mulf %114, %59 : vector<2x128xf32>
    %124 = arith.mulf %108, %116 : vector<2x128xf32>
    %125 = arith.addf %123, %124 : vector<2x128xf32>
    %126 = math.tanh %125 : vector<2x128xf32>
    %127 = arith.mulf %122, %126 : vector<2x128xf32>
    %128 = arith.truncf %127 : vector<2x128xf32> to vector<2x128xbf16>
    %cst_49 = arith.constant dense<0.000000e+00> : vector<2x256xf32>
    %129 = tpu.matmul %128, %8, %cst_49 {dimension_numbers = #tpu.dot_dimension_numbers<[1], [0], [0], [1], [0, 0, 1, 1], [], []>} : vector<2x128xbf16>, vector<128x256xbf16>, vector<2x256xf32> -> vector<2x256xf32>
    %130 = vector.broadcast %9 : vector<1x256xf32> to vector<2x256xf32>
    %131 = arith.addf %129, %130 : vector<2x256xf32>
    %cst_50 = arith.constant dense<0xFF800000> : vector<2xf32>
    %132 = vector.multi_reduction <maximumf>, %131, %cst_50 [1] : vector<2x256xf32> to vector<2xf32>
    %133 = vector.shape_cast %132 : vector<2xf32> to vector<2x1xf32>
    %134 = vector.broadcast %133 : vector<2x1xf32> to vector<2x256xf32>
    %135 = arith.subf %131, %134 : vector<2x256xf32>
    %136 = math.exp %135 : vector<2x256xf32>
    %cst_51 = arith.constant dense<0.000000e+00> : vector<2xf32>
    %137 = vector.multi_reduction <add>, %136, %cst_51 [1] : vector<2x256xf32> to vector<2xf32>
    %138 = vector.shape_cast %137 : vector<2xf32> to vector<2x1xf32>
    %139 = vector.broadcast %138 : vector<2x1xf32> to vector<2x256xf32>
    %140 = arith.divf %136, %139 : vector<2x256xf32>
    %c1_52 = arith.constant 1 : index
    %c0_53 = arith.constant 0 : index
    %c0_54 = arith.constant 0 : index
    %141 = vector.load %arg10[%c1_52, %c0_53, %c0_54] : memref<4x2x256xf32, #tpu.memory_space<vmem>>, vector<1x2x256xf32>
    %142 = vector.shape_cast %141 : vector<1x2x256xf32> to vector<2x256xf32>
    %143 = vector.shape_cast %140 : vector<2x256xf32> to vector<1x2x256xf32>
    tpu.vector_store %arg10[%c1_52, %c0_53, %c0_54], %143 {strides = array<i32>} : memref<4x2x256xf32, #tpu.memory_space<vmem>>, vector<1x2x256xf32>,
    %c1_55 = arith.constant 1 : index
    %c0_56 = arith.constant 0 : index
    %c0_57 = arith.constant 0 : index
    %144 = vector.load %arg11[%c1_55, %c0_56, %c0_57] : memref<4x2x128xf32, #tpu.memory_space<vmem>>, vector<1x2x128xf32>
    %145 = vector.shape_cast %144 : vector<1x2x128xf32> to vector<2x128xf32>
    %146 = vector.shape_cast %127 : vector<2x128xf32> to vector<1x2x128xf32>
    tpu.vector_store %arg11[%c1_55, %c0_56, %c0_57], %146 {strides = array<i32>} : memref<4x2x128xf32, #tpu.memory_space<vmem>>, vector<1x2x128xf32>,
    %147 = arith.truncf %127 : vector<2x128xf32> to vector<2x128xbf16>
    %cst_58 = arith.constant dense<0.000000e+00> : vector<2x16xf32>
    %148 = tpu.matmul %147, %4, %cst_58 {dimension_numbers = #tpu.dot_dimension_numbers<[1], [0], [0], [1], [0, 0, 1, 1], [], []>} : vector<2x128xbf16>, vector<128x16xbf16>, vector<2x16xf32> -> vector<2x16xf32>
    %cst_59 = arith.constant 0.0883883461 : f32
    %149 = vector.broadcast %cst_59 : f32 to vector<2x16xf32>
    %150 = arith.mulf %148, %149 : vector<2x16xf32>
    %151 = arith.addf %150, %5 : vector<2x16xf32>
    %cst_60 = arith.constant dense<0xFF800000> : vector<2xf32>
    %152 = vector.multi_reduction <maximumf>, %151, %cst_60 [1] : vector<2x16xf32> to vector<2xf32>
    %153 = vector.shape_cast %152 : vector<2xf32> to vector<2x1xf32>
    %154 = vector.broadcast %153 : vector<2x1xf32> to vector<2x16xf32>
    %155 = arith.subf %151, %154 : vector<2x16xf32>
    %156 = math.exp %155 : vector<2x16xf32>
    %cst_61 = arith.constant dense<0.000000e+00> : vector<2xf32>
    %157 = vector.multi_reduction <add>, %156, %cst_61 [1] : vector<2x16xf32> to vector<2xf32>
    %158 = vector.shape_cast %157 : vector<2xf32> to vector<2x1xf32>
    %159 = tpu.reciprocal %158 {approx = true} : vector<2x1xf32> -> vector<2x1xf32>
    %160 = vector.broadcast %159 : vector<2x1xf32> to vector<2x16xf32>
    %161 = arith.mulf %156, %160 : vector<2x16xf32>
    %162 = arith.truncf %161 : vector<2x16xf32> to vector<2x16xbf16>
    %cst_62 = arith.constant dense<0.000000e+00> : vector<2x128xf32>
    %163 = tpu.matmul %162, %3, %cst_62 {dimension_numbers = #tpu.dot_dimension_numbers<[1], [0], [0], [1], [0, 0, 1, 1], [], []>} : vector<2x16xbf16>, vector<16x128xbf16>, vector<2x128xf32> -> vector<2x128xf32>
    %c2 = arith.constant 2 : index
    %c0_63 = arith.constant 0 : index
    %c0_64 = arith.constant 0 : index
    %164 = vector.load %arg1[%c2, %c0_63, %c0_64] : memref<4x2x512xf32, #tpu.memory_space<vmem>>, vector<1x2x512xf32>
    %165 = vector.shape_cast %164 : vector<1x2x512xf32> to vector<2x512xf32>
    %166 = arith.truncf %163 : vector<2x128xf32> to vector<2x128xbf16>
    %cst_65 = arith.constant dense<0.000000e+00> : vector<2x512xf32>
    %167 = tpu.matmul %166, %6, %cst_65 {dimension_numbers = #tpu.dot_dimension_numbers<[1], [0], [0], [1], [0, 0, 1, 1], [], []>} : vector<2x128xbf16>, vector<128x512xbf16>, vector<2x512xf32> -> vector<2x512xf32>
    %168 = arith.addf %165, %167 : vector<2x512xf32>
    %cst_66 = arith.constant dense<0.000000e+00> : vector<2x512xf32>
    %169 = tpu.matmul %147, %7, %cst_66 {dimension_numbers = #tpu.dot_dimension_numbers<[1], [0], [0], [1], [0, 0, 1, 1], [], []>} : vector<2x128xbf16>, vector<128x512xbf16>, vector<2x512xf32> -> vector<2x512xf32>
    %170 = arith.addf %168, %169 : vector<2x512xf32>
    %171 = vector.extract_strided_slice %170 {offsets = [0, 0], sizes = [2, 128], strides = [1, 1]} : vector<2x512xf32> to vector<2x128xf32>
    %172 = arith.negf %171 : vector<2x128xf32>
    %173 = math.exp %172 : vector<2x128xf32>
    %cst_67 = arith.constant 1.000000e+00 : f32
    %174 = vector.broadcast %cst_67 : f32 to vector<2x128xf32>
    %175 = arith.addf %174, %173 : vector<2x128xf32>
    %176 = arith.divf %174, %175 : vector<2x128xf32>
    %177 = vector.extract_strided_slice %170 {offsets = [0, 128], sizes = [2, 128], strides = [1, 1]} : vector<2x512xf32> to vector<2x128xf32>
    %178 = arith.negf %177 : vector<2x128xf32>
    %179 = math.exp %178 : vector<2x128xf32>
    %cst_68 = arith.constant 1.000000e+00 : f32
    %180 = vector.broadcast %cst_68 : f32 to vector<2x128xf32>
    %181 = arith.addf %180, %179 : vector<2x128xf32>
    %182 = arith.divf %180, %181 : vector<2x128xf32>
    %183 = vector.extract_strided_slice %170 {offsets = [0, 256], sizes = [2, 128], strides = [1, 1]} : vector<2x512xf32> to vector<2x128xf32>
    %184 = math.tanh %183 : vector<2x128xf32>
    %185 = vector.extract_strided_slice %170 {offsets = [0, 384], sizes = [2, 128], strides = [1, 1]} : vector<2x512xf32> to vector<2x128xf32>
    %186 = arith.negf %185 : vector<2x128xf32>
    %187 = math.exp %186 : vector<2x128xf32>
    %cst_69 = arith.constant 1.000000e+00 : f32
    %188 = vector.broadcast %cst_69 : f32 to vector<2x128xf32>
    %189 = arith.addf %188, %187 : vector<2x128xf32>
    %190 = arith.divf %188, %189 : vector<2x128xf32>
    %191 = arith.mulf %182, %127 : vector<2x128xf32>
    %192 = arith.mulf %176, %184 : vector<2x128xf32>
    %193 = arith.addf %191, %192 : vector<2x128xf32>
    %194 = math.tanh %193 : vector<2x128xf32>
    %195 = arith.mulf %190, %194 : vector<2x128xf32>
    %196 = arith.truncf %195 : vector<2x128xf32> to vector<2x128xbf16>
    %cst_70 = arith.constant dense<0.000000e+00> : vector<2x256xf32>
    %197 = tpu.matmul %196, %8, %cst_70 {dimension_numbers = #tpu.dot_dimension_numbers<[1], [0], [0], [1], [0, 0, 1, 1], [], []>} : vector<2x128xbf16>, vector<128x256xbf16>, vector<2x256xf32> -> vector<2x256xf32>
    %198 = vector.broadcast %9 : vector<1x256xf32> to vector<2x256xf32>
    %199 = arith.addf %197, %198 : vector<2x256xf32>
    %cst_71 = arith.constant dense<0xFF800000> : vector<2xf32>
    %200 = vector.multi_reduction <maximumf>, %199, %cst_71 [1] : vector<2x256xf32> to vector<2xf32>
    %201 = vector.shape_cast %200 : vector<2xf32> to vector<2x1xf32>
    %202 = vector.broadcast %201 : vector<2x1xf32> to vector<2x256xf32>
    %203 = arith.subf %199, %202 : vector<2x256xf32>
    %204 = math.exp %203 : vector<2x256xf32>
    %cst_72 = arith.constant dense<0.000000e+00> : vector<2xf32>
    %205 = vector.multi_reduction <add>, %204, %cst_72 [1] : vector<2x256xf32> to vector<2xf32>
    %206 = vector.shape_cast %205 : vector<2xf32> to vector<2x1xf32>
    %207 = vector.broadcast %206 : vector<2x1xf32> to vector<2x256xf32>
    %208 = arith.divf %204, %207 : vector<2x256xf32>
    %c2_73 = arith.constant 2 : index
    %c0_74 = arith.constant 0 : index
    %c0_75 = arith.constant 0 : index
    %209 = vector.load %arg10[%c2_73, %c0_74, %c0_75] : memref<4x2x256xf32, #tpu.memory_space<vmem>>, vector<1x2x256xf32>
    %210 = vector.shape_cast %209 : vector<1x2x256xf32> to vector<2x256xf32>
    %211 = vector.shape_cast %208 : vector<2x256xf32> to vector<1x2x256xf32>
    tpu.vector_store %arg10[%c2_73, %c0_74, %c0_75], %211 {strides = array<i32>} : memref<4x2x256xf32, #tpu.memory_space<vmem>>, vector<1x2x256xf32>,
    %c2_76 = arith.constant 2 : index
    %c0_77 = arith.constant 0 : index
    %c0_78 = arith.constant 0 : index
    %212 = vector.load %arg11[%c2_76, %c0_77, %c0_78] : memref<4x2x128xf32, #tpu.memory_space<vmem>>, vector<1x2x128xf32>
    %213 = vector.shape_cast %212 : vector<1x2x128xf32> to vector<2x128xf32>
    %214 = vector.shape_cast %195 : vector<2x128xf32> to vector<1x2x128xf32>
    tpu.vector_store %arg11[%c2_76, %c0_77, %c0_78], %214 {strides = array<i32>} : memref<4x2x128xf32, #tpu.memory_space<vmem>>, vector<1x2x128xf32>,
    %215 = arith.truncf %195 : vector<2x128xf32> to vector<2x128xbf16>
    %cst_79 = arith.constant dense<0.000000e+00> : vector<2x16xf32>
    %216 = tpu.matmul %215, %4, %cst_79 {dimension_numbers = #tpu.dot_dimension_numbers<[1], [0], [0], [1], [0, 0, 1, 1], [], []>} : vector<2x128xbf16>, vector<128x16xbf16>, vector<2x16xf32> -> vector<2x16xf32>
    %cst_80 = arith.constant 0.0883883461 : f32
    %217 = vector.broadcast %cst_80 : f32 to vector<2x16xf32>
    %218 = arith.mulf %216, %217 : vector<2x16xf32>
    %219 = arith.addf %218, %5 : vector<2x16xf32>
    %cst_81 = arith.constant dense<0xFF800000> : vector<2xf32>
    %220 = vector.multi_reduction <maximumf>, %219, %cst_81 [1] : vector<2x16xf32> to vector<2xf32>
    %221 = vector.shape_cast %220 : vector<2xf32> to vector<2x1xf32>
    %222 = vector.broadcast %221 : vector<2x1xf32> to vector<2x16xf32>
    %223 = arith.subf %219, %222 : vector<2x16xf32>
    %224 = math.exp %223 : vector<2x16xf32>
    %cst_82 = arith.constant dense<0.000000e+00> : vector<2xf32>
    %225 = vector.multi_reduction <add>, %224, %cst_82 [1] : vector<2x16xf32> to vector<2xf32>
    %226 = vector.shape_cast %225 : vector<2xf32> to vector<2x1xf32>
    %227 = tpu.reciprocal %226 {approx = true} : vector<2x1xf32> -> vector<2x1xf32>
    %228 = vector.broadcast %227 : vector<2x1xf32> to vector<2x16xf32>
    %229 = arith.mulf %224, %228 : vector<2x16xf32>
    %230 = arith.truncf %229 : vector<2x16xf32> to vector<2x16xbf16>
    %cst_83 = arith.constant dense<0.000000e+00> : vector<2x128xf32>
    %231 = tpu.matmul %230, %3, %cst_83 {dimension_numbers = #tpu.dot_dimension_numbers<[1], [0], [0], [1], [0, 0, 1, 1], [], []>} : vector<2x16xbf16>, vector<16x128xbf16>, vector<2x128xf32> -> vector<2x128xf32>
    %c3 = arith.constant 3 : index
    %c0_84 = arith.constant 0 : index
    %c0_85 = arith.constant 0 : index
    %232 = vector.load %arg1[%c3, %c0_84, %c0_85] : memref<4x2x512xf32, #tpu.memory_space<vmem>>, vector<1x2x512xf32>
    %233 = vector.shape_cast %232 : vector<1x2x512xf32> to vector<2x512xf32>
    %234 = arith.truncf %231 : vector<2x128xf32> to vector<2x128xbf16>
    %cst_86 = arith.constant dense<0.000000e+00> : vector<2x512xf32>
    %235 = tpu.matmul %234, %6, %cst_86 {dimension_numbers = #tpu.dot_dimension_numbers<[1], [0], [0], [1], [0, 0, 1, 1], [], []>} : vector<2x128xbf16>, vector<128x512xbf16>, vector<2x512xf32> -> vector<2x512xf32>
    %236 = arith.addf %233, %235 : vector<2x512xf32>
    %cst_87 = arith.constant dense<0.000000e+00> : vector<2x512xf32>
    %237 = tpu.matmul %215, %7, %cst_87 {dimension_numbers = #tpu.dot_dimension_numbers<[1], [0], [0], [1], [0, 0, 1, 1], [], []>} : vector<2x128xbf16>, vector<128x512xbf16>, vector<2x512xf32> -> vector<2x512xf32>
    %238 = arith.addf %236, %237 : vector<2x512xf32>
    %239 = vector.extract_strided_slice %238 {offsets = [0, 0], sizes = [2, 128], strides = [1, 1]} : vector<2x512xf32> to vector<2x128xf32>
    %240 = arith.negf %239 : vector<2x128xf32>
    %241 = math.exp %240 : vector<2x128xf32>
    %cst_88 = arith.constant 1.000000e+00 : f32
    %242 = vector.broadcast %cst_88 : f32 to vector<2x128xf32>
    %243 = arith.addf %242, %241 : vector<2x128xf32>
    %244 = arith.divf %242, %243 : vector<2x128xf32>
    %245 = vector.extract_strided_slice %238 {offsets = [0, 128], sizes = [2, 128], strides = [1, 1]} : vector<2x512xf32> to vector<2x128xf32>
    %246 = arith.negf %245 : vector<2x128xf32>
    %247 = math.exp %246 : vector<2x128xf32>
    %cst_89 = arith.constant 1.000000e+00 : f32
    %248 = vector.broadcast %cst_89 : f32 to vector<2x128xf32>
    %249 = arith.addf %248, %247 : vector<2x128xf32>
    %250 = arith.divf %248, %249 : vector<2x128xf32>
    %251 = vector.extract_strided_slice %238 {offsets = [0, 256], sizes = [2, 128], strides = [1, 1]} : vector<2x512xf32> to vector<2x128xf32>
    %252 = math.tanh %251 : vector<2x128xf32>
    %253 = vector.extract_strided_slice %238 {offsets = [0, 384], sizes = [2, 128], strides = [1, 1]} : vector<2x512xf32> to vector<2x128xf32>
    %254 = arith.negf %253 : vector<2x128xf32>
    %255 = math.exp %254 : vector<2x128xf32>
    %cst_90 = arith.constant 1.000000e+00 : f32
    %256 = vector.broadcast %cst_90 : f32 to vector<2x128xf32>
    %257 = arith.addf %256, %255 : vector<2x128xf32>
    %258 = arith.divf %256, %257 : vector<2x128xf32>
    %259 = arith.mulf %250, %195 : vector<2x128xf32>
    %260 = arith.mulf %244, %252 : vector<2x128xf32>
    %261 = arith.addf %259, %260 : vector<2x128xf32>
    %262 = math.tanh %261 : vector<2x128xf32>
    %263 = arith.mulf %258, %262 : vector<2x128xf32>
    %264 = arith.truncf %263 : vector<2x128xf32> to vector<2x128xbf16>
    %cst_91 = arith.constant dense<0.000000e+00> : vector<2x256xf32>
    %265 = tpu.matmul %264, %8, %cst_91 {dimension_numbers = #tpu.dot_dimension_numbers<[1], [0], [0], [1], [0, 0, 1, 1], [], []>} : vector<2x128xbf16>, vector<128x256xbf16>, vector<2x256xf32> -> vector<2x256xf32>
    %266 = vector.broadcast %9 : vector<1x256xf32> to vector<2x256xf32>
    %267 = arith.addf %265, %266 : vector<2x256xf32>
    %cst_92 = arith.constant dense<0xFF800000> : vector<2xf32>
    %268 = vector.multi_reduction <maximumf>, %267, %cst_92 [1] : vector<2x256xf32> to vector<2xf32>
    %269 = vector.shape_cast %268 : vector<2xf32> to vector<2x1xf32>
    %270 = vector.broadcast %269 : vector<2x1xf32> to vector<2x256xf32>
    %271 = arith.subf %267, %270 : vector<2x256xf32>
    %272 = math.exp %271 : vector<2x256xf32>
    %cst_93 = arith.constant dense<0.000000e+00> : vector<2xf32>
    %273 = vector.multi_reduction <add>, %272, %cst_93 [1] : vector<2x256xf32> to vector<2xf32>
    %274 = vector.shape_cast %273 : vector<2xf32> to vector<2x1xf32>
    %275 = vector.broadcast %274 : vector<2x1xf32> to vector<2x256xf32>
    %276 = arith.divf %272, %275 : vector<2x256xf32>
    %c3_94 = arith.constant 3 : index
    %c0_95 = arith.constant 0 : index
    %c0_96 = arith.constant 0 : index
    %277 = vector.load %arg10[%c3_94, %c0_95, %c0_96] : memref<4x2x256xf32, #tpu.memory_space<vmem>>, vector<1x2x256xf32>
    %278 = vector.shape_cast %277 : vector<1x2x256xf32> to vector<2x256xf32>
    %279 = vector.shape_cast %276 : vector<2x256xf32> to vector<1x2x256xf32>
    tpu.vector_store %arg10[%c3_94, %c0_95, %c0_96], %279 {strides = array<i32>} : memref<4x2x256xf32, #tpu.memory_space<vmem>>, vector<1x2x256xf32>,
    %c3_97 = arith.constant 3 : index
    %c0_98 = arith.constant 0 : index
    %c0_99 = arith.constant 0 : index
    %280 = vector.load %arg11[%c3_97, %c0_98, %c0_99] : memref<4x2x128xf32, #tpu.memory_space<vmem>>, vector<1x2x128xf32>
    %281 = vector.shape_cast %280 : vector<1x2x128xf32> to vector<2x128xf32>
    %282 = vector.shape_cast %263 : vector<2x128xf32> to vector<1x2x128xf32>
    tpu.vector_store %arg11[%c3_97, %c0_98, %c0_99], %282 {strides = array<i32>} : memref<4x2x128xf32, #tpu.memory_space<vmem>>, vector<1x2x128xf32>,
    %c0_100 = arith.constant 0 : index
    %c0_101 = arith.constant 0 : index
    %283 = vector.load %arg12[%c0_100, %c0_101] : memref<2x128xf32, #tpu.memory_space<vmem>>, vector<2x128xf32>
    tpu.vector_store %arg12[%c0_100, %c0_101], %263 {strides = array<i32>} : memref<2x128xf32, #tpu.memory_space<vmem>>, vector<2x128xf32>,
    return
  }
  func.func @transform_0(%arg0: i32) -> (i32, i32, i32) {
    %c0_i32 = arith.constant 0 : i32
    %c0_i32_0 = arith.constant 0 : i32
    %c0_i32_1 = arith.constant 0 : i32
    return %arg0, %c0_i32, %c0_i32_0 : i32, i32, i32
  }
  func.func @transform_1(%arg0: i32) -> (i32, i32) {
    %c0_i32 = arith.constant 0 : i32
    %c0_i32_0 = arith.constant 0 : i32
    %c0_i32_1 = arith.constant 0 : i32
    return %c0_i32, %c0_i32_0 : i32, i32
  }
  func.func @transform_2(%arg0: i32) -> (i32, i32) {
    %c0_i32 = arith.constant 0 : i32
    %c0_i32_0 = arith.constant 0 : i32
    %c0_i32_1 = arith.constant 0 : i32
    return %c0_i32, %c0_i32_0 : i32, i32
  }
  func.func @transform_3(%arg0: i32) -> (i32, i32) {
    %c0_i32 = arith.constant 0 : i32
    %c0_i32_0 = arith.constant 0 : i32
    %c0_i32_1 = arith.constant 0 : i32
    return %c0_i32, %c0_i32_0 : i32, i32
  }
  func.func @transform_4(%arg0: i32) -> (i32, i32) {
    %c0_i32 = arith.constant 0 : i32
    %c0_i32_0 = arith.constant 0 : i32
    %c0_i32_1 = arith.constant 0 : i32
    return %c0_i32, %c0_i32_0 : i32, i32
  }
  func.func @transform_5(%arg0: i32) -> (i32, i32) {
    %c0_i32 = arith.constant 0 : i32
    %c0_i32_0 = arith.constant 0 : i32
    %c0_i32_1 = arith.constant 0 : i32
    return %c0_i32, %c0_i32_0 : i32, i32
  }
  func.func @transform_6(%arg0: i32) -> (i32, i32) {
    %c0_i32 = arith.constant 0 : i32
    %c0_i32_0 = arith.constant 0 : i32
    %c0_i32_1 = arith.constant 0 : i32
    return %c0_i32, %c0_i32_0 : i32, i32
  }
  func.func @transform_7(%arg0: i32) -> (i32, i32) {
    %c0_i32 = arith.constant 0 : i32
    %c0_i32_0 = arith.constant 0 : i32
    %c0_i32_1 = arith.constant 0 : i32
    return %c0_i32, %c0_i32_0 : i32, i32
  }
  func.func @transform_8(%arg0: i32) -> (i32, i32) {
    %c0_i32 = arith.constant 0 : i32
    %c0_i32_0 = arith.constant 0 : i32
    %c0_i32_1 = arith.constant 0 : i32
    return %c0_i32, %c0_i32_0 : i32, i32
  }
  func.func @transform_9(%arg0: i32) -> (i32, i32, i32) {
    %c0_i32 = arith.constant 0 : i32
    %c0_i32_0 = arith.constant 0 : i32
    %c0_i32_1 = arith.constant 0 : i32
    return %arg0, %c0_i32, %c0_i32_0 : i32, i32, i32
  }
  func.func @transform_10(%arg0: i32) -> (i32, i32, i32) {
    %c0_i32 = arith.constant 0 : i32
    %c0_i32_0 = arith.constant 0 : i32
    %c0_i32_1 = arith.constant 0 : i32
    return %arg0, %c0_i32, %c0_i32_0 : i32, i32, i32
  }
}

</mosaic_0001>

<llo_original>
// kernel: tpu_custom_call.1
$region0: #{tpu_custom_call.1}
  #allocation0 [shape = 'u32[]', space=smem, size = 0x4, offset = 0x4, fixed_abs, tag = 'smem constant byte address 0x4 - core index']
  #allocation1 [shape = 'u32[144,128]{1,0:T(1,128)}', space=vmem, size = 0x12000, scoped, tag = 'internal scratch']
  #allocation2 [shape = 'f32[2,128]{1,0:T(2,128)}', space=vmem, size = 0x400, scoped, tag = 'scratch operand']
  %s0 = inlined_call_operand.vmem [shape: f32[8,2,512], index: 0, kind: input, shape index: {}]
  %s1 = inlined_call_operand.vmem [shape: f32[2,128], index: 1, kind: input, shape index: {}]
  %s2 = inlined_call_operand.vmem [shape: bf16[16,128], index: 2, kind: input, shape index: {}]
  %s3 = inlined_call_operand.vmem [shape: bf16[128,16], index: 3, kind: input, shape index: {}]
  %s4 = inlined_call_operand.vmem [shape: f32[2,16], index: 4, kind: input, shape index: {}]
  %s5 = inlined_call_operand.hbm [shape: bf16[128,512], index: 5, kind: input, shape index: {}]
  %s6 = inlined_call_operand.hbm [shape: bf16[128,512], index: 6, kind: input, shape index: {}]
  %s7 = inlined_call_operand.hbm [shape: bf16[128,256], index: 7, kind: input, shape index: {}]
  %s8 = inlined_call_operand.vmem [shape: f32[1,256], index: 8, kind: input, shape index: {}]
  %s9 = inlined_call_operand.hbm [shape: f32[8,2,256], index: 9, kind: output, shape index: {0}]
  %s10 = inlined_call_operand.hbm [shape: f32[8,2,128], index: 10, kind: output, shape index: {1}]
  %11 = xla_tuple %s9, %s10
  %s12 = sld [smem:[#allocation0]]
  $region93: #{tpu_custom_call.1} parent=0
    _
  %s14 = ssub.s32 1, %s12
  %s15 = scalar_select 0, %s14, %s12
  $region1: #{tpu_custom_call.1} parent=0
    #allocation3 [shape = 'u8[131072]{0}', space=vmem, size = 0x20000, scoped, tag = 'input window, operand 5, single buffered']
    #allocation4 [shape = 's32[2]{0}', space=sflag, size = 0x8, scoped, tag = 'scoped memory for tpu_custom_call.1']
    #allocation5 [shape = 's32[2]{0}', space=sflag, size = 0x8, scoped, tag = 'scoped memory for tpu_custom_call.1']
    #allocation6 [shape = 'u8[131072]{0}', space=vmem, size = 0x20000, scoped, tag = 'input window, operand 6, single buffered']
    #allocation7 [shape = 's32[1]{0}', space=sflag, size = 0x4, scoped, tag = 'scoped memory for tpu_custom_call.1']
    #allocation8 [shape = 'u8[65536]{0}', space=vmem, size = 0x10000, scoped, tag = 'input window, operand 7, single buffered']
    #allocation9 [shape = 'u8[16384]{0}', space=vmem, size = 0x4000, scoped, tag = 'output window, operand 0']
    #allocation10 [shape = 'u8[8192]{0}', space=vmem, size = 0x2000, scoped, tag = 'output window, operand 1']
    #allocation11 [shape = 's32[2]{0}', space=sflag, size = 0x8, scoped, tag = 'scoped memory for tpu_custom_call.1']
    %16 = vsyncpa [#allocation4], 0
    %17 = vsyncpa [#allocation7], 0
    %18 = vsyncpa [#allocation5], 0
    %s19 = scalar_lea.sflag [#allocation5], 1
    %20 = vsyncpa %s19, 0
    %21 = vsyncpa [#allocation11], 0
    %s22 = scalar_lea.sflag [#allocation11], 1
    %23 = vsyncpa %s22, 0
    loop: start=0, step=1, limit=4
    $region2: #{tpu_custom_call.1} parent=1 // loop_pre_header
      _
    $region3: #{tpu_custom_call.1} parent=1 // loop_header
      %s25 = sphi 0, %s29
      %p26 = scmp.ge.s32.totalorder %s25, 4
      %s35 = sphi 0, %s37
      %s38 = sphi 0, %s35
      %s39 = sphi 0, %s38
      %s55 = sphi 0, %s39
      %s59 = sphi 0, %s59
      %s61 = sphi 0, %s59
      %s62 = sphi 0, %s61
      %s76 = sphi 0, %s62
      %s80 = sphi 0, %s80
      %s82 = sphi 0, %s80
      %s83 = sphi 0, %s82
      %s97 = sphi 0, %s83
      %s101 = sphi 0, %s101
      %s103 = sphi 0, %s101
      %s104 = sphi 0, %s103
      %s118 = sphi 0, %s104
      %s122 = sphi 0, %s122
      %s124 = sphi 0, %s122
      %s125 = sphi 0, %s124
      %s139 = sphi 0, %s125
      %s143 = sphi 0, %s143
      %s145 = sphi 0, %s143
      %s146 = sphi 0, %s145
      %s160 = sphi 0, %s146
      %s164 = sphi 0, %s164
      %s166 = sphi 0, %s164
      %s167 = sphi 0, %s166
      %s181 = sphi 0, %s167
      %s185 = sphi 0, %s185
      %s187 = sphi 0, %s185
      %s188 = sphi 0, %s187
      %s202 = sphi 0, %s188
      %s206 = sphi 0, %s206
      %s208 = sphi 0, %s206
      %s209 = sphi 0, %s208
      %s223 = sphi 0, %s209
      %s229 = sphi 0, %s231
      %s232 = sphi 0, %s229
      %s233 = sphi 0, %s232
      %s249 = sphi 0, %s233
      %s255 = sphi 0, %s257
      %s258 = sphi 0, %s255
      %s259 = sphi 0, %s258
      %s275 = sphi 0, %s259
    $region4: #{tpu_custom_call.1} parent=1 // loop_header_branch
      %28 = sbr.rel (%p26) target = $region8
    $region5: #{tpu_custom_call.1} parent=1 // loop_body
      %s30 = ssub.s32 %s25, 1
      %s31 = ssub.s32 %s25, 2
      %s32 = sadd.s32 %s25, 1
      %s33 = ssub.s32 %s25, %s32
      %p34 = scmp.eq.s32.totalorder %s33, 0
      %s36 = sadd.s32 %s35, 1
      %s37 = scalar_select %p34, %s35, %s36
      %p40 = pneg %p34
      %p41 = scmp.eq.s32.totalorder %s25, 1
      %p42 = por %p40, %p41
      %p43 = scmp.ne.s32.totalorder %s35, %s38
      %p44 = scmp.eq.s32.totalorder %s25, 0
      %p45 = por %p43, %p44
      %p46 = scmp.ne.s32.totalorder %s35, %s38
      %p47 = scmp.eq.s32.totalorder %s30, 1
      %p48 = por %p46, %p47
      %p49 = scmp.ne.s32.totalorder %s38, %s39
      %p50 = scmp.eq.s32.totalorder %s30, 0
      %p51 = por %p49, %p50
      %p52 = scmp.ne.s32.totalorder %s38, %s39
      %p53 = scmp.eq.s32.totalorder %s31, 1
      %p54 = por %p52, %p53
      %p56 = scmp.ne.s32.totalorder %s39, %s55
      %p57 = scmp.eq.s32.totalorder %s31, 0
      %p58 = por %p56, %p57
      %s60 = sadd.s32 %s59, 1
      %p63 = scmp.eq.s32.totalorder %s25, 1
      %p64 = scmp.ne.s32.totalorder %s59, %s61
      %p65 = scmp.eq.s32.totalorder %s25, 0
      %p66 = por %p64, %p65
      %p67 = scmp.ne.s32.totalorder %s59, %s61
      %p68 = scmp.eq.s32.totalorder %s30, 1
      %p69 = por %p67, %p68
      %p70 = scmp.ne.s32.totalorder %s61, %s62
      %p71 = scmp.eq.s32.totalorder %s30, 0
      %p72 = por %p70, %p71
      %p73 = scmp.ne.s32.totalorder %s61, %s62
      %p74 = scmp.eq.s32.totalorder %s31, 1
      %p75 = por %p73, %p74
      %p77 = scmp.ne.s32.totalorder %s62, %s76
      %p78 = scmp.eq.s32.totalorder %s31, 0
      %p79 = por %p77, %p78
      %s81 = sadd.s32 %s80, 1
      %p84 = scmp.eq.s32.totalorder %s25, 1
      %p85 = scmp.ne.s32.totalorder %s80, %s82
      %p86 = scmp.eq.s32.totalorder %s25, 0
      %p87 = por %p85, %p86
      %p88 = scmp.ne.s32.totalorder %s80, %s82
      %p89 = scmp.eq.s32.totalorder %s30, 1
      %p90 = por %p88, %p89
      %p91 = scmp.ne.s32.totalorder %s82, %s83
      %p92 = scmp.eq.s32.totalorder %s30, 0
      %p93 = por %p91, %p92
      %p94 = scmp.ne.s32.totalorder %s82, %s83
      %p95 = scmp.eq.s32.totalorder %s31, 1
      %p96 = por %p94, %p95
      %p98 = scmp.ne.s32.totalorder %s83, %s97
      %p99 = scmp.eq.s32.totalorder %s31, 0
      %p100 = por %p98, %p99
      %s102 = sadd.s32 %s101, 1
      %p105 = scmp.eq.s32.totalorder %s25, 1
      %p106 = scmp.ne.s32.totalorder %s101, %s103
      %p107 = scmp.eq.s32.totalorder %s25, 0
      %p108 = por %p106, %p107
      %p109 = scmp.ne.s32.totalorder %s101, %s103
      %p110 = scmp.eq.s32.totalorder %s30, 1
      %p111 = por %p109, %p110
      %p112 = scmp.ne.s32.totalorder %s103, %s104
      %p113 = scmp.eq.s32.totalorder %s30, 0
      %p114 = por %p112, %p113
      %p115 = scmp.ne.s32.totalorder %s103, %s104
      %p116 = scmp.eq.s32.totalorder %s31, 1
      %p117 = por %p115, %p116
      %p119 = scmp.ne.s32.totalorder %s104, %s118
      %p120 = scmp.eq.s32.totalorder %s31, 0
      %p121 = por %p119, %p120
      %s123 = sadd.s32 %s122, 1
      %p126 = scmp.eq.s32.totalorder %s25, 1
      %p127 = scmp.ne.s32.totalorder %s122, %s124
      %p128 = scmp.eq.s32.totalorder %s25, 0
      %p129 = por %p127, %p128
      %p130 = scmp.ne.s32.totalorder %s122, %s124
      %p131 = scmp.eq.s32.totalorder %s30, 1
      %p132 = por %p130, %p131
      %p133 = scmp.ne.s32.totalorder %s124, %s125
      %p134 = scmp.eq.s32.totalorder %s30, 0
      %p135 = por %p133, %p134
      %p136 = scmp.ne.s32.totalorder %s124, %s125
      %p137 = scmp.eq.s32.totalorder %s31, 1
      %p138 = por %p136, %p137
      %p140 = scmp.ne.s32.totalorder %s125, %s139
      %p141 = scmp.eq.s32.totalorder %s31, 0
      %p142 = por %p140, %p141
      %s144 = sadd.s32 %s143, 1
      %p147 = scmp.eq.s32.totalorder %s25, 1
      %p148 = scmp.ne.s32.totalorder %s143, %s145
      %p149 = scmp.eq.s32.totalorder %s25, 0
      %p150 = por %p148, %p149
      %p151 = scmp.ne.s32.totalorder %s143, %s145
      %p152 = scmp.eq.s32.totalorder %s30, 1
      %p153 = por %p151, %p152
      %p154 = scmp.ne.s32.totalorder %s145, %s146
      %p155 = scmp.eq.s32.totalorder %s30, 0
      %p156 = por %p154, %p155
      %p157 = scmp.ne.s32.totalorder %s145, %s146
      %p158 = scmp.eq.s32.totalorder %s31, 1
      %p159 = por %p157, %p158
      %p161 = scmp.ne.s32.totalorder %s146, %s160
      %p162 = scmp.eq.s32.totalorder %s31, 0
      %p163 = por %p161, %p162
      %s165 = sadd.s32 %s164, 1
      %p168 = scmp.eq.s32.totalorder %s25, 1
      %p169 = scmp.ne.s32.totalorder %s164, %s166
      %p170 = scmp.eq.s32.totalorder %s25, 0
      %p171 = por %p169, %p170
      %p172 = scmp.ne.s32.totalorder %s164, %s166
      %p173 = scmp.eq.s32.totalorder %s30, 1
      %p174 = por %p172, %p173
      %p175 = scmp.ne.s32.totalorder %s166, %s167
      %p176 = scmp.eq.s32.totalorder %s30, 0
      %p177 = por %p175, %p176
      %p178 = scmp.ne.s32.totalorder %s166, %s167
      %p179 = scmp.eq.s32.totalorder %s31, 1
      %p180 = por %p178, %p179
      %p182 = scmp.ne.s32.totalorder %s167, %s181
      %p183 = scmp.eq.s32.totalorder %s31, 0
      %p184 = por %p182, %p183
      %s186 = sadd.s32 %s185, 1
      %p189 = scmp.eq.s32.totalorder %s25, 1
      %p190 = scmp.ne.s32.totalorder %s185, %s187
      %p191 = scmp.eq.s32.totalorder %s25, 0
      %p192 = por %p190, %p191
      %p193 = scmp.ne.s32.totalorder %s185, %s187
      %p194 = scmp.eq.s32.totalorder %s30, 1
      %p195 = por %p193, %p194
      %p196 = scmp.ne.s32.totalorder %s187, %s188
      %p197 = scmp.eq.s32.totalorder %s30, 0
      %p198 = por %p196, %p197
      %p199 = scmp.ne.s32.totalorder %s187, %s188
      %p200 = scmp.eq.s32.totalorder %s31, 1
      %p201 = por %p199, %p200
      %p203 = scmp.ne.s32.totalorder %s188, %s202
      %p204 = scmp.eq.s32.totalorder %s31, 0
      %p205 = por %p203, %p204
      %s207 = sadd.s32 %s206, 1
      %p210 = scmp.eq.s32.totalorder %s25, 1
      %p211 = scmp.ne.s32.totalorder %s206, %s208
      %p212 = scmp.eq.s32.totalorder %s25, 0
      %p213 = por %p211, %p212
      %p214 = scmp.ne.s32.totalorder %s206, %s208
      %p215 = scmp.eq.s32.totalorder %s30, 1
      %p216 = por %p214, %p215
      %p217 = scmp.ne.s32.totalorder %s208, %s209
      %p218 = scmp.eq.s32.totalorder %s30, 0
      %p219 = por %p217, %p218
      %p220 = scmp.ne.s32.totalorder %s208, %s209
      %p221 = scmp.eq.s32.totalorder %s31, 1
      %p222 = por %p220, %p221
      %p224 = scmp.ne.s32.totalorder %s209, %s223
      %p225 = scmp.eq.s32.totalorder %s31, 0
      %p226 = por %p224, %p225
      %s227 = ssub.s32 %s25, %s32
      %p228 = scmp.eq.s32.totalorder %s227, 0
      %s230 = sadd.s32 %s229, 1
      %s231 = scalar_select %p228, %s229, %s230
      %p234 = pneg %p228
      %p235 = scmp.eq.s32.totalorder %s25, 1
      %p236 = por %p234, %p235
      %p237 = scmp.ne.s32.totalorder %s229, %s232
      %p238 = scmp.eq.s32.totalorder %s25, 0
      %p239 = por %p237, %p238
      %p240 = scmp.ne.s32.totalorder %s229, %s232
      %p241 = scmp.eq.s32.totalorder %s30, 1
      %p242 = por %p240, %p241
      %p243 = scmp.ne.s32.totalorder %s232, %s233
      %p244 = scmp.eq.s32.totalorder %s30, 0
      %p245 = por %p243, %p244
      %p246 = scmp.ne.s32.totalorder %s232, %s233
      %p247 = scmp.eq.s32.totalorder %s31, 1
      %p248 = por %p246, %p247
      %p250 = scmp.ne.s32.totalorder %s233, %s249
      %p251 = scmp.eq.s32.totalorder %s31, 0
      %p252 = por %p250, %p251
      %s253 = ssub.s32 %s25, %s32
      %p254 = scmp.eq.s32.totalorder %s253, 0
      %s256 = sadd.s32 %s255, 1
      %s257 = scalar_select %p254, %s255, %s256
      %p260 = pneg %p254
      %p261 = scmp.eq.s32.totalorder %s25, 1
      %p262 = por %p260, %p261
      %p263 = scmp.ne.s32.totalorder %s255, %s258
      %p264 = scmp.eq.s32.totalorder %s25, 0
      %p265 = por %p263, %p264
      %p266 = scmp.ne.s32.totalorder %s255, %s258
      %p267 = scmp.eq.s32.totalorder %s30, 1
      %p268 = por %p266, %p267
      %p269 = scmp.ne.s32.totalorder %s258, %s259
      %p270 = scmp.eq.s32.totalorder %s30, 0
      %p271 = por %p269, %p270
      %p272 = scmp.ne.s32.totalorder %s258, %s259
      %p273 = scmp.eq.s32.totalorder %s31, 1
      %p274 = por %p272, %p273
      %p276 = scmp.ne.s32.totalorder %s259, %s275
      %p277 = scmp.eq.s32.totalorder %s31, 0
      %p278 = por %p276, %p277
      %p279 = scmp.le.s32.totalorder 1, %s25
      %p280 = scmp.lt.s32.totalorder %s25, 3
      %p281 = pnand %p279, %p280
      %p282 = pneg %p281
      // Predicated region
      $region9: #{tpu_custom_call.1} parent=5 // pred_check
        _
      $region10: #{tpu_custom_call.1} parent=5 // pred_check_branch
        %284 = sbr.rel (%p281) target = $region12
      $region11: #{tpu_custom_call.1} parent=5 // pred_region
        %s285 = ssub.s32 %s25, 1
        // Predicated region
        $region13: #{tpu_custom_call.1} parent=11 // pred_check
          %p286 = pneg %p72
        $region14: #{tpu_custom_call.1} parent=11 // pred_check_branch
          %288 = sbr.rel (%p286) target = $region16
        $region15: #{tpu_custom_call.1} parent=11 // pred_region
          _
        $region16: #{tpu_custom_call.1} parent=11 // pred_fallthru
          _
        // Predicated region
        $region17: #{tpu_custom_call.1} parent=11 // pred_check
          %p289 = pneg %p93
        $region18: #{tpu_custom_call.1} parent=11 // pred_check_branch
          %291 = sbr.rel (%p289) target = $region20
        $region19: #{tpu_custom_call.1} parent=11 // pred_region
          _
        $region20: #{tpu_custom_call.1} parent=11 // pred_fallthru
          _
        // Predicated region
        $region21: #{tpu_custom_call.1} parent=11 // pred_check
          %p292 = pneg %p114
        $region22: #{tpu_custom_call.1} parent=11 // pred_check_branch
          %294 = sbr.rel (%p292) target = $region24
        $region23: #{tpu_custom_call.1} parent=11 // pred_region
          _
        $region24: #{tpu_custom_call.1} parent=11 // pred_fallthru
          _
        // Predicated region
        $region25: #{tpu_custom_call.1} parent=11 // pred_check
          %p295 = pneg %p135
        $region26: #{tpu_custom_call.1} parent=11 // pred_check_branch
          %297 = sbr.rel (%p295) target = $region28
        $region27: #{tpu_custom_call.1} parent=11 // pred_region
          _
        $region28: #{tpu_custom_call.1} parent=11 // pred_fallthru
          _
        // Predicated region
        $region29: #{tpu_custom_call.1} parent=11 // pred_check
          %p298 = pneg %p156
        $region30: #{tpu_custom_call.1} parent=11 // pred_check_branch
          %300 = sbr.rel (%p298) target = $region32
        $region31: #{tpu_custom_call.1} parent=11 // pred_region
          %s302 = ssub.s32 4096, 4096
          %303 = vsyncadd [#allocation4], %s302
          %s304 = sshll.u32 [#allocation3], 4
          %s305 = int_to_ptr.vmem [resolvable:$true] %s304
          %310 = dma.hbm_to_vmem [thread:$0]  %s5, 4096, %s305, [#allocation4], 256, 256, 16
        $region32: #{tpu_custom_call.1} parent=11 // pred_fallthru
          _
        // Predicated region
        $region33: #{tpu_custom_call.1} parent=11 // pred_check
          %p311 = pneg %p177
        $region34: #{tpu_custom_call.1} parent=11 // pred_check_branch
          %313 = sbr.rel (%p311) target = $region36
        $region35: #{tpu_custom_call.1} parent=11 // pred_region
          %s315 = ssub.s32 4096, 4096
          %316 = vsyncadd [#allocation7], %s315
          %s317 = sshll.u32 [#allocation6], 4
          %s318 = int_to_ptr.vmem [resolvable:$true] %s317
          %323 = dma.hbm_to_vmem [thread:$0]  %s6, 4096, %s318, [#allocation7], 256, 256, 16
        $region36: #{tpu_custom_call.1} parent=11 // pred_fallthru
          _
        // Predicated region
        $region37: #{tpu_custom_call.1} parent=11 // pred_check
          %p324 = pneg %p198
        $region38: #{tpu_custom_call.1} parent=11 // pred_check_branch
          %326 = sbr.rel (%p324) target = $region40
        $region39: #{tpu_custom_call.1} parent=11 // pred_region
          %s328 = ssub.s32 2048, 2048
          %329 = vsyncadd [#allocation7], %s328
          %s330 = sshll.u32 [#allocation8], 4
          %s331 = int_to_ptr.vmem [resolvable:$true] %s330
          %336 = dma.hbm_to_vmem [thread:$0]  %s7, 2048, %s331, [#allocation7], 128, 128, 8
        $region40: #{tpu_custom_call.1} parent=11 // pred_fallthru
          _
        // Predicated region
        $region41: #{tpu_custom_call.1} parent=11 // pred_check
          %p337 = pneg %p219
        $region42: #{tpu_custom_call.1} parent=11 // pred_check_branch
          %339 = sbr.rel (%p337) target = $region44
        $region43: #{tpu_custom_call.1} parent=11 // pred_region
          _
        $region44: #{tpu_custom_call.1} parent=11 // pred_fallthru
          _
      $region12: #{tpu_custom_call.1} parent=5 // pred_fallthru
        _
      %p340 = scmp.lt.s32.totalorder %s25, 2
      // Predicated region
      $region45: #{tpu_custom_call.1} parent=5 // pred_check
        %p341 = pneg %p340
      $region46: #{tpu_custom_call.1} parent=5 // pred_check_branch
        %343 = sbr.rel (%p341) target = $region48
      $region47: #{tpu_custom_call.1} parent=5 // pred_region
        // Predicated region
        $region49: #{tpu_custom_call.1} parent=47 // pred_check
          %p344 = pneg %p45
        $region50: #{tpu_custom_call.1} parent=47 // pred_check_branch
          %346 = sbr.rel (%p344) target = $region52
        $region51: #{tpu_custom_call.1} parent=47 // pred_region
          %s347 = smul.u32 4, %s25
          %p348 = scmp.lt.s32.totalorder %s347, 7
          %s349 = scalar_select %p348, %s347, 7
          %s350 = smul.addr %s349, 4
          %s351 = smul.addr %s350, 2
          %s352 = scalar_lea.vmem %s0, %s351
          %s353 = smul.u32 4, %s25
        $region52: #{tpu_custom_call.1} parent=47 // pred_fallthru
          _
      $region48: #{tpu_custom_call.1} parent=5 // pred_fallthru
        _
      %p354 = scmp.le.s32.totalorder 1, %s25
      %p355 = scmp.lt.s32.totalorder %s25, 3
      %p356 = pnand %p354, %p355
      %p357 = pneg %p356
      // Predicated region
      $region53: #{tpu_custom_call.1} parent=5 // pred_check
        _
      $region54: #{tpu_custom_call.1} parent=5 // pred_check_branch
        %359 = sbr.rel (%p356) target = $region56
      $region55: #{tpu_custom_call.1} parent=5 // pred_region
        %s360 = ssub.s32 %s25, 1
        // Predicated region
        $region57: #{tpu_custom_call.1} parent=55 // pred_check
          %p361 = pneg %p156
        $region58: #{tpu_custom_call.1} parent=55 // pred_check_branch
          %363 = sbr.rel (%p361) target = $region60
        $region59: #{tpu_custom_call.1} parent=55 // pred_region
          %364 = dma.done [#allocation4], 4096
        $region60: #{tpu_custom_call.1} parent=55 // pred_fallthru
          _
        // Predicated region
        $region61: #{tpu_custom_call.1} parent=55 // pred_check
          %p365 = pneg %p177
        $region62: #{tpu_custom_call.1} parent=55 // pred_check_branch
          %367 = sbr.rel (%p365) target = $region64
        $region63: #{tpu_custom_call.1} parent=55 // pred_region
          %368 = dma.done [#allocation7], 4096
        $region64: #{tpu_custom_call.1} parent=55 // pred_fallthru
          _
        // Predicated region
        $region65: #{tpu_custom_call.1} parent=55 // pred_check
          %p369 = pneg %p198
        $region66: #{tpu_custom_call.1} parent=55 // pred_check_branch
          %371 = sbr.rel (%p369) target = $region68
        $region67: #{tpu_custom_call.1} parent=55 // pred_region
          %372 = dma.done [#allocation7], 2048
        $region68: #{tpu_custom_call.1} parent=55 // pred_fallthru
          _
        %s373 = smul.u32 4, %s30
        %p374 = scmp.lt.s32.totalorder %s373, 7
        %s375 = scalar_select %p374, %s373, 7
        %s376 = smul.addr %s375, 4
        %s377 = smul.addr %s376, 2
        %s378 = scalar_lea.vmem %s0, %s377
        %p379 = pneg %p51
        %p380 = pneg %p48
        %p381 = pneg %p72
        %p382 = pneg %p69
        %p383 = pneg %p93
        %p384 = pneg %p90
        %p385 = pneg %p114
        %p386 = pneg %p111
        %p387 = pneg %p135
        %p388 = pneg %p132
        %p389 = pneg %p156
        %p390 = pneg %p153
        %p391 = pneg %p177
        %p392 = pneg %p174
        %p393 = pneg %p198
        %p394 = pneg %p195
        %p395 = pneg %p219
        %p396 = pneg %p216
        %p397 = pneg %p245
        %p398 = pneg %p242
        %s399 = sand.u32 %s232, 1
        %s400 = scalar_lea.sflag [#allocation5], %s399
        %s401 = sand.u32 %s232, 1
        %s402 = smul.addr %s401, 16
        %s403 = scalar_lea.vmem [#allocation9], %s402
        %p404 = pneg %p271
        %p405 = pneg %p268
        %s406 = sand.u32 %s258, 1
        %s407 = scalar_lea.sflag [#allocation11], %s406
        %s408 = sand.u32 %s258, 1
        %s409 = smul.addr %s408, 8
        %s410 = scalar_lea.vmem [#allocation10], %s409
        %s411 = smul.u32 4, %s30
        %p412 = scmp.lt.s32.totalorder %s411, 7
        %s413 = scalar_select %p412, %s411, 7
        %s414 = smul.addr %s413, 4
        %s415 = smul.addr %s414, 2
        %s416 = scalar_lea.vmem %s0, %s415
        %s417 = smul.u32 4, %s30
        %s418 = smul.u32 4, %s30
        %s419 = smul.u32 4, %s30
        %p421 = scmp.eq.s32.totalorder %s30, 0
        // Predicated region
        $region69: #{tpu_custom_call.1} parent=55 // pred_check
          %p422 = pneg %p421
        $region70: #{tpu_custom_call.1} parent=55 // pred_check_branch
          %424 = sbr.rel (%p422) target = $region72
        $region71: #{tpu_custom_call.1} parent=55 // pred_region
          %v425 = vld [vmem:[%s1] sm:$0x3]
          %426 = vst [vmem:[#allocation2] sm:$0x3] %v425
        $region72: #{tpu_custom_call.1} parent=55 // pred_fallthru
          _
        %v427 = vld [vmem:[%s2] sm:$0xf]
        %v428 = vld [vmem:[%s2 + $0x4] sm:$0xf]
        %v429 = vld [vmem:[%s3] sm:$0xf]
        %v430 = vld [vmem:[%s3 + $0x4] sm:$0xf]
        %v431 = vld [vmem:[%s3 + $0x8] sm:$0xf]
        %v432 = vld [vmem:[%s3 + $0xc] sm:$0xf]
        %v433 = vld [vmem:[%s3 + $0x10] sm:$0xf]
        %v434 = vld [vmem:[%s3 + $0x14] sm:$0xf]
        %v435 = vld [vmem:[%s3 + $0x18] sm:$0xf]
        %v436 = vld [vmem:[%s3 + $0x1c] sm:$0xf]
        %v437 = vld [vmem:[%s3 + $0x20] sm:$0xf]
        %v438 = vld [vmem:[%s3 + $0x24] sm:$0xf]
        %v439 = vld [vmem:[%s3 + $0x28] sm:$0xf]
        %v440 = vld [vmem:[%s3 + $0x2c] sm:$0xf]
        %v441 = vld [vmem:[%s3 + $0x30] sm:$0xf]
        %v442 = vld [vmem:[%s3 + $0x34] sm:$0xf]
        %v443 = vld [vmem:[%s3 + $0x38] sm:$0xf]
        %v444 = vld [vmem:[%s3 + $0x3c] sm:$0xf]
        %v445 = vld [vmem:[%s4] sm:$0x3]
        %v446 = vld [vmem:[#allocation3] sm:$0xff]
        %v447 = vld [vmem:[#allocation3 + $0x8] sm:$0xff]
        %v448 = vld [vmem:[#allocation3 + $0x10] sm:$0xff]
        %v449 = vld [vmem:[#allocation3 + $0x18] sm:$0xff]
        %v450 = vld [vmem:[#allocation3 + $0x20] sm:$0xff]
        %v451 = vld [vmem:[#allocation3 + $0x28] sm:$0xff]
        %v452 = vld [vmem:[#allocation3 + $0x30] sm:$0xff]
        %v453 = vld [vmem:[#allocation3 + $0x38] sm:$0xff]
        %v454 = vld [vmem:[#allocation3 + $0x40] sm:$0xff]
        %v455 = vld [vmem:[#allocation3 + $0x48] sm:$0xff]
        %v456 = vld [vmem:[#allocation3 + $0x50] sm:$0xff]
        %v457 = vld [vmem:[#allocation3 + $0x58] sm:$0xff]
        %v458 = vld [vmem:[#allocation3 + $0x60] sm:$0xff]
        %v459 = vld [vmem:[#allocation3 + $0x68] sm:$0xff]
        %v460 = vld [vmem:[#allocation3 + $0x70] sm:$0xff]
        %v461 = vld [vmem:[#allocation3 + $0x78] sm:$0xff]
        %v462 = vld [vmem:[#allocation3 + $0x80] sm:$0xff]
        %v463 = vld [vmem:[#allocation3 + $0x88] sm:$0xff]
        %v464 = vld [vmem:[#allocation3 + $0x90] sm:$0xff]
        %v465 = vld [vmem:[#allocation3 + $0x98] sm:$0xff]
        %v466 = vld [vmem:[#allocation3 + $0xa0] sm:$0xff]
        %v467 = vld [vmem:[#allocation3 + $0xa8] sm:$0xff]
        %v468 = vld [vmem:[#allocation3 + $0xb0] sm:$0xff]
        %v469 = vld [vmem:[#allocation3 + $0xb8] sm:$0xff]
        %v470 = vld [vmem:[#allocation3 + $0xc0] sm:$0xff]
        %v471 = vld [vmem:[#allocation3 + $0xc8] sm:$0xff]
        %v472 = vld [vmem:[#allocation3 + $0xd0] sm:$0xff]
        %v473 = vld [vmem:[#allocation3 + $0xd8] sm:$0xff]
        %v474 = vld [vmem:[#allocation3 + $0xe0] sm:$0xff]
        %v475 = vld [vmem:[#allocation3 + $0xe8] sm:$0xff]
        %v476 = vld [vmem:[#allocation3 + $0xf0] sm:$0xff]
        %v477 = vld [vmem:[#allocation3 + $0xf8] sm:$0xff]
        %v478 = vld [vmem:[#allocation6] sm:$0xff]
        %v479 = vld [vmem:[#allocation6 + $0x8] sm:$0xff]
        %v480 = vld [vmem:[#allocation6 + $0x10] sm:$0xff]
        %v481 = vld [vmem:[#allocation6 + $0x18] sm:$0xff]
        %v482 = vld [vmem:[#allocation6 + $0x20] sm:$0xff]
        %v483 = vld [vmem:[#allocation6 + $0x28] sm:$0xff]
        %v484 = vld [vmem:[#allocation6 + $0x30] sm:$0xff]
        %v485 = vld [vmem:[#allocation6 + $0x38] sm:$0xff]
        %v486 = vld [vmem:[#allocation6 + $0x40] sm:$0xff]
        %v487 = vld [vmem:[#allocation6 + $0x48] sm:$0xff]
        %v488 = vld [vmem:[#allocation6 + $0x50] sm:$0xff]
        %v489 = vld [vmem:[#allocation6 + $0x58] sm:$0xff]
        %v490 = vld [vmem:[#allocation6 + $0x60] sm:$0xff]
        %v491 = vld [vmem:[#allocation6 + $0x68] sm:$0xff]
        %v492 = vld [vmem:[#allocation6 + $0x70] sm:$0xff]
        %v493 = vld [vmem:[#allocation6 + $0x78] sm:$0xff]
        %v494 = vld [vmem:[#allocation6 + $0x80] sm:$0xff]
        %v495 = vld [vmem:[#allocation6 + $0x88] sm:$0xff]
        %v496 = vld [vmem:[#allocation6 + $0x90] sm:$0xff]
        %v497 = vld [vmem:[#allocation6 + $0x98] sm:$0xff]
        %v498 = vld [vmem:[#allocation6 + $0xa0] sm:$0xff]
        %v499 = vld [vmem:[#allocation6 + $0xa8] sm:$0xff]
        %v500 = vld [vmem:[#allocation6 + $0xb0] sm:$0xff]
        %v501 = vld [vmem:[#allocation6 + $0xb8] sm:$0xff]
        %v502 = vld [vmem:[#allocation6 + $0xc0] sm:$0xff]
        %v503 = vld [vmem:[#allocation6 + $0xc8] sm:$0xff]
        %v504 = vld [vmem:[#allocation6 + $0xd0] sm:$0xff]
        %v505 = vld [vmem:[#allocation6 + $0xd8] sm:$0xff]
        %v506 = vld [vmem:[#allocation6 + $0xe0] sm:$0xff]
        %v507 = vld [vmem:[#allocation6 + $0xe8] sm:$0xff]
        %v508 = vld [vmem:[#allocation6 + $0xf0] sm:$0xff]
        %v509 = vld [vmem:[#allocation6 + $0xf8] sm:$0xff]
        %v510 = vld [vmem:[#allocation8] sm:$0xff]
        %v511 = vld [vmem:[#allocation8 + $0x8] sm:$0xff]
        %v512 = vld [vmem:[#allocation8 + $0x10] sm:$0xff]
        %v513 = vld [vmem:[#allocation8 + $0x18] sm:$0xff]
        %v514 = vld [vmem:[#allocation8 + $0x20] sm:$0xff]
        %v515 = vld [vmem:[#allocation8 + $0x28] sm:$0xff]
        %v516 = vld [vmem:[#allocation8 + $0x30] sm:$0xff]
        %v517 = vld [vmem:[#allocation8 + $0x38] sm:$0xff]
        %v518 = vld [vmem:[#allocation8 + $0x40] sm:$0xff]
        %v519 = vld [vmem:[#allocation8 + $0x48] sm:$0xff]
        %v520 = vld [vmem:[#allocation8 + $0x50] sm:$0xff]
        %v521 = vld [vmem:[#allocation8 + $0x58] sm:$0xff]
        %v522 = vld [vmem:[#allocation8 + $0x60] sm:$0xff]
        %v523 = vld [vmem:[#allocation8 + $0x68] sm:$0xff]
        %v524 = vld [vmem:[#allocation8 + $0x70] sm:$0xff]
        %v525 = vld [vmem:[#allocation8 + $0x78] sm:$0xff]
        %v526 = vld [vmem:[%s8] sm:$0x3]
        %v527 = vld [vmem:[#allocation2] sm:$0x3]
        %v528 = vpack.c.bf16 %v527, %v527
        %v545 = vunpack.c.l.b16 %v429
        %v546 = vunpack.c.l.b16 %v430
        %v547 = vunpack.c.l.b16 %v431
        %v548 = vunpack.c.l.b16 %v432
        %v549 = vunpack.c.l.b16 %v433
        %v550 = vunpack.c.l.b16 %v434
        %v551 = vunpack.c.l.b16 %v435
        %v552 = vunpack.c.l.b16 %v436
        %v553 = vunpack.c.l.b16 %v437
        %v554 = vunpack.c.l.b16 %v438
        %v555 = vunpack.c.l.b16 %v439
        %v556 = vunpack.c.l.b16 %v440
        %v557 = vunpack.c.l.b16 %v441
        %v558 = vunpack.c.l.b16 %v442
        %v559 = vunpack.c.l.b16 %v443
        %v560 = vunpack.c.l.b16 %v444
        %v561 = vpack.c.b16 %v546, %v545
        %v562 = vpack.c.b16 %v548, %v547
        %v563 = vpack.c.b16 %v550, %v549
        %v564 = vpack.c.b16 %v552, %v551
        %v565 = vpack.c.b16 %v554, %v553
        %v566 = vpack.c.b16 %v556, %v555
        %v567 = vpack.c.b16 %v558, %v557
        %v568 = vpack.c.b16 %v560, %v559
        %577 = vmatprep.subr.bf16.mxu0 0
        %578 = vmatpush1.bf16.msra.mxu0 %v561
        %579 = vmatprep.subr.bf16.mxu0 0
        %580 = vmatpush1.bf16.msra.mxu0 %v562
        %581 = vmatprep.subr.bf16.mxu0 0
        %582 = vmatpush1.bf16.msra.mxu0 %v563
        %583 = vmatprep.subr.bf16.mxu0 0
        %584 = vmatpush1.bf16.msra.mxu0 %v564
        %585 = vmatprep.subr.bf16.mxu0 0
        %586 = vmatpush1.bf16.msra.mxu0 %v565
        %587 = vmatprep.subr.bf16.mxu0 0
        %588 = vmatpush1.bf16.msra.mxu0 %v566
        %589 = vmatprep.subr.bf16.mxu0 0
        %590 = vmatpush1.bf16.msra.mxu0 %v567
        %591 = vmatprep.subr.bf16.mxu0 0
        %592 = vmatpush1.bf16.msra.mxu0 %v568
        %593 = vmatprep.subr.bf16.mxu0 0
        %594 = vmatpush1.bf16.msra.mxu0 0
        %595 = vmatprep.subr.bf16.mxu0 0
        %596 = vmatpush1.bf16.msra.mxu0 0
        %597 = vmatprep.subr.bf16.mxu0 0
        %598 = vmatpush1.bf16.msra.mxu0 0
        %599 = vmatprep.subr.bf16.mxu0 0
        %600 = vmatpush1.bf16.msra.mxu0 0
        %601 = vmatprep.subr.bf16.mxu0 0
        %602 = vmatpush1.bf16.msra.mxu0 0
        %603 = vmatprep.subr.bf16.mxu0 0
        %604 = vmatpush1.bf16.msra.mxu0 0
        %605 = vmatprep.subr.bf16.mxu0 0
        %606 = vmatpush1.bf16.msra.mxu0 0
        %607 = vmatprep.subr.bf16.mxu0 0
        %608 = vmatpush1.bf16.msra.mxu0 0
        %609 = vmatprep.mubr.bf16.mxu0 0
        %610 = vmatmul.mubr.bf16.gmra.mrb[0].mxu0 %v528
        %v611 = vpop.f32.mrb[0].mxu0
        %v612 = vadd.f32 0.0, %v611
        %v613 = vpop.f32.mrb[0].mxu0
        %v614 = vpop.f32.mrb[0].mxu0
        %v615 = vpop.f32.mrb[0].mxu0
        %616 = vdwg.mxu0
        %v617 = vmul.f32 %v612, 0.088388346
        %v618 = vadd.f32 %v617, %v445
        %vm619 = vcmask 123904
        %v620 = vsel %vm619, %v618, -inf
        %621 = vmax.xlane.f32.xlu0 %v620
        %v622 = vpop.xlane.xlu0 %621
        %v623 = vsub.f32 %v618, %v622
        %v624 = vmul.f32 %v623, 1.442695
        %v625 = vpow.pop %v624
        %v626 = vsel %vm619, %v625, 0.0
        %627 = vadd.xlane.f32.xlu0 %v626
        %v628 = vpop.xlane.xlu0 %627
        %v629 = vrcp.pop %v628
        %v630 = vmul.f32 %v625, %v629
        %v631 = vpack.c.bf16 %v630, %v630
        %v634 = vunpack.c.l.b16 %v427
        %v635 = vunpack.c.l.b16 %v428
        %v636 = vpack.c.b16 %v635, %v634
        %vm638 = vcmask 130048
        %v640 = vsel %vm638, %v631, 0
        %642 = vmatprep.subr.bf16.mxu0 0
        %643 = vmatpush1.bf16.msra.mxu0 %v636
        %644 = vmatprep.subr.bf16.mxu0 0
        %645 = vmatpush1.bf16.msra.mxu0 0
        %646 = vmatprep.subr.bf16.mxu0 0
        %647 = vmatpush1.bf16.msra.mxu0 0
        %648 = vmatprep.subr.bf16.mxu0 0
        %649 = vmatpush1.bf16.msra.mxu0 0
        %650 = vmatprep.subr.bf16.mxu0 0
        %651 = vmatpush1.bf16.msra.mxu0 0
        %652 = vmatprep.subr.bf16.mxu0 0
        %653 = vmatpush1.bf16.msra.mxu0 0
        %654 = vmatprep.subr.bf16.mxu0 0
        %655 = vmatpush1.bf16.msra.mxu0 0
        %656 = vmatprep.subr.bf16.mxu0 0
        %657 = vmatpush1.bf16.msra.mxu0 0
        %658 = vmatprep.subr.bf16.mxu0 0
        %659 = vmatpush1.bf16.msra.mxu0 0
        %660 = vmatprep.subr.bf16.mxu0 0
        %661 = vmatpush1.bf16.msra.mxu0 0
        %662 = vmatprep.subr.bf16.mxu0 0
        %663 = vmatpush1.bf16.msra.mxu0 0
        %664 = vmatprep.subr.bf16.mxu0 0
        %665 = vmatpush1.bf16.msra.mxu0 0
        %666 = vmatprep.subr.bf16.mxu0 0
        %667 = vmatpush1.bf16.msra.mxu0 0
        %668 = vmatprep.subr.bf16.mxu0 0
        %669 = vmatpush1.bf16.msra.mxu0 0
        %670 = vmatprep.subr.bf16.mxu0 0
        %671 = vmatpush1.bf16.msra.mxu0 0
        %672 = vmatprep.subr.bf16.mxu0 0
        %673 = vmatpush1.bf16.msra.mxu0 0
        %674 = vmatprep.mubr.bf16.mxu0 0
        %675 = vmatmul.mubr.bf16.gmra.mrb[0].mxu0 %v640
        %v676 = vpop.f32.mrb[0].mxu0
        %v677 = vadd.f32 0.0, %v676
        %v678 = vpop.f32.mrb[0].mxu0
        %v679 = vpop.f32.mrb[0].mxu0
        %v680 = vpop.f32.mrb[0].mxu0
        %681 = vdwg.mxu0
        %v682 = vld [vmem:[%s416] sm:$0xff]
        %v683 = vpack.c.bf16 %v677, %v677
        %v716 = vunpack.c.l.b16 %v446
        %v717 = vunpack.c.h.b16 %v446
        %v718 = vunpack.c.l.b16 %v447
        %v719 = vunpack.c.h.b16 %v447
        %v720 = vunpack.c.l.b16 %v448
        %v721 = vunpack.c.h.b16 %v448
        %v722 = vunpack.c.l.b16 %v449
        %v723 = vunpack.c.h.b16 %v449
        %v724 = vunpack.c.l.b16 %v450
        %v725 = vunpack.c.h.b16 %v450
        %v726 = vunpack.c.l.b16 %v451
        %v727 = vunpack.c.h.b16 %v451
        %v728 = vunpack.c.l.b16 %v452
        %v729 = vunpack.c.h.b16 %v452
        %v730 = vunpack.c.l.b16 %v453
        %v731 = vunpack.c.h.b16 %v453
        %v732 = vunpack.c.l.b16 %v454
        %v733 = vunpack.c.h.b16 %v454
        %v734 = vunpack.c.l.b16 %v455
        %v735 = vunpack.c.h.b16 %v455
        %v736 = vunpack.c.l.b16 %v456
        %v737 = vunpack.c.h.b16 %v456
        %v738 = vunpack.c.l.b16 %v457
        %v739 = vunpack.c.h.b16 %v457
        %v740 = vunpack.c.l.b16 %v458
        %v741 = vunpack.c.h.b16 %v458
        %v742 = vunpack.c.l.b16 %v459
        %v743 = vunpack.c.h.b16 %v459
        %v744 = vunpack.c.l.b16 %v460
        %v745 = vunpack.c.h.b16 %v460
        %v746 = vunpack.c.l.b16 %v461
        %v747 = vunpack.c.h.b16 %v461
        %v748 = vunpack.c.l.b16 %v462
        %v749 = vunpack.c.h.b16 %v462
        %v750 = vunpack.c.l.b16 %v463
        %v751 = vunpack.c.h.b16 %v463
        %v752 = vunpack.c.l.b16 %v464
        %v753 = vunpack.c.h.b16 %v464
        %v754 = vunpack.c.l.b16 %v465
        %v755 = vunpack.c.h.b16 %v465
        %v756 = vunpack.c.l.b16 %v466
        %v757 = vunpack.c.h.b16 %v466
        %v758 = vunpack.c.l.b16 %v467
        %v759 = vunpack.c.h.b16 %v467
        %v760 = vunpack.c.l.b16 %v468
        %v761 = vunpack.c.h.b16 %v468
        %v762 = vunpack.c.l.b16 %v469
        %v763 = vunpack.c.h.b16 %v469
        %v764 = vunpack.c.l.b16 %v470
        %v765 = vunpack.c.h.b16 %v470
        %v766 = vunpack.c.l.b16 %v471
        %v767 = vunpack.c.h.b16 %v471
        %v768 = vunpack.c.l.b16 %v472
        %v769 = vunpack.c.h.b16 %v472
        %v770 = vunpack.c.l.b16 %v473
        %v771 = vunpack.c.h.b16 %v473
        %v772 = vunpack.c.l.b16 %v474
        %v773 = vunpack.c.h.b16 %v474
        %v774 = vunpack.c.l.b16 %v475
        %v775 = vunpack.c.h.b16 %v475
        %v776 = vunpack.c.l.b16 %v476
        %v777 = vunpack.c.h.b16 %v476
        %v778 = vunpack.c.l.b16 %v477
        %v779 = vunpack.c.h.b16 %v477
        %v780 = vpack.c.b16 %v720, %v716
        %v781 = vpack.c.b16 %v721, %v717
        %v782 = vpack.c.b16 %v722, %v718
        %v783 = vpack.c.b16 %v723, %v719
        %v784 = vpack.c.b16 %v728, %v724
        %v785 = vpack.c.b16 %v729, %v725
        %v786 = vpack.c.b16 %v730, %v726
        %v787 = vpack.c.b16 %v731, %v727
        %v788 = vpack.c.b16 %v736, %v732
        %v789 = vpack.c.b16 %v737, %v733
        %v790 = vpack.c.b16 %v738, %v734
        %v791 = vpack.c.b16 %v739, %v735
        %v792 = vpack.c.b16 %v744, %v740
        %v793 = vpack.c.b16 %v745, %v741
        %v794 = vpack.c.b16 %v746, %v742
        %v795 = vpack.c.b16 %v747, %v743
        %v796 = vpack.c.b16 %v752, %v748
        %v797 = vpack.c.b16 %v753, %v749
        %v798 = vpack.c.b16 %v754, %v750
        %v799 = vpack.c.b16 %v755, %v751
        %v800 = vpack.c.b16 %v760, %v756
        %v801 = vpack.c.b16 %v761, %v757
        %v802 = vpack.c.b16 %v762, %v758
        %v803 = vpack.c.b16 %v763, %v759
        %v804 = vpack.c.b16 %v768, %v764
        %v805 = vpack.c.b16 %v769, %v765
        %v806 = vpack.c.b16 %v770, %v766
        %v807 = vpack.c.b16 %v771, %v767
        %v808 = vpack.c.b16 %v776, %v772
        %v809 = vpack.c.b16 %v777, %v773
        %v810 = vpack.c.b16 %v778, %v774
        %v811 = vpack.c.b16 %v779, %v775
        %844 = vmatprep.subr.bf16.mxu0 %v781
        %845 = vmatpush1.bf16.msra.mxu0 %v780
        %846 = vmatprep.subr.bf16.mxu0 %v785
        %847 = vmatpush1.bf16.msra.mxu0 %v784
        %848 = vmatprep.subr.bf16.mxu0 %v789
        %849 = vmatpush1.bf16.msra.mxu0 %v788
        %850 = vmatprep.subr.bf16.mxu0 %v793
        %851 = vmatpush1.bf16.msra.mxu0 %v792
        %852 = vmatprep.subr.bf16.mxu0 %v797
        %853 = vmatpush1.bf16.msra.mxu0 %v796
        %854 = vmatprep.subr.bf16.mxu0 %v801
        %855 = vmatpush1.bf16.msra.mxu0 %v800
        %856 = vmatprep.subr.bf16.mxu0 %v805
        %857 = vmatpush1.bf16.msra.mxu0 %v804
        %858 = vmatprep.subr.bf16.mxu0 %v809
        %859 = vmatpush1.bf16.msra.mxu0 %v808
        %860 = vmatprep.subr.bf16.mxu0 0
        %861 = vmatpush1.bf16.msra.mxu0 0
        %862 = vmatprep.subr.bf16.mxu0 0
        %863 = vmatpush1.bf16.msra.mxu0 0
        %864 = vmatprep.subr.bf16.mxu0 0
        %865 = vmatpush1.bf16.msra.mxu0 0
        %866 = vmatprep.subr.bf16.mxu0 0
        %867 = vmatpush1.bf16.msra.mxu0 0
        %868 = vmatprep.subr.bf16.mxu0 0
        %869 = vmatpush1.bf16.msra.mxu0 0
        %870 = vmatprep.subr.bf16.mxu0 0
        %871 = vmatpush1.bf16.msra.mxu0 0
        %872 = vmatprep.subr.bf16.mxu0 0
        %873 = vmatpush1.bf16.msra.mxu0 0
        %874 = vmatprep.subr.bf16.mxu0 0
        %875 = vmatpush1.bf16.msra.mxu0 0
        %876 = vmatprep.mubr.bf16.mxu0 0
        %877 = vmatmul.mubr.bf16.gmra.mrb[0].mxu0 %v683
        %v878 = vpop.f32.mrb[0].mxu0
        %v879 = vadd.f32 0.0, %v878
        %v880 = vpop.f32.mrb[0].mxu0
        %v881 = vadd.f32 0.0, %v880
        %v882 = vpop.f32.mrb[0].mxu0
        %v883 = vpop.f32.mrb[0].mxu0
        %884 = vdwg.mxu0
        %885 = vmatprep.subr.bf16.mxu0 %v783
        %886 = vmatpush1.bf16.msra.mxu0 %v782
        %887 = vmatprep.subr.bf16.mxu0 %v787
        %888 = vmatpush1.bf16.msra.mxu0 %v786
        %889 = vmatprep.subr.bf16.mxu0 %v791
        %890 = vmatpush1.bf16.msra.mxu0 %v790
        %891 = vmatprep.subr.bf16.mxu0 %v795
        %892 = vmatpush1.bf16.msra.mxu0 %v794
        %893 = vmatprep.subr.bf16.mxu0 %v799
        %894 = vmatpush1.bf16.msra.mxu0 %v798
        %895 = vmatprep.subr.bf16.mxu0 %v803
        %896 = vmatpush1.bf16.msra.mxu0 %v802
        %897 = vmatprep.subr.bf16.mxu0 %v807
        %898 = vmatpush1.bf16.msra.mxu0 %v806
        %899 = vmatprep.subr.bf16.mxu0 %v811
        %900 = vmatpush1.bf16.msra.mxu0 %v810
        %901 = vmatprep.subr.bf16.mxu0 0
        %902 = vmatpush1.bf16.msra.mxu0 0
        %903 = vmatprep.subr.bf16.mxu0 0
        %904 = vmatpush1.bf16.msra.mxu0 0
        %905 = vmatprep.subr.bf16.mxu0 0
        %906 = vmatpush1.bf16.msra.mxu0 0
        %907 = vmatprep.subr.bf16.mxu0 0
        %908 = vmatpush1.bf16.msra.mxu0 0
        %909 = vmatprep.subr.bf16.mxu0 0
        %910 = vmatpush1.bf16.msra.mxu0 0
        %911 = vmatprep.subr.bf16.mxu0 0
        %912 = vmatpush1.bf16.msra.mxu0 0
        %913 = vmatprep.subr.bf16.mxu0 0
        %914 = vmatpush1.bf16.msra.mxu0 0
        %915 = vmatprep.subr.bf16.mxu0 0
        %916 = vmatpush1.bf16.msra.mxu0 0
        %917 = vmatprep.mubr.bf16.mxu0 0
        %918 = vmatmul.mubr.bf16.gmra.mrb[0].mxu0 %v683
        %v919 = vpop.f32.mrb[0].mxu0
        %v920 = vadd.f32 0.0, %v919
        %v921 = vpop.f32.mrb[0].mxu0
        %v922 = vadd.f32 0.0, %v921
        %v923 = vpop.f32.mrb[0].mxu0
        %v924 = vpop.f32.mrb[0].mxu0
        %925 = vdwg.mxu0
        %v930 = vcombine.low %v879, %v881
        %v931 = vcombine.low %v920, %v922
        %v933 = vunpack.c.l.s4 1983009808
        %v934 = vunpack.c.0.s8 %v933
        %v935 = vlaneseq
        %v936 = vshrl.u32 %v935, 7
        %v937 = vsub.s32 %v934, %v936
        %v938 = vrot.slane %v930, %v937
        %v940 = vunpack.c.l.s4 1983009808
        %v941 = vunpack.c.0.s8 %v940
        %v942 = vlaneseq
        %v943 = vshrl.u32 %v942, 7
        %v944 = vsub.s32 %v941, %v943
        %v945 = vrot.slane %v931, %v944
        %v946 = vcombine.low %v938, %v945
        %v948 = vadd.f32 %v682, %v946
        %v981 = vunpack.c.l.b16 %v478
        %v982 = vunpack.c.h.b16 %v478
        %v983 = vunpack.c.l.b16 %v479
        %v984 = vunpack.c.h.b16 %v479
        %v985 = vunpack.c.l.b16 %v480
        %v986 = vunpack.c.h.b16 %v480
        %v987 = vunpack.c.l.b16 %v481
        %v988 = vunpack.c.h.b16 %v481
        %v989 = vunpack.c.l.b16 %v482
        %v990 = vunpack.c.h.b16 %v482
        %v991 = vunpack.c.l.b16 %v483
        %v992 = vunpack.c.h.b16 %v483
        %v993 = vunpack.c.l.b16 %v484
        %v994 = vunpack.c.h.b16 %v484
        %v995 = vunpack.c.l.b16 %v485
        %v996 = vunpack.c.h.b16 %v485
        %v997 = vunpack.c.l.b16 %v486
        %v998 = vunpack.c.h.b16 %v486
        %v999 = vunpack.c.l.b16 %v487
        %v1000 = vunpack.c.h.b16 %v487
        %v1001 = vunpack.c.l.b16 %v488
        %v1002 = vunpack.c.h.b16 %v488
        %v1003 = vunpack.c.l.b16 %v489
        %v1004 = vunpack.c.h.b16 %v489
        %v1005 = vunpack.c.l.b16 %v490
        %v1006 = vunpack.c.h.b16 %v490
        %v1007 = vunpack.c.l.b16 %v491
        %v1008 = vunpack.c.h.b16 %v491
        %v1009 = vunpack.c.l.b16 %v492
        %v1010 = vunpack.c.h.b16 %v492
        %v1011 = vunpack.c.l.b16 %v493
        %v1012 = vunpack.c.h.b16 %v493
        %v1013 = vunpack.c.l.b16 %v494
        %v1014 = vunpack.c.h.b16 %v494
        %v1015 = vunpack.c.l.b16 %v495
        %v1016 = vunpack.c.h.b16 %v495
        %v1017 = vunpack.c.l.b16 %v496
        %v1018 = vunpack.c.h.b16 %v496
        %v1019 = vunpack.c.l.b16 %v497
        %v1020 = vunpack.c.h.b16 %v497
        %v1021 = vunpack.c.l.b16 %v498
        %v1022 = vunpack.c.h.b16 %v498
        %v1023 = vunpack.c.l.b16 %v499
        %v1024 = vunpack.c.h.b16 %v499
        %v1025 = vunpack.c.l.b16 %v500
        %v1026 = vunpack.c.h.b16 %v500
        %v1027 = vunpack.c.l.b16 %v501
        %v1028 = vunpack.c.h.b16 %v501
        %v1029 = vunpack.c.l.b16 %v502
        %v1030 = vunpack.c.h.b16 %v502
        %v1031 = vunpack.c.l.b16 %v503
        %v1032 = vunpack.c.h.b16 %v503
        %v1033 = vunpack.c.l.b16 %v504
        %v1034 = vunpack.c.h.b16 %v504
        %v1035 = vunpack.c.l.b16 %v505
        %v1036 = vunpack.c.h.b16 %v505
        %v1037 = vunpack.c.l.b16 %v506
        %v1038 = vunpack.c.h.b16 %v506
        %v1039 = vunpack.c.l.b16 %v507
        %v1040 = vunpack.c.h.b16 %v507
        %v1041 = vunpack.c.l.b16 %v508
        %v1042 = vunpack.c.h.b16 %v508
        %v1043 = vunpack.c.l.b16 %v509
        %v1044 = vunpack.c.h.b16 %v509
        %v1045 = vpack.c.b16 %v985, %v981
        %v1046 = vpack.c.b16 %v986, %v982
        %v1047 = vpack.c.b16 %v987, %v983
        %v1048 = vpack.c.b16 %v988, %v984
        %v1049 = vpack.c.b16 %v993, %v989
        %v1050 = vpack.c.b16 %v994, %v990
        %v1051 = vpack.c.b16 %v995, %v991
        %v1052 = vpack.c.b16 %v996, %v992
        %v1053 = vpack.c.b16 %v1001, %v997
        %v1054 = vpack.c.b16 %v1002, %v998
        %v1055 = vpack.c.b16 %v1003, %v999
        %v1056 = vpack.c.b16 %v1004, %v1000
        %v1057 = vpack.c.b16 %v1009, %v1005
        %v1058 = vpack.c.b16 %v1010, %v1006
        %v1059 = vpack.c.b16 %v1011, %v1007
        %v1060 = vpack.c.b16 %v1012, %v1008
        %v1061 = vpack.c.b16 %v1017, %v1013
        %v1062 = vpack.c.b16 %v1018, %v1014
        %v1063 = vpack.c.b16 %v1019, %v1015
        %v1064 = vpack.c.b16 %v1020, %v1016
        %v1065 = vpack.c.b16 %v1025, %v1021
        %v1066 = vpack.c.b16 %v1026, %v1022
        %v1067 = vpack.c.b16 %v1027, %v1023
        %v1068 = vpack.c.b16 %v1028, %v1024
        %v1069 = vpack.c.b16 %v1033, %v1029
        %v1070 = vpack.c.b16 %v1034, %v1030
        %v1071 = vpack.c.b16 %v1035, %v1031
        %v1072 = vpack.c.b16 %v1036, %v1032
        %v1073 = vpack.c.b16 %v1041, %v1037
        %v1074 = vpack.c.b16 %v1042, %v1038
        %v1075 = vpack.c.b16 %v1043, %v1039
        %v1076 = vpack.c.b16 %v1044, %v1040
        %1109 = vmatprep.subr.bf16.mxu0 %v1046
        %1110 = vmatpush1.bf16.msra.mxu0 %v1045
        %1111 = vmatprep.subr.bf16.mxu0 %v1050
        %1112 = vmatpush1.bf16.msra.mxu0 %v1049
        %1113 = vmatprep.subr.bf16.mxu0 %v1054
        %1114 = vmatpush1.bf16.msra.mxu0 %v1053
        %1115 = vmatprep.subr.bf16.mxu0 %v1058
        %1116 = vmatpush1.bf16.msra.mxu0 %v1057
        %1117 = vmatprep.subr.bf16.mxu0 %v1062
        %1118 = vmatpush1.bf16.msra.mxu0 %v1061
        %1119 = vmatprep.subr.bf16.mxu0 %v1066
        %1120 = vmatpush1.bf16.msra.mxu0 %v1065
        %1121 = vmatprep.subr.bf16.mxu0 %v1070
        %1122 = vmatpush1.bf16.msra.mxu0 %v1069
        %1123 = vmatprep.subr.bf16.mxu0 %v1074
        %1124 = vmatpush1.bf16.msra.mxu0 %v1073
        %1125 = vmatprep.subr.bf16.mxu0 0
        %1126 = vmatpush1.bf16.msra.mxu0 0
        %1127 = vmatprep.subr.bf16.mxu0 0
        %1128 = vmatpush1.bf16.msra.mxu0 0
        %1129 = vmatprep.subr.bf16.mxu0 0
        %1130 = vmatpush1.bf16.msra.mxu0 0
        %1131 = vmatprep.subr.bf16.mxu0 0
        %1132 = vmatpush1.bf16.msra.mxu0 0
        %1133 = vmatprep.subr.bf16.mxu0 0
        %1134 = vmatpush1.bf16.msra.mxu0 0
        %1135 = vmatprep.subr.bf16.mxu0 0
        %1136 = vmatpush1.bf16.msra.mxu0 0
        %1137 = vmatprep.subr.bf16.mxu0 0
        %1138 = vmatpush1.bf16.msra.mxu0 0
        %1139 = vmatprep.subr.bf16.mxu0 0
        %1140 = vmatpush1.bf16.msra.mxu0 0
        %1141 = vmatprep.mubr.bf16.mxu0 0
        %1142 = vmatmul.mubr.bf16.gmra.mrb[0].mxu0 %v528
        %v1143 = vpop.f32.mrb[0].mxu0
        %v1144 = vadd.f32 0.0, %v1143
        %v1145 = vpop.f32.mrb[0].mxu0
        %v1146 = vadd.f32 0.0, %v1145
        %v1147 = vpop.f32.mrb[0].mxu0
        %v1148 = vpop.f32.mrb[0].mxu0
        %1149 = vdwg.mxu0
        %1150 = vmatprep.subr.bf16.mxu0 %v1048
        %1151 = vmatpush1.bf16.msra.mxu0 %v1047
        %1152 = vmatprep.subr.bf16.mxu0 %v1052
        %1153 = vmatpush1.bf16.msra.mxu0 %v1051
        %1154 = vmatprep.subr.bf16.mxu0 %v1056
        %1155 = vmatpush1.bf16.msra.mxu0 %v1055
        %1156 = vmatprep.subr.bf16.mxu0 %v1060
        %1157 = vmatpush1.bf16.msra.mxu0 %v1059
        %1158 = vmatprep.subr.bf16.mxu0 %v1064
        %1159 = vmatpush1.bf16.msra.mxu0 %v1063
        %1160 = vmatprep.subr.bf16.mxu0 %v1068
        %1161 = vmatpush1.bf16.msra.mxu0 %v1067
        %1162 = vmatprep.subr.bf16.mxu0 %v1072
        %1163 = vmatpush1.bf16.msra.mxu0 %v1071
        %1164 = vmatprep.subr.bf16.mxu0 %v1076
        %1165 = vmatpush1.bf16.msra.mxu0 %v1075
        %1166 = vmatprep.subr.bf16.mxu0 0
        %1167 = vmatpush1.bf16.msra.mxu0 0
        %1168 = vmatprep.subr.bf16.mxu0 0
        %1169 = vmatpush1.bf16.msra.mxu0 0
        %1170 = vmatprep.subr.bf16.mxu0 0
        %1171 = vmatpush1.bf16.msra.mxu0 0
        %1172 = vmatprep.subr.bf16.mxu0 0
        %1173 = vmatpush1.bf16.msra.mxu0 0
        %1174 = vmatprep.subr.bf16.mxu0 0
        %1175 = vmatpush1.bf16.msra.mxu0 0
        %1176 = vmatprep.subr.bf16.mxu0 0
        %1177 = vmatpush1.bf16.msra.mxu0 0
        %1178 = vmatprep.subr.bf16.mxu0 0
        %1179 = vmatpush1.bf16.msra.mxu0 0
        %1180 = vmatprep.subr.bf16.mxu0 0
        %1181 = vmatpush1.bf16.msra.mxu0 0
        %1182 = vmatprep.mubr.bf16.mxu0 0
        %1183 = vmatmul.mubr.bf16.gmra.mrb[0].mxu0 %v528
        %v1184 = vpop.f32.mrb[0].mxu0
        %v1185 = vadd.f32 0.0, %v1184
        %v1186 = vpop.f32.mrb[0].mxu0
        %v1187 = vadd.f32 0.0, %v1186
        %v1188 = vpop.f32.mrb[0].mxu0
        %v1189 = vpop.f32.mrb[0].mxu0
        %1190 = vdwg.mxu0
        %v1195 = vcombine.low %v1144, %v1146
        %v1196 = vcombine.low %v1185, %v1187
        %v1198 = vunpack.c.l.s4 1983009808
        %v1199 = vunpack.c.0.s8 %v1198
        %v1200 = vlaneseq
        %v1201 = vshrl.u32 %v1200, 7
        %v1202 = vsub.s32 %v1199, %v1201
        %v1203 = vrot.slane %v1195, %v1202
        %v1205 = vunpack.c.l.s4 1983009808
        %v1206 = vunpack.c.0.s8 %v1205
        %v1207 = vlaneseq
        %v1208 = vshrl.u32 %v1207, 7
        %v1209 = vsub.s32 %v1206, %v1208
        %v1210 = vrot.slane %v1196, %v1209
        %v1211 = vcombine.low %v1203, %v1210
        %v1213 = vadd.f32 %v948, %v1211
        %v1214 = vxor.u32 %v1213, 2147483648
        %v1215 = vmul.f32 %v1214, 1.442695
        %v1216 = vpow.pop %v1215
        %v1217 = vadd.f32 %v1216, 1.0
        %v1218 = vrcp.pop %v1217
        %v1219 = vmul.f32 1.0, %v1218
        %v1221 = vrot.slane %v1213, 2
        %v1223 = vxor.u32 %v1221, 2147483648
        %v1224 = vmul.f32 %v1223, 1.442695
        %v1225 = vpow.pop %v1224
        %v1226 = vadd.f32 %v1225, 1.0
        %v1227 = vrcp.pop %v1226
        %v1228 = vmul.f32 1.0, %v1227
        %v1229 = vrot.slane %v1213, 4
        %v1231 = vtanh.pop %v1229
        %v1232 = vrot.slane %v1213, 6
        %v1234 = vxor.u32 %v1232, 2147483648
        %v1235 = vmul.f32 %v1234, 1.442695
        %v1236 = vpow.pop %v1235
        %v1237 = vadd.f32 %v1236, 1.0
        %v1238 = vrcp.pop %v1237
        %v1239 = vmul.f32 1.0, %v1238
        %v1240 = vmul.f32 %v1228, %v527
        %v1241 = vmul.f32 %v1219, %v1231
        %v1242 = vadd.f32 %v1240, %v1241
        %v1243 = vtanh.pop %v1242
        %v1244 = vmul.f32 %v1239, %v1243
        %v1245 = vpack.c.bf16 %v1244, %v1244
        %v1247 = vlaneseq
        %v1248 = vshrl.u32 %v1247, 7
        %v1249 = vsub.s32 0, %v1248
        %v1250 = vrot.slane %v526, %v1249
        %v1251 = vlaneseq
        %v1252 = vshrl.u32 %v1251, 7
        %v1253 = vsub.s32 1, %v1252
        %v1254 = vrot.slane %v526, %v1253
        %v1273 = vunpack.c.l.b16 %v510
        %v1274 = vunpack.c.h.b16 %v510
        %v1275 = vunpack.c.l.b16 %v511
        %v1276 = vunpack.c.h.b16 %v511
        %v1277 = vunpack.c.l.b16 %v512
        %v1278 = vunpack.c.h.b16 %v512
        %v1279 = vunpack.c.l.b16 %v513
        %v1280 = vunpack.c.h.b16 %v513
        %v1281 = vunpack.c.l.b16 %v514
        %v1282 = vunpack.c.h.b16 %v514
        %v1283 = vunpack.c.l.b16 %v515
        %v1284 = vunpack.c.h.b16 %v515
        %v1285 = vunpack.c.l.b16 %v516
        %v1286 = vunpack.c.h.b16 %v516
        %v1287 = vunpack.c.l.b16 %v517
        %v1288 = vunpack.c.h.b16 %v517
        %v1289 = vunpack.c.l.b16 %v518
        %v1290 = vunpack.c.h.b16 %v518
        %v1291 = vunpack.c.l.b16 %v519
        %v1292 = vunpack.c.h.b16 %v519
        %v1293 = vunpack.c.l.b16 %v520
        %v1294 = vunpack.c.h.b16 %v520
        %v1295 = vunpack.c.l.b16 %v521
        %v1296 = vunpack.c.h.b16 %v521
        %v1297 = vunpack.c.l.b16 %v522
        %v1298 = vunpack.c.h.b16 %v522
        %v1299 = vunpack.c.l.b16 %v523
        %v1300 = vunpack.c.h.b16 %v523
        %v1301 = vunpack.c.l.b16 %v524
        %v1302 = vunpack.c.h.b16 %v524
        %v1303 = vunpack.c.l.b16 %v525
        %v1304 = vunpack.c.h.b16 %v525
        %v1305 = vpack.c.b16 %v1275, %v1273
        %v1306 = vpack.c.b16 %v1276, %v1274
        %v1307 = vpack.c.b16 %v1279, %v1277
        %v1308 = vpack.c.b16 %v1280, %v1278
        %v1309 = vpack.c.b16 %v1283, %v1281
        %v1310 = vpack.c.b16 %v1284, %v1282
        %v1311 = vpack.c.b16 %v1287, %v1285
        %v1312 = vpack.c.b16 %v1288, %v1286
        %v1313 = vpack.c.b16 %v1291, %v1289
        %v1314 = vpack.c.b16 %v1292, %v1290
        %v1315 = vpack.c.b16 %v1295, %v1293
        %v1316 = vpack.c.b16 %v1296, %v1294
        %v1317 = vpack.c.b16 %v1299, %v1297
        %v1318 = vpack.c.b16 %v1300, %v1298
        %v1319 = vpack.c.b16 %v1303, %v1301
        %v1320 = vpack.c.b16 %v1304, %v1302
        %1337 = vmatprep.subr.bf16.mxu0 %v1306
        %1338 = vmatpush1.bf16.msra.mxu0 %v1305
        %1339 = vmatprep.subr.bf16.mxu0 %v1308
        %1340 = vmatpush1.bf16.msra.mxu0 %v1307
        %1341 = vmatprep.subr.bf16.mxu0 %v1310
        %1342 = vmatpush1.bf16.msra.mxu0 %v1309
        %1343 = vmatprep.subr.bf16.mxu0 %v1312
        %1344 = vmatpush1.bf16.msra.mxu0 %v1311
        %1345 = vmatprep.subr.bf16.mxu0 %v1314
        %1346 = vmatpush1.bf16.msra.mxu0 %v1313
        %1347 = vmatprep.subr.bf16.mxu0 %v1316
        %1348 = vmatpush1.bf16.msra.mxu0 %v1315
        %1349 = vmatprep.subr.bf16.mxu0 %v1318
        %1350 = vmatpush1.bf16.msra.mxu0 %v1317
        %1351 = vmatprep.subr.bf16.mxu0 %v1320
        %1352 = vmatpush1.bf16.msra.mxu0 %v1319
        %1353 = vmatprep.subr.bf16.mxu0 0
        %1354 = vmatpush1.bf16.msra.mxu0 0
        %1355 = vmatprep.subr.bf16.mxu0 0
        %1356 = vmatpush1.bf16.msra.mxu0 0
        %1357 = vmatprep.subr.bf16.mxu0 0
        %1358 = vmatpush1.bf16.msra.mxu0 0
        %1359 = vmatprep.subr.bf16.mxu0 0
        %1360 = vmatpush1.bf16.msra.mxu0 0
        %1361 = vmatprep.subr.bf16.mxu0 0
        %1362 = vmatpush1.bf16.msra.mxu0 0
        %1363 = vmatprep.subr.bf16.mxu0 0
        %1364 = vmatpush1.bf16.msra.mxu0 0
        %1365 = vmatprep.subr.bf16.mxu0 0
        %1366 = vmatpush1.bf16.msra.mxu0 0
        %1367 = vmatprep.subr.bf16.mxu0 0
        %1368 = vmatpush1.bf16.msra.mxu0 0
        %1369 = vmatprep.mubr.bf16.mxu0 0
        %1370 = vmatmul.mubr.bf16.gmra.mrb[0].mxu0 %v1245
        %v1371 = vpop.f32.mrb[0].mxu0
        %v1372 = vadd.f32 %v1250, %v1371
        %v1373 = vpop.f32.mrb[0].mxu0
        %v1374 = vadd.f32 %v1254, %v1373
        %v1375 = vpop.f32.mrb[0].mxu0
        %v1376 = vpop.f32.mrb[0].mxu0
        %1377 = vdwg.mxu0
        %vm1378 = vcmask 1041408
        %v1379 = vsel %vm1378, %v1372, -inf
        %v1380 = vsel %vm1378, %v1374, -inf
        %v1381 = vmax.f32 %v1379, %v1380
        %1382 = vmax.xlane.f32.xlu0 %v1381
        %v1383 = vpop.xlane.xlu0 %1382
        %v1384 = vsub.f32 %v1372, %v1383
        %v1385 = vsub.f32 %v1374, %v1383
        %v1386 = vmul.f32 %v1384, 1.442695
        %v1387 = vpow.pop %v1386
        %v1388 = vmul.f32 %v1385, 1.442695
        %v1389 = vpow.pop %v1388
        %v1390 = vsel %vm1378, %v1387, 0.0
        %v1391 = vsel %vm1378, %v1389, 0.0
        %v1392 = vadd.f32 %v1390, %v1391
        %1393 = vadd.xlane.f32.xlu0 %v1392
        %v1394 = vpop.xlane.xlu0 %1393
        %v1395 = vrcp.pop %v1394
        %v1396 = vmul.f32 %v1387, %v1395
        %v1397 = vmul.f32 %v1389, %v1395
        %v1400 = vcombine.low %v1396, %v1397
        %v1402 = vunpack.c.l.s4 1983009808
        %v1403 = vunpack.c.0.s8 %v1402
        %v1404 = vlaneseq
        %v1405 = vshrl.u32 %v1404, 7
        %v1406 = vsub.s32 %v1403, %v1405
        %v1407 = vrot.slane %v1400, %v1406
        %1409 = vst [vmem:[%s403] sm:$0xf] %v1407
        %1410 = vst [vmem:[%s410] sm:$0x3] %v1244
        %1411 = vmatprep.subr.bf16.mxu0 0
        %1412 = vmatpush1.bf16.msra.mxu0 %v561
        %1413 = vmatprep.subr.bf16.mxu0 0
        %1414 = vmatpush1.bf16.msra.mxu0 %v562
        %1415 = vmatprep.subr.bf16.mxu0 0
        %1416 = vmatpush1.bf16.msra.mxu0 %v563
        %1417 = vmatprep.subr.bf16.mxu0 0
        %1418 = vmatpush1.bf16.msra.mxu0 %v564
        %1419 = vmatprep.subr.bf16.mxu0 0
        %1420 = vmatpush1.bf16.msra.mxu0 %v565
        %1421 = vmatprep.subr.bf16.mxu0 0
        %1422 = vmatpush1.bf16.msra.mxu0 %v566
        %1423 = vmatprep.subr.bf16.mxu0 0
        %1424 = vmatpush1.bf16.msra.mxu0 %v567
        %1425 = vmatprep.subr.bf16.mxu0 0
        %1426 = vmatpush1.bf16.msra.mxu0 %v568
        %1427 = vmatprep.subr.bf16.mxu0 0
        %1428 = vmatpush1.bf16.msra.mxu0 0
        %1429 = vmatprep.subr.bf16.mxu0 0
        %1430 = vmatpush1.bf16.msra.mxu0 0
        %1431 = vmatprep.subr.bf16.mxu0 0
        %1432 = vmatpush1.bf16.msra.mxu0 0
        %1433 = vmatprep.subr.bf16.mxu0 0
        %1434 = vmatpush1.bf16.msra.mxu0 0
        %1435 = vmatprep.subr.bf16.mxu0 0
        %1436 = vmatpush1.bf16.msra.mxu0 0
        %1437 = vmatprep.subr.bf16.mxu0 0
        %1438 = vmatpush1.bf16.msra.mxu0 0
        %1439 = vmatprep.subr.bf16.mxu0 0
        %1440 = vmatpush1.bf16.msra.mxu0 0
        %1441 = vmatprep.subr.bf16.mxu0 0
        %1442 = vmatpush1.bf16.msra.mxu0 0
        %1443 = vmatprep.mubr.bf16.mxu0 0
        %1444 = vmatmul.mubr.bf16.gmra.mrb[0].mxu0 %v1245
        %v1445 = vpop.f32.mrb[0].mxu0
        %v1446 = vadd.f32 0.0, %v1445
        %v1447 = vpop.f32.mrb[0].mxu0
        %v1448 = vpop.f32.mrb[0].mxu0
        %v1449 = vpop.f32.mrb[0].mxu0
        %1450 = vdwg.mxu0
        %v1451 = vmul.f32 %v1446, 0.088388346
        %v1452 = vadd.f32 %v1451, %v445
        %v1453 = vsel %vm619, %v1452, -inf
        %1454 = vmax.xlane.f32.xlu0 %v1453
        %v1455 = vpop.xlane.xlu0 %1454
        %v1456 = vsub.f32 %v1452, %v1455
        %v1457 = vmul.f32 %v1456, 1.442695
        %v1458 = vpow.pop %v1457
        %v1459 = vsel %vm619, %v1458, 0.0
        %1460 = vadd.xlane.f32.xlu0 %v1459
        %v1461 = vpop.xlane.xlu0 %1460
        %v1462 = vrcp.pop %v1461
        %v1463 = vmul.f32 %v1458, %v1462
        %v1464 = vpack.c.bf16 %v1463, %v1463
        %v1466 = vsel %vm638, %v1464, 0
        %1468 = vmatprep.subr.bf16.mxu0 0
        %1469 = vmatpush1.bf16.msra.mxu0 %v636
        %1470 = vmatprep.subr.bf16.mxu0 0
        %1471 = vmatpush1.bf16.msra.mxu0 0
        %1472 = vmatprep.subr.bf16.mxu0 0
        %1473 = vmatpush1.bf16.msra.mxu0 0
        %1474 = vmatprep.subr.bf16.mxu0 0
        %1475 = vmatpush1.bf16.msra.mxu0 0
        %1476 = vmatprep.subr.bf16.mxu0 0
        %1477 = vmatpush1.bf16.msra.mxu0 0
        %1478 = vmatprep.subr.bf16.mxu0 0
        %1479 = vmatpush1.bf16.msra.mxu0 0
        %1480 = vmatprep.subr.bf16.mxu0 0
        %1481 = vmatpush1.bf16.msra.mxu0 0
        %1482 = vmatprep.subr.bf16.mxu0 0
        %1483 = vmatpush1.bf16.msra.mxu0 0
        %1484 = vmatprep.subr.bf16.mxu0 0
        %1485 = vmatpush1.bf16.msra.mxu0 0
        %1486 = vmatprep.subr.bf16.mxu0 0
        %1487 = vmatpush1.bf16.msra.mxu0 0
        %1488 = vmatprep.subr.bf16.mxu0 0
        %1489 = vmatpush1.bf16.msra.mxu0 0
        %1490 = vmatprep.subr.bf16.mxu0 0
        %1491 = vmatpush1.bf16.msra.mxu0 0
        %1492 = vmatprep.subr.bf16.mxu0 0
        %1493 = vmatpush1.bf16.msra.mxu0 0
        %1494 = vmatprep.subr.bf16.mxu0 0
        %1495 = vmatpush1.bf16.msra.mxu0 0
        %1496 = vmatprep.subr.bf16.mxu0 0
        %1497 = vmatpush1.bf16.msra.mxu0 0
        %1498 = vmatprep.subr.bf16.mxu0 0
        %1499 = vmatpush1.bf16.msra.mxu0 0
        %1500 = vmatprep.mubr.bf16.mxu0 0
        %1501 = vmatmul.mubr.bf16.gmra.mrb[0].mxu0 %v1466
        %v1502 = vpop.f32.mrb[0].mxu0
        %v1503 = vadd.f32 0.0, %v1502
        %v1504 = vpop.f32.mrb[0].mxu0
        %v1505 = vpop.f32.mrb[0].mxu0
        %v1506 = vpop.f32.mrb[0].mxu0
        %1507 = vdwg.mxu0
        %s1508 = scalar_lea.vmem %s416, 8
        %v1509 = vld [vmem:[%s1508] sm:$0xff]
        %v1510 = vpack.c.bf16 %v1503, %v1503
        %1511 = vmatprep.subr.bf16.mxu0 %v781
        %1512 = vmatpush1.bf16.msra.mxu0 %v780
        %1513 = vmatprep.subr.bf16.mxu0 %v785
        %1514 = vmatpush1.bf16.msra.mxu0 %v784
        %1515 = vmatprep.subr.bf16.mxu0 %v789
        %1516 = vmatpush1.bf16.msra.mxu0 %v788
        %1517 = vmatprep.subr.bf16.mxu0 %v793
        %1518 = vmatpush1.bf16.msra.mxu0 %v792
        %1519 = vmatprep.subr.bf16.mxu0 %v797
        %1520 = vmatpush1.bf16.msra.mxu0 %v796
        %1521 = vmatprep.subr.bf16.mxu0 %v801
        %1522 = vmatpush1.bf16.msra.mxu0 %v800
        %1523 = vmatprep.subr.bf16.mxu0 %v805
        %1524 = vmatpush1.bf16.msra.mxu0 %v804
        %1525 = vmatprep.subr.bf16.mxu0 %v809
        %1526 = vmatpush1.bf16.msra.mxu0 %v808
        %1527 = vmatprep.subr.bf16.mxu0 0
        %1528 = vmatpush1.bf16.msra.mxu0 0
        %1529 = vmatprep.subr.bf16.mxu0 0
        %1530 = vmatpush1.bf16.msra.mxu0 0
        %1531 = vmatprep.subr.bf16.mxu0 0
        %1532 = vmatpush1.bf16.msra.mxu0 0
        %1533 = vmatprep.subr.bf16.mxu0 0
        %1534 = vmatpush1.bf16.msra.mxu0 0
        %1535 = vmatprep.subr.bf16.mxu0 0
        %1536 = vmatpush1.bf16.msra.mxu0 0
        %1537 = vmatprep.subr.bf16.mxu0 0
        %1538 = vmatpush1.bf16.msra.mxu0 0
        %1539 = vmatprep.subr.bf16.mxu0 0
        %1540 = vmatpush1.bf16.msra.mxu0 0
        %1541 = vmatprep.subr.bf16.mxu0 0
        %1542 = vmatpush1.bf16.msra.mxu0 0
        %1543 = vmatprep.mubr.bf16.mxu0 0
        %1544 = vmatmul.mubr.bf16.gmra.mrb[0].mxu0 %v1510
        %v1545 = vpop.f32.mrb[0].mxu0
        %v1546 = vadd.f32 0.0, %v1545
        %v1547 = vpop.f32.mrb[0].mxu0
        %v1548 = vadd.f32 0.0, %v1547
        %v1549 = vpop.f32.mrb[0].mxu0
        %v1550 = vpop.f32.mrb[0].mxu0
        %1551 = vdwg.mxu0
        %1552 = vmatprep.subr.bf16.mxu0 %v783
        %1553 = vmatpush1.bf16.msra.mxu0 %v782
        %1554 = vmatprep.subr.bf16.mxu0 %v787
        %1555 = vmatpush1.bf16.msra.mxu0 %v786
        %1556 = vmatprep.subr.bf16.mxu0 %v791
        %1557 = vmatpush1.bf16.msra.mxu0 %v790
        %1558 = vmatprep.subr.bf16.mxu0 %v795
        %1559 = vmatpush1.bf16.msra.mxu0 %v794
        %1560 = vmatprep.subr.bf16.mxu0 %v799
        %1561 = vmatpush1.bf16.msra.mxu0 %v798
        %1562 = vmatprep.subr.bf16.mxu0 %v803
        %1563 = vmatpush1.bf16.msra.mxu0 %v802
        %1564 = vmatprep.subr.bf16.mxu0 %v807
        %1565 = vmatpush1.bf16.msra.mxu0 %v806
        %1566 = vmatprep.subr.bf16.mxu0 %v811
        %1567 = vmatpush1.bf16.msra.mxu0 %v810
        %1568 = vmatprep.subr.bf16.mxu0 0
        %1569 = vmatpush1.bf16.msra.mxu0 0
        %1570 = vmatprep.subr.bf16.mxu0 0
        %1571 = vmatpush1.bf16.msra.mxu0 0
        %1572 = vmatprep.subr.bf16.mxu0 0
        %1573 = vmatpush1.bf16.msra.mxu0 0
        %1574 = vmatprep.subr.bf16.mxu0 0
        %1575 = vmatpush1.bf16.msra.mxu0 0
        %1576 = vmatprep.subr.bf16.mxu0 0
        %1577 = vmatpush1.bf16.msra.mxu0 0
        %1578 = vmatprep.subr.bf16.mxu0 0
        %1579 = vmatpush1.bf16.msra.mxu0 0
        %1580 = vmatprep.subr.bf16.mxu0 0
        %1581 = vmatpush1.bf16.msra.mxu0 0
        %1582 = vmatprep.subr.bf16.mxu0 0
        %1583 = vmatpush1.bf16.msra.mxu0 0
        %1584 = vmatprep.mubr.bf16.mxu0 0
        %1585 = vmatmul.mubr.bf16.gmra.mrb[0].mxu0 %v1510
        %v1586 = vpop.f32.mrb[0].mxu0
        %v1587 = vadd.f32 0.0, %v1586
        %v1588 = vpop.f32.mrb[0].mxu0
        %v1589 = vadd.f32 0.0, %v1588
        %v1590 = vpop.f32.mrb[0].mxu0
        %v1591 = vpop.f32.mrb[0].mxu0
        %1592 = vdwg.mxu0
        %v1597 = vcombine.low %v1546, %v1548
        %v1598 = vcombine.low %v1587, %v1589
        %v1600 = vunpack.c.l.s4 1983009808
        %v1601 = vunpack.c.0.s8 %v1600
        %v1602 = vlaneseq
        %v1603 = vshrl.u32 %v1602, 7
        %v1604 = vsub.s32 %v1601, %v1603
        %v1605 = vrot.slane %v1597, %v1604
        %v1607 = vunpack.c.l.s4 1983009808
        %v1608 = vunpack.c.0.s8 %v1607
        %v1609 = vlaneseq
        %v1610 = vshrl.u32 %v1609, 7
        %v1611 = vsub.s32 %v1608, %v1610
        %v1612 = vrot.slane %v1598, %v1611
        %v1613 = vcombine.low %v1605, %v1612
        %v1615 = vadd.f32 %v1509, %v1613
        %1616 = vmatprep.subr.bf16.mxu0 %v1046
        %1617 = vmatpush1.bf16.msra.mxu0 %v1045
        %1618 = vmatprep.subr.bf16.mxu0 %v1050
        %1619 = vmatpush1.bf16.msra.mxu0 %v1049
        %1620 = vmatprep.subr.bf16.mxu0 %v1054
        %1621 = vmatpush1.bf16.msra.mxu0 %v1053
        %1622 = vmatprep.subr.bf16.mxu0 %v1058
        %1623 = vmatpush1.bf16.msra.mxu0 %v1057
        %1624 = vmatprep.subr.bf16.mxu0 %v1062
        %1625 = vmatpush1.bf16.msra.mxu0 %v1061
        %1626 = vmatprep.subr.bf16.mxu0 %v1066
        %1627 = vmatpush1.bf16.msra.mxu0 %v1065
        %1628 = vmatprep.subr.bf16.mxu0 %v1070
        %1629 = vmatpush1.bf16.msra.mxu0 %v1069
        %1630 = vmatprep.subr.bf16.mxu0 %v1074
        %1631 = vmatpush1.bf16.msra.mxu0 %v1073
        %1632 = vmatprep.subr.bf16.mxu0 0
        %1633 = vmatpush1.bf16.msra.mxu0 0
        %1634 = vmatprep.subr.bf16.mxu0 0
        %1635 = vmatpush1.bf16.msra.mxu0 0
        %1636 = vmatprep.subr.bf16.mxu0 0
        %1637 = vmatpush1.bf16.msra.mxu0 0
        %1638 = vmatprep.subr.bf16.mxu0 0
        %1639 = vmatpush1.bf16.msra.mxu0 0
        %1640 = vmatprep.subr.bf16.mxu0 0
        %1641 = vmatpush1.bf16.msra.mxu0 0
        %1642 = vmatprep.subr.bf16.mxu0 0
        %1643 = vmatpush1.bf16.msra.mxu0 0
        %1644 = vmatprep.subr.bf16.mxu0 0
        %1645 = vmatpush1.bf16.msra.mxu0 0
        %1646 = vmatprep.subr.bf16.mxu0 0
        %1647 = vmatpush1.bf16.msra.mxu0 0
        %1648 = vmatprep.mubr.bf16.mxu0 0
        %1649 = vmatmul.mubr.bf16.gmra.mrb[0].mxu0 %v1245
        %v1650 = vpop.f32.mrb[0].mxu0
        %v1651 = vadd.f32 0.0, %v1650
        %v1652 = vpop.f32.mrb[0].mxu0
        %v1653 = vadd.f32 0.0, %v1652
        %v1654 = vpop.f32.mrb[0].mxu0
        %v1655 = vpop.f32.mrb[0].mxu0
        %1656 = vdwg.mxu0
        %1657 = vmatprep.subr.bf16.mxu0 %v1048
        %1658 = vmatpush1.bf16.msra.mxu0 %v1047
        %1659 = vmatprep.subr.bf16.mxu0 %v1052
        %1660 = vmatpush1.bf16.msra.mxu0 %v1051
        %1661 = vmatprep.subr.bf16.mxu0 %v1056
        %1662 = vmatpush1.bf16.msra.mxu0 %v1055
        %1663 = vmatprep.subr.bf16.mxu0 %v1060
        %1664 = vmatpush1.bf16.msra.mxu0 %v1059
        %1665 = vmatprep.subr.bf16.mxu0 %v1064
        %1666 = vmatpush1.bf16.msra.mxu0 %v1063
        %1667 = vmatprep.subr.bf16.mxu0 %v1068
        %1668 = vmatpush1.bf16.msra.mxu0 %v1067
        %1669 = vmatprep.subr.bf16.mxu0 %v1072
        %1670 = vmatpush1.bf16.msra.mxu0 %v1071
        %1671 = vmatprep.subr.bf16.mxu0 %v1076
        %1672 = vmatpush1.bf16.msra.mxu0 %v1075
        %1673 = vmatprep.subr.bf16.mxu0 0
        %1674 = vmatpush1.bf16.msra.mxu0 0
        %1675 = vmatprep.subr.bf16.mxu0 0
        %1676 = vmatpush1.bf16.msra.mxu0 0
        %1677 = vmatprep.subr.bf16.mxu0 0
        %1678 = vmatpush1.bf16.msra.mxu0 0
        %1679 = vmatprep.subr.bf16.mxu0 0
        %1680 = vmatpush1.bf16.msra.mxu0 0
        %1681 = vmatprep.subr.bf16.mxu0 0
        %1682 = vmatpush1.bf16.msra.mxu0 0
        %1683 = vmatprep.subr.bf16.mxu0 0
        %1684 = vmatpush1.bf16.msra.mxu0 0
        %1685 = vmatprep.subr.bf16.mxu0 0
        %1686 = vmatpush1.bf16.msra.mxu0 0
        %1687 = vmatprep.subr.bf16.mxu0 0
        %1688 = vmatpush1.bf16.msra.mxu0 0
        %1689 = vmatprep.mubr.bf16.mxu0 0
        %1690 = vmatmul.mubr.bf16.gmra.mrb[0].mxu0 %v1245
        %v1691 = vpop.f32.mrb[0].mxu0
        %v1692 = vadd.f32 0.0, %v1691
        %v1693 = vpop.f32.mrb[0].mxu0
        %v1694 = vadd.f32 0.0, %v1693
        %v1695 = vpop.f32.mrb[0].mxu0
        %v1696 = vpop.f32.mrb[0].mxu0
        %1697 = vdwg.mxu0
        %v1702 = vcombine.low %v1651, %v1653
        %v1703 = vcombine.low %v1692, %v1694
        %v1705 = vunpack.c.l.s4 1983009808
        %v1706 = vunpack.c.0.s8 %v1705
        %v1707 = vlaneseq
        %v1708 = vshrl.u32 %v1707, 7
        %v1709 = vsub.s32 %v1706, %v1708
        %v1710 = vrot.slane %v1702, %v1709
        %v1712 = vunpack.c.l.s4 1983009808
        %v1713 = vunpack.c.0.s8 %v1712
        %v1714 = vlaneseq
        %v1715 = vshrl.u32 %v1714, 7
        %v1716 = vsub.s32 %v1713, %v1715
        %v1717 = vrot.slane %v1703, %v1716
        %v1718 = vcombine.low %v1710, %v1717
        %v1720 = vadd.f32 %v1615, %v1718
        %v1721 = vxor.u32 %v1720, 2147483648
        %v1722 = vmul.f32 %v1721, 1.442695
        %v1723 = vpow.pop %v1722
        %v1724 = vadd.f32 %v1723, 1.0
        %v1725 = vrcp.pop %v1724
        %v1726 = vmul.f32 1.0, %v1725
        %v1728 = vrot.slane %v1720, 2
        %v1730 = vxor.u32 %v1728, 2147483648
        %v1731 = vmul.f32 %v1730, 1.442695
        %v1732 = vpow.pop %v1731
        %v1733 = vadd.f32 %v1732, 1.0
        %v1734 = vrcp.pop %v1733
        %v1735 = vmul.f32 1.0, %v1734
        %v1736 = vrot.slane %v1720, 4
        %v1738 = vtanh.pop %v1736
        %v1739 = vrot.slane %v1720, 6
        %v1741 = vxor.u32 %v1739, 2147483648
        %v1742 = vmul.f32 %v1741, 1.442695
        %v1743 = vpow.pop %v1742
        %v1744 = vadd.f32 %v1743, 1.0
        %v1745 = vrcp.pop %v1744
        %v1746 = vmul.f32 1.0, %v1745
        %v1747 = vmul.f32 %v1735, %v1244
        %v1748 = vmul.f32 %v1726, %v1738
        %v1749 = vadd.f32 %v1747, %v1748
        %v1750 = vtanh.pop %v1749
        %v1751 = vmul.f32 %v1746, %v1750
        %v1752 = vpack.c.bf16 %v1751, %v1751
        %1753 = vmatprep.subr.bf16.mxu0 %v1306
        %1754 = vmatpush1.bf16.msra.mxu0 %v1305
        %1755 = vmatprep.subr.bf16.mxu0 %v1308
        %1756 = vmatpush1.bf16.msra.mxu0 %v1307
        %1757 = vmatprep.subr.bf16.mxu0 %v1310
        %1758 = vmatpush1.bf16.msra.mxu0 %v1309
        %1759 = vmatprep.subr.bf16.mxu0 %v1312
        %1760 = vmatpush1.bf16.msra.mxu0 %v1311
        %1761 = vmatprep.subr.bf16.mxu0 %v1314
        %1762 = vmatpush1.bf16.msra.mxu0 %v1313
        %1763 = vmatprep.subr.bf16.mxu0 %v1316
        %1764 = vmatpush1.bf16.msra.mxu0 %v1315
        %1765 = vmatprep.subr.bf16.mxu0 %v1318
        %1766 = vmatpush1.bf16.msra.mxu0 %v1317
        %1767 = vmatprep.subr.bf16.mxu0 %v1320
        %1768 = vmatpush1.bf16.msra.mxu0 %v1319
        %1769 = vmatprep.subr.bf16.mxu0 0
        %1770 = vmatpush1.bf16.msra.mxu0 0
        %1771 = vmatprep.subr.bf16.mxu0 0
        %1772 = vmatpush1.bf16.msra.mxu0 0
        %1773 = vmatprep.subr.bf16.mxu0 0
        %1774 = vmatpush1.bf16.msra.mxu0 0
        %1775 = vmatprep.subr.bf16.mxu0 0
        %1776 = vmatpush1.bf16.msra.mxu0 0
        %1777 = vmatprep.subr.bf16.mxu0 0
        %1778 = vmatpush1.bf16.msra.mxu0 0
        %1779 = vmatprep.subr.bf16.mxu0 0
        %1780 = vmatpush1.bf16.msra.mxu0 0
        %1781 = vmatprep.subr.bf16.mxu0 0
        %1782 = vmatpush1.bf16.msra.mxu0 0
        %1783 = vmatprep.subr.bf16.mxu0 0
        %1784 = vmatpush1.bf16.msra.mxu0 0
        %1785 = vmatprep.mubr.bf16.mxu0 0
        %1786 = vmatmul.mubr.bf16.gmra.mrb[0].mxu0 %v1752
        %v1787 = vpop.f32.mrb[0].mxu0
        %v1788 = vadd.f32 %v1250, %v1787
        %v1789 = vpop.f32.mrb[0].mxu0
        %v1790 = vadd.f32 %v1254, %v1789
        %v1791 = vpop.f32.mrb[0].mxu0
        %v1792 = vpop.f32.mrb[0].mxu0
        %1793 = vdwg.mxu0
        %v1794 = vsel %vm1378, %v1788, -inf
        %v1795 = vsel %vm1378, %v1790, -inf
        %v1796 = vmax.f32 %v1794, %v1795
        %1797 = vmax.xlane.f32.xlu0 %v1796
        %v1798 = vpop.xlane.xlu0 %1797
        %v1799 = vsub.f32 %v1788, %v1798
        %v1800 = vsub.f32 %v1790, %v1798
        %v1801 = vmul.f32 %v1799, 1.442695
        %v1802 = vpow.pop %v1801
        %v1803 = vmul.f32 %v1800, 1.442695
        %v1804 = vpow.pop %v1803
        %v1805 = vsel %vm1378, %v1802, 0.0
        %v1806 = vsel %vm1378, %v1804, 0.0
        %v1807 = vadd.f32 %v1805, %v1806
        %1808 = vadd.xlane.f32.xlu0 %v1807
        %v1809 = vpop.xlane.xlu0 %1808
        %v1810 = vrcp.pop %v1809
        %v1811 = vmul.f32 %v1802, %v1810
        %v1812 = vmul.f32 %v1804, %v1810
        %v1815 = vcombine.low %v1811, %v1812
        %v1817 = vunpack.c.l.s4 1983009808
        %v1818 = vunpack.c.0.s8 %v1817
        %v1819 = vlaneseq
        %v1820 = vshrl.u32 %v1819, 7
        %v1821 = vsub.s32 %v1818, %v1820
        %v1822 = vrot.slane %v1815, %v1821
        %s1824 = scalar_lea.vmem %s403, 4 [#allocation9]
        %1825 = vst [vmem:[%s1824] sm:$0xf] %v1822
        %s1826 = scalar_lea.vmem %s410, 2 [#allocation10]
        %1827 = vst [vmem:[%s1826] sm:$0x3] %v1751
        %1828 = vmatprep.subr.bf16.mxu0 0
        %1829 = vmatpush1.bf16.msra.mxu0 %v561
        %1830 = vmatprep.subr.bf16.mxu0 0
        %1831 = vmatpush1.bf16.msra.mxu0 %v562
        %1832 = vmatprep.subr.bf16.mxu0 0
        %1833 = vmatpush1.bf16.msra.mxu0 %v563
        %1834 = vmatprep.subr.bf16.mxu0 0
        %1835 = vmatpush1.bf16.msra.mxu0 %v564
        %1836 = vmatprep.subr.bf16.mxu0 0
        %1837 = vmatpush1.bf16.msra.mxu0 %v565
        %1838 = vmatprep.subr.bf16.mxu0 0
        %1839 = vmatpush1.bf16.msra.mxu0 %v566
        %1840 = vmatprep.subr.bf16.mxu0 0
        %1841 = vmatpush1.bf16.msra.mxu0 %v567
        %1842 = vmatprep.subr.bf16.mxu0 0
        %1843 = vmatpush1.bf16.msra.mxu0 %v568
        %1844 = vmatprep.subr.bf16.mxu0 0
        %1845 = vmatpush1.bf16.msra.mxu0 0
        %1846 = vmatprep.subr.bf16.mxu0 0
        %1847 = vmatpush1.bf16.msra.mxu0 0
        %1848 = vmatprep.subr.bf16.mxu0 0
        %1849 = vmatpush1.bf16.msra.mxu0 0
        %1850 = vmatprep.subr.bf16.mxu0 0
        %1851 = vmatpush1.bf16.msra.mxu0 0
        %1852 = vmatprep.subr.bf16.mxu0 0
        %1853 = vmatpush1.bf16.msra.mxu0 0
        %1854 = vmatprep.subr.bf16.mxu0 0
        %1855 = vmatpush1.bf16.msra.mxu0 0
        %1856 = vmatprep.subr.bf16.mxu0 0
        %1857 = vmatpush1.bf16.msra.mxu0 0
        %1858 = vmatprep.subr.bf16.mxu0 0
        %1859 = vmatpush1.bf16.msra.mxu0 0
        %1860 = vmatprep.mubr.bf16.mxu0 0
        %1861 = vmatmul.mubr.bf16.gmra.mrb[0].mxu0 %v1752
        %v1862 = vpop.f32.mrb[0].mxu0
        %v1863 = vadd.f32 0.0, %v1862
        %v1864 = vpop.f32.mrb[0].mxu0
        %v1865 = vpop.f32.mrb[0].mxu0
        %v1866 = vpop.f32.mrb[0].mxu0
        %1867 = vdwg.mxu0
        %v1868 = vmul.f32 %v1863, 0.088388346
        %v1869 = vadd.f32 %v1868, %v445
        %v1870 = vsel %vm619, %v1869, -inf
        %1871 = vmax.xlane.f32.xlu0 %v1870
        %v1872 = vpop.xlane.xlu0 %1871
        %v1873 = vsub.f32 %v1869, %v1872
        %v1874 = vmul.f32 %v1873, 1.442695
        %v1875 = vpow.pop %v1874
        %v1876 = vsel %vm619, %v1875, 0.0
        %1877 = vadd.xlane.f32.xlu0 %v1876
        %v1878 = vpop.xlane.xlu0 %1877
        %v1879 = vrcp.pop %v1878
        %v1880 = vmul.f32 %v1875, %v1879
        %v1881 = vpack.c.bf16 %v1880, %v1880
        %v1883 = vsel %vm638, %v1881, 0
        %1885 = vmatprep.subr.bf16.mxu0 0
        %1886 = vmatpush1.bf16.msra.mxu0 %v636
        %1887 = vmatprep.subr.bf16.mxu0 0
        %1888 = vmatpush1.bf16.msra.mxu0 0
        %1889 = vmatprep.subr.bf16.mxu0 0
        %1890 = vmatpush1.bf16.msra.mxu0 0
        %1891 = vmatprep.subr.bf16.mxu0 0
        %1892 = vmatpush1.bf16.msra.mxu0 0
        %1893 = vmatprep.subr.bf16.mxu0 0
        %1894 = vmatpush1.bf16.msra.mxu0 0
        %1895 = vmatprep.subr.bf16.mxu0 0
        %1896 = vmatpush1.bf16.msra.mxu0 0
        %1897 = vmatprep.subr.bf16.mxu0 0
        %1898 = vmatpush1.bf16.msra.mxu0 0
        %1899 = vmatprep.subr.bf16.mxu0 0
        %1900 = vmatpush1.bf16.msra.mxu0 0
        %1901 = vmatprep.subr.bf16.mxu0 0
        %1902 = vmatpush1.bf16.msra.mxu0 0
        %1903 = vmatprep.subr.bf16.mxu0 0
        %1904 = vmatpush1.bf16.msra.mxu0 0
        %1905 = vmatprep.subr.bf16.mxu0 0
        %1906 = vmatpush1.bf16.msra.mxu0 0
        %1907 = vmatprep.subr.bf16.mxu0 0
        %1908 = vmatpush1.bf16.msra.mxu0 0
        %1909 = vmatprep.subr.bf16.mxu0 0
        %1910 = vmatpush1.bf16.msra.mxu0 0
        %1911 = vmatprep.subr.bf16.mxu0 0
        %1912 = vmatpush1.bf16.msra.mxu0 0
        %1913 = vmatprep.subr.bf16.mxu0 0
        %1914 = vmatpush1.bf16.msra.mxu0 0
        %1915 = vmatprep.subr.bf16.mxu0 0
        %1916 = vmatpush1.bf16.msra.mxu0 0
        %1917 = vmatprep.mubr.bf16.mxu0 0
        %1918 = vmatmul.mubr.bf16.gmra.mrb[0].mxu0 %v1883
        %v1919 = vpop.f32.mrb[0].mxu0
        %v1920 = vadd.f32 0.0, %v1919
        %v1921 = vpop.f32.mrb[0].mxu0
        %v1922 = vpop.f32.mrb[0].mxu0
        %v1923 = vpop.f32.mrb[0].mxu0
        %1924 = vdwg.mxu0
        %s1925 = scalar_lea.vmem %s416, 16
        %v1926 = vld [vmem:[%s1925] sm:$0xff]
        %v1927 = vpack.c.bf16 %v1920, %v1920
        %1928 = vmatprep.subr.bf16.mxu0 %v781
        %1929 = vmatpush1.bf16.msra.mxu0 %v780
        %1930 = vmatprep.subr.bf16.mxu0 %v785
        %1931 = vmatpush1.bf16.msra.mxu0 %v784
        %1932 = vmatprep.subr.bf16.mxu0 %v789
        %1933 = vmatpush1.bf16.msra.mxu0 %v788
        %1934 = vmatprep.subr.bf16.mxu0 %v793
        %1935 = vmatpush1.bf16.msra.mxu0 %v792
        %1936 = vmatprep.subr.bf16.mxu0 %v797
        %1937 = vmatpush1.bf16.msra.mxu0 %v796
        %1938 = vmatprep.subr.bf16.mxu0 %v801
        %1939 = vmatpush1.bf16.msra.mxu0 %v800
        %1940 = vmatprep.subr.bf16.mxu0 %v805
        %1941 = vmatpush1.bf16.msra.mxu0 %v804
        %1942 = vmatprep.subr.bf16.mxu0 %v809
        %1943 = vmatpush1.bf16.msra.mxu0 %v808
        %1944 = vmatprep.subr.bf16.mxu0 0
        %1945 = vmatpush1.bf16.msra.mxu0 0
        %1946 = vmatprep.subr.bf16.mxu0 0
        %1947 = vmatpush1.bf16.msra.mxu0 0
        %1948 = vmatprep.subr.bf16.mxu0 0
        %1949 = vmatpush1.bf16.msra.mxu0 0
        %1950 = vmatprep.subr.bf16.mxu0 0
        %1951 = vmatpush1.bf16.msra.mxu0 0
        %1952 = vmatprep.subr.bf16.mxu0 0
        %1953 = vmatpush1.bf16.msra.mxu0 0
        %1954 = vmatprep.subr.bf16.mxu0 0
        %1955 = vmatpush1.bf16.msra.mxu0 0
        %1956 = vmatprep.subr.bf16.mxu0 0
        %1957 = vmatpush1.bf16.msra.mxu0 0
        %1958 = vmatprep.subr.bf16.mxu0 0
        %1959 = vmatpush1.bf16.msra.mxu0 0
        %1960 = vmatprep.mubr.bf16.mxu0 0
        %1961 = vmatmul.mubr.bf16.gmra.mrb[0].mxu0 %v1927
        %v1962 = vpop.f32.mrb[0].mxu0
        %v1963 = vadd.f32 0.0, %v1962
        %v1964 = vpop.f32.mrb[0].mxu0
        %v1965 = vadd.f32 0.0, %v1964
        %v1966 = vpop.f32.mrb[0].mxu0
        %v1967 = vpop.f32.mrb[0].mxu0
        %1968 = vdwg.mxu0
        %1969 = vmatprep.subr.bf16.mxu0 %v783
        %1970 = vmatpush1.bf16.msra.mxu0 %v782
        %1971 = vmatprep.subr.bf16.mxu0 %v787
        %1972 = vmatpush1.bf16.msra.mxu0 %v786
        %1973 = vmatprep.subr.bf16.mxu0 %v791
        %1974 = vmatpush1.bf16.msra.mxu0 %v790
        %1975 = vmatprep.subr.bf16.mxu0 %v795
        %1976 = vmatpush1.bf16.msra.mxu0 %v794
        %1977 = vmatprep.subr.bf16.mxu0 %v799
        %1978 = vmatpush1.bf16.msra.mxu0 %v798
        %1979 = vmatprep.subr.bf16.mxu0 %v803
        %1980 = vmatpush1.bf16.msra.mxu0 %v802
        %1981 = vmatprep.subr.bf16.mxu0 %v807
        %1982 = vmatpush1.bf16.msra.mxu0 %v806
        %1983 = vmatprep.subr.bf16.mxu0 %v811
        %1984 = vmatpush1.bf16.msra.mxu0 %v810
        %1985 = vmatprep.subr.bf16.mxu0 0
        %1986 = vmatpush1.bf16.msra.mxu0 0
        %1987 = vmatprep.subr.bf16.mxu0 0
        %1988 = vmatpush1.bf16.msra.mxu0 0
        %1989 = vmatprep.subr.bf16.mxu0 0
        %1990 = vmatpush1.bf16.msra.mxu0 0
        %1991 = vmatprep.subr.bf16.mxu0 0
        %1992 = vmatpush1.bf16.msra.mxu0 0
        %1993 = vmatprep.subr.bf16.mxu0 0
        %1994 = vmatpush1.bf16.msra.mxu0 0
        %1995 = vmatprep.subr.bf16.mxu0 0
        %1996 = vmatpush1.bf16.msra.mxu0 0
        %1997 = vmatprep.subr.bf16.mxu0 0
        %1998 = vmatpush1.bf16.msra.mxu0 0
        %1999 = vmatprep.subr.bf16.mxu0 0
        %2000 = vmatpush1.bf16.msra.mxu0 0
        %2001 = vmatprep.mubr.bf16.mxu0 0
        %2002 = vmatmul.mubr.bf16.gmra.mrb[0].mxu0 %v1927
        %v2003 = vpop.f32.mrb[0].mxu0
        %v2004 = vadd.f32 0.0, %v2003
        %v2005 = vpop.f32.mrb[0].mxu0
        %v2006 = vadd.f32 0.0, %v2005
        %v2007 = vpop.f32.mrb[0].mxu0
        %v2008 = vpop.f32.mrb[0].mxu0
        %2009 = vdwg.mxu0
        %v2014 = vcombine.low %v1963, %v1965
        %v2015 = vcombine.low %v2004, %v2006
        %v2017 = vunpack.c.l.s4 1983009808
        %v2018 = vunpack.c.0.s8 %v2017
        %v2019 = vlaneseq
        %v2020 = vshrl.u32 %v2019, 7
        %v2021 = vsub.s32 %v2018, %v2020
        %v2022 = vrot.slane %v2014, %v2021
        %v2024 = vunpack.c.l.s4 1983009808
        %v2025 = vunpack.c.0.s8 %v2024
        %v2026 = vlaneseq
        %v2027 = vshrl.u32 %v2026, 7
        %v2028 = vsub.s32 %v2025, %v2027
        %v2029 = vrot.slane %v2015, %v2028
        %v2030 = vcombine.low %v2022, %v2029
        %v2032 = vadd.f32 %v1926, %v2030
        %2033 = vmatprep.subr.bf16.mxu0 %v1046
        %2034 = vmatpush1.bf16.msra.mxu0 %v1045
        %2035 = vmatprep.subr.bf16.mxu0 %v1050
        %2036 = vmatpush1.bf16.msra.mxu0 %v1049
        %2037 = vmatprep.subr.bf16.mxu0 %v1054
        %2038 = vmatpush1.bf16.msra.mxu0 %v1053
        %2039 = vmatprep.subr.bf16.mxu0 %v1058
        %2040 = vmatpush1.bf16.msra.mxu0 %v1057
        %2041 = vmatprep.subr.bf16.mxu0 %v1062
        %2042 = vmatpush1.bf16.msra.mxu0 %v1061
        %2043 = vmatprep.subr.bf16.mxu0 %v1066
        %2044 = vmatpush1.bf16.msra.mxu0 %v1065
        %2045 = vmatprep.subr.bf16.mxu0 %v1070
        %2046 = vmatpush1.bf16.msra.mxu0 %v1069
        %2047 = vmatprep.subr.bf16.mxu0 %v1074
        %2048 = vmatpush1.bf16.msra.mxu0 %v1073
        %2049 = vmatprep.subr.bf16.mxu0 0
        %2050 = vmatpush1.bf16.msra.mxu0 0
        %2051 = vmatprep.subr.bf16.mxu0 0
        %2052 = vmatpush1.bf16.msra.mxu0 0
        %2053 = vmatprep.subr.bf16.mxu0 0
        %2054 = vmatpush1.bf16.msra.mxu0 0
        %2055 = vmatprep.subr.bf16.mxu0 0
        %2056 = vmatpush1.bf16.msra.mxu0 0
        %2057 = vmatprep.subr.bf16.mxu0 0
        %2058 = vmatpush1.bf16.msra.mxu0 0
        %2059 = vmatprep.subr.bf16.mxu0 0
        %2060 = vmatpush1.bf16.msra.mxu0 0
        %2061 = vmatprep.subr.bf16.mxu0 0
        %2062 = vmatpush1.bf16.msra.mxu0 0
        %2063 = vmatprep.subr.bf16.mxu0 0
        %2064 = vmatpush1.bf16.msra.mxu0 0
        %2065 = vmatprep.mubr.bf16.mxu0 0
        %2066 = vmatmul.mubr.bf16.gmra.mrb[0].mxu0 %v1752
        %v2067 = vpop.f32.mrb[0].mxu0
        %v2068 = vadd.f32 0.0, %v2067
        %v2069 = vpop.f32.mrb[0].mxu0
        %v2070 = vadd.f32 0.0, %v2069
        %v2071 = vpop.f32.mrb[0].mxu0
        %v2072 = vpop.f32.mrb[0].mxu0
        %2073 = vdwg.mxu0
        %2074 = vmatprep.subr.bf16.mxu0 %v1048
        %2075 = vmatpush1.bf16.msra.mxu0 %v1047
        %2076 = vmatprep.subr.bf16.mxu0 %v1052
        %2077 = vmatpush1.bf16.msra.mxu0 %v1051
        %2078 = vmatprep.subr.bf16.mxu0 %v1056
        %2079 = vmatpush1.bf16.msra.mxu0 %v1055
        %2080 = vmatprep.subr.bf16.mxu0 %v1060
        %2081 = vmatpush1.bf16.msra.mxu0 %v1059
        %2082 = vmatprep.subr.bf16.mxu0 %v1064
        %2083 = vmatpush1.bf16.msra.mxu0 %v1063
        %2084 = vmatprep.subr.bf16.mxu0 %v1068
        %2085 = vmatpush1.bf16.msra.mxu0 %v1067
        %2086 = vmatprep.subr.bf16.mxu0 %v1072
        %2087 = vmatpush1.bf16.msra.mxu0 %v1071
        %2088 = vmatprep.subr.bf16.mxu0 %v1076
        %2089 = vmatpush1.bf16.msra.mxu0 %v1075
        %2090 = vmatprep.subr.bf16.mxu0 0
        %2091 = vmatpush1.bf16.msra.mxu0 0
        %2092 = vmatprep.subr.bf16.mxu0 0
        %2093 = vmatpush1.bf16.msra.mxu0 0
        %2094 = vmatprep.subr.bf16.mxu0 0
        %2095 = vmatpush1.bf16.msra.mxu0 0
        %2096 = vmatprep.subr.bf16.mxu0 0
        %2097 = vmatpush1.bf16.msra.mxu0 0
        %2098 = vmatprep.subr.bf16.mxu0 0
        %2099 = vmatpush1.bf16.msra.mxu0 0
        %2100 = vmatprep.subr.bf16.mxu0 0
        %2101 = vmatpush1.bf16.msra.mxu0 0
        %2102 = vmatprep.subr.bf16.mxu0 0
        %2103 = vmatpush1.bf16.msra.mxu0 0
        %2104 = vmatprep.subr.bf16.mxu0 0
        %2105 = vmatpush1.bf16.msra.mxu0 0
        %2106 = vmatprep.mubr.bf16.mxu0 0
        %2107 = vmatmul.mubr.bf16.gmra.mrb[0].mxu0 %v1752
        %v2108 = vpop.f32.mrb[0].mxu0
        %v2109 = vadd.f32 0.0, %v2108
        %v2110 = vpop.f32.mrb[0].mxu0
        %v2111 = vadd.f32 0.0, %v2110
        %v2112 = vpop.f32.mrb[0].mxu0
        %v2113 = vpop.f32.mrb[0].mxu0
        %2114 = vdwg.mxu0
        %v2119 = vcombine.low %v2068, %v2070
        %v2120 = vcombine.low %v2109, %v2111
        %v2122 = vunpack.c.l.s4 1983009808
        %v2123 = vunpack.c.0.s8 %v2122
        %v2124 = vlaneseq
        %v2125 = vshrl.u32 %v2124, 7
        %v2126 = vsub.s32 %v2123, %v2125
        %v2127 = vrot.slane %v2119, %v2126
        %v2129 = vunpack.c.l.s4 1983009808
        %v2130 = vunpack.c.0.s8 %v2129
        %v2131 = vlaneseq
        %v2132 = vshrl.u32 %v2131, 7
        %v2133 = vsub.s32 %v2130, %v2132
        %v2134 = vrot.slane %v2120, %v2133
        %v2135 = vcombine.low %v2127, %v2134
        %v2137 = vadd.f32 %v2032, %v2135
        %v2138 = vxor.u32 %v2137, 2147483648
        %v2139 = vmul.f32 %v2138, 1.442695
        %v2140 = vpow.pop %v2139
        %v2141 = vadd.f32 %v2140, 1.0
        %v2142 = vrcp.pop %v2141
        %v2143 = vmul.f32 1.0, %v2142
        %v2145 = vrot.slane %v2137, 2
        %v2147 = vxor.u32 %v2145, 2147483648
        %v2148 = vmul.f32 %v2147, 1.442695
        %v2149 = vpow.pop %v2148
        %v2150 = vadd.f32 %v2149, 1.0
        %v2151 = vrcp.pop %v2150
        %v2152 = vmul.f32 1.0, %v2151
        %v2153 = vrot.slane %v2137, 4
        %v2155 = vtanh.pop %v2153
        %v2156 = vrot.slane %v2137, 6
        %v2158 = vxor.u32 %v2156, 2147483648
        %v2159 = vmul.f32 %v2158, 1.442695
        %v2160 = vpow.pop %v2159
        %v2161 = vadd.f32 %v2160, 1.0
        %v2162 = vrcp.pop %v2161
        %v2163 = vmul.f32 1.0, %v2162
        %v2164 = vmul.f32 %v2152, %v1751
        %v2165 = vmul.f32 %v2143, %v2155
        %v2166 = vadd.f32 %v2164, %v2165
        %v2167 = vtanh.pop %v2166
        %v2168 = vmul.f32 %v2163, %v2167
        %v2169 = vpack.c.bf16 %v2168, %v2168
        %2170 = vmatprep.subr.bf16.mxu0 %v1306
        %2171 = vmatpush1.bf16.msra.mxu0 %v1305
        %2172 = vmatprep.subr.bf16.mxu0 %v1308
        %2173 = vmatpush1.bf16.msra.mxu0 %v1307
        %2174 = vmatprep.subr.bf16.mxu0 %v1310
        %2175 = vmatpush1.bf16.msra.mxu0 %v1309
        %2176 = vmatprep.subr.bf16.mxu0 %v1312
        %2177 = vmatpush1.bf16.msra.mxu0 %v1311
        %2178 = vmatprep.subr.bf16.mxu0 %v1314
        %2179 = vmatpush1.bf16.msra.mxu0 %v1313
        %2180 = vmatprep.subr.bf16.mxu0 %v1316
        %2181 = vmatpush1.bf16.msra.mxu0 %v1315
        %2182 = vmatprep.subr.bf16.mxu0 %v1318
        %2183 = vmatpush1.bf16.msra.mxu0 %v1317
        %2184 = vmatprep.subr.bf16.mxu0 %v1320
        %2185 = vmatpush1.bf16.msra.mxu0 %v1319
        %2186 = vmatprep.subr.bf16.mxu0 0
        %2187 = vmatpush1.bf16.msra.mxu0 0
        %2188 = vmatprep.subr.bf16.mxu0 0
        %2189 = vmatpush1.bf16.msra.mxu0 0
        %2190 = vmatprep.subr.bf16.mxu0 0
        %2191 = vmatpush1.bf16.msra.mxu0 0
        %2192 = vmatprep.subr.bf16.mxu0 0
        %2193 = vmatpush1.bf16.msra.mxu0 0
        %2194 = vmatprep.subr.bf16.mxu0 0
        %2195 = vmatpush1.bf16.msra.mxu0 0
        %2196 = vmatprep.subr.bf16.mxu0 0
        %2197 = vmatpush1.bf16.msra.mxu0 0
        %2198 = vmatprep.subr.bf16.mxu0 0
        %2199 = vmatpush1.bf16.msra.mxu0 0
        %2200 = vmatprep.subr.bf16.mxu0 0
        %2201 = vmatpush1.bf16.msra.mxu0 0
        %2202 = vmatprep.mubr.bf16.mxu0 0
        %2203 = vmatmul.mubr.bf16.gmra.mrb[0].mxu0 %v2169
        %v2204 = vpop.f32.mrb[0].mxu0
        %v2205 = vadd.f32 %v1250, %v2204
        %v2206 = vpop.f32.mrb[0].mxu0
        %v2207 = vadd.f32 %v1254, %v2206
        %v2208 = vpop.f32.mrb[0].mxu0
        %v2209 = vpop.f32.mrb[0].mxu0
        %2210 = vdwg.mxu0
        %v2211 = vsel %vm1378, %v2205, -inf
        %v2212 = vsel %vm1378, %v2207, -inf
        %v2213 = vmax.f32 %v2211, %v2212
        %2214 = vmax.xlane.f32.xlu0 %v2213
        %v2215 = vpop.xlane.xlu0 %2214
        %v2216 = vsub.f32 %v2205, %v2215
        %v2217 = vsub.f32 %v2207, %v2215
        %v2218 = vmul.f32 %v2216, 1.442695
        %v2219 = vpow.pop %v2218
        %v2220 = vmul.f32 %v2217, 1.442695
        %v2221 = vpow.pop %v2220
        %v2222 = vsel %vm1378, %v2219, 0.0
        %v2223 = vsel %vm1378, %v2221, 0.0
        %v2224 = vadd.f32 %v2222, %v2223
        %2225 = vadd.xlane.f32.xlu0 %v2224
        %v2226 = vpop.xlane.xlu0 %2225
        %v2227 = vrcp.pop %v2226
        %v2228 = vmul.f32 %v2219, %v2227
        %v2229 = vmul.f32 %v2221, %v2227
        %v2232 = vcombine.low %v2228, %v2229
        %v2234 = vunpack.c.l.s4 1983009808
        %v2235 = vunpack.c.0.s8 %v2234
        %v2236 = vlaneseq
        %v2237 = vshrl.u32 %v2236, 7
        %v2238 = vsub.s32 %v2235, %v2237
        %v2239 = vrot.slane %v2232, %v2238
        %s2241 = scalar_lea.vmem %s403, 8 [#allocation9]
        %2242 = vst [vmem:[%s2241] sm:$0xf] %v2239
        %s2243 = scalar_lea.vmem %s410, 4 [#allocation10]
        %2244 = vst [vmem:[%s2243] sm:$0x3] %v2168
        %2245 = vmatprep.subr.bf16.mxu0 0
        %2246 = vmatpush1.bf16.msra.mxu0 %v561
        %2247 = vmatprep.subr.bf16.mxu0 0
        %2248 = vmatpush1.bf16.msra.mxu0 %v562
        %2249 = vmatprep.subr.bf16.mxu0 0
        %2250 = vmatpush1.bf16.msra.mxu0 %v563
        %2251 = vmatprep.subr.bf16.mxu0 0
        %2252 = vmatpush1.bf16.msra.mxu0 %v564
        %2253 = vmatprep.subr.bf16.mxu0 0
        %2254 = vmatpush1.bf16.msra.mxu0 %v565
        %2255 = vmatprep.subr.bf16.mxu0 0
        %2256 = vmatpush1.bf16.msra.mxu0 %v566
        %2257 = vmatprep.subr.bf16.mxu0 0
        %2258 = vmatpush1.bf16.msra.mxu0 %v567
        %2259 = vmatprep.subr.bf16.mxu0 0
        %2260 = vmatpush1.bf16.msra.mxu0 %v568
        %2261 = vmatprep.subr.bf16.mxu0 0
        %2262 = vmatpush1.bf16.msra.mxu0 0
        %2263 = vmatprep.subr.bf16.mxu0 0
        %2264 = vmatpush1.bf16.msra.mxu0 0
        %2265 = vmatprep.subr.bf16.mxu0 0
        %2266 = vmatpush1.bf16.msra.mxu0 0
        %2267 = vmatprep.subr.bf16.mxu0 0
        %2268 = vmatpush1.bf16.msra.mxu0 0
        %2269 = vmatprep.subr.bf16.mxu0 0
        %2270 = vmatpush1.bf16.msra.mxu0 0
        %2271 = vmatprep.subr.bf16.mxu0 0
        %2272 = vmatpush1.bf16.msra.mxu0 0
        %2273 = vmatprep.subr.bf16.mxu0 0
        %2274 = vmatpush1.bf16.msra.mxu0 0
        %2275 = vmatprep.subr.bf16.mxu0 0
        %2276 = vmatpush1.bf16.msra.mxu0 0
        %2277 = vmatprep.mubr.bf16.mxu0 0
        %2278 = vmatmul.mubr.bf16.gmra.mrb[0].mxu0 %v2169
        %v2279 = vpop.f32.mrb[0].mxu0
        %v2280 = vadd.f32 0.0, %v2279
        %v2281 = vpop.f32.mrb[0].mxu0
        %v2282 = vpop.f32.mrb[0].mxu0
        %v2283 = vpop.f32.mrb[0].mxu0
        %2284 = vdwg.mxu0
        %v2285 = vmul.f32 %v2280, 0.088388346
        %v2286 = vadd.f32 %v2285, %v445
        %v2287 = vsel %vm619, %v2286, -inf
        %2288 = vmax.xlane.f32.xlu0 %v2287
        %v2289 = vpop.xlane.xlu0 %2288
        %v2290 = vsub.f32 %v2286, %v2289
        %v2291 = vmul.f32 %v2290, 1.442695
        %v2292 = vpow.pop %v2291
        %v2293 = vsel %vm619, %v2292, 0.0
        %2294 = vadd.xlane.f32.xlu0 %v2293
        %v2295 = vpop.xlane.xlu0 %2294
        %v2296 = vrcp.pop %v2295
        %v2297 = vmul.f32 %v2292, %v2296
        %v2298 = vpack.c.bf16 %v2297, %v2297
        %v2300 = vsel %vm638, %v2298, 0
        %2302 = vmatprep.subr.bf16.mxu0 0
        %2303 = vmatpush1.bf16.msra.mxu0 %v636
        %2304 = vmatprep.subr.bf16.mxu0 0
        %2305 = vmatpush1.bf16.msra.mxu0 0
        %2306 = vmatprep.subr.bf16.mxu0 0
        %2307 = vmatpush1.bf16.msra.mxu0 0
        %2308 = vmatprep.subr.bf16.mxu0 0
        %2309 = vmatpush1.bf16.msra.mxu0 0
        %2310 = vmatprep.subr.bf16.mxu0 0
        %2311 = vmatpush1.bf16.msra.mxu0 0
        %2312 = vmatprep.subr.bf16.mxu0 0
        %2313 = vmatpush1.bf16.msra.mxu0 0
        %2314 = vmatprep.subr.bf16.mxu0 0
        %2315 = vmatpush1.bf16.msra.mxu0 0
        %2316 = vmatprep.subr.bf16.mxu0 0
        %2317 = vmatpush1.bf16.msra.mxu0 0
        %2318 = vmatprep.subr.bf16.mxu0 0
        %2319 = vmatpush1.bf16.msra.mxu0 0
        %2320 = vmatprep.subr.bf16.mxu0 0
        %2321 = vmatpush1.bf16.msra.mxu0 0
        %2322 = vmatprep.subr.bf16.mxu0 0
        %2323 = vmatpush1.bf16.msra.mxu0 0
        %2324 = vmatprep.subr.bf16.mxu0 0
        %2325 = vmatpush1.bf16.msra.mxu0 0
        %2326 = vmatprep.subr.bf16.mxu0 0
        %2327 = vmatpush1.bf16.msra.mxu0 0
        %2328 = vmatprep.subr.bf16.mxu0 0
        %2329 = vmatpush1.bf16.msra.mxu0 0
        %2330 = vmatprep.subr.bf16.mxu0 0
        %2331 = vmatpush1.bf16.msra.mxu0 0
        %2332 = vmatprep.subr.bf16.mxu0 0
        %2333 = vmatpush1.bf16.msra.mxu0 0
        %2334 = vmatprep.mubr.bf16.mxu0 0
        %2335 = vmatmul.mubr.bf16.gmra.mrb[0].mxu0 %v2300
        %v2336 = vpop.f32.mrb[0].mxu0
        %v2337 = vadd.f32 0.0, %v2336
        %v2338 = vpop.f32.mrb[0].mxu0
        %v2339 = vpop.f32.mrb[0].mxu0
        %v2340 = vpop.f32.mrb[0].mxu0
        %2341 = vdwg.mxu0
        %s2342 = scalar_lea.vmem %s416, 24
        %v2343 = vld [vmem:[%s2342] sm:$0xff]
        %v2344 = vpack.c.bf16 %v2337, %v2337
        %2345 = vmatprep.subr.bf16.mxu0 %v781
        %2346 = vmatpush1.bf16.msra.mxu0 %v780
        %2347 = vmatprep.subr.bf16.mxu0 %v785
        %2348 = vmatpush1.bf16.msra.mxu0 %v784
        %2349 = vmatprep.subr.bf16.mxu0 %v789
        %2350 = vmatpush1.bf16.msra.mxu0 %v788
        %2351 = vmatprep.subr.bf16.mxu0 %v793
        %2352 = vmatpush1.bf16.msra.mxu0 %v792
        %2353 = vmatprep.subr.bf16.mxu0 %v797
        %2354 = vmatpush1.bf16.msra.mxu0 %v796
        %2355 = vmatprep.subr.bf16.mxu0 %v801
        %2356 = vmatpush1.bf16.msra.mxu0 %v800
        %2357 = vmatprep.subr.bf16.mxu0 %v805
        %2358 = vmatpush1.bf16.msra.mxu0 %v804
        %2359 = vmatprep.subr.bf16.mxu0 %v809
        %2360 = vmatpush1.bf16.msra.mxu0 %v808
        %2361 = vmatprep.subr.bf16.mxu0 0
        %2362 = vmatpush1.bf16.msra.mxu0 0
        %2363 = vmatprep.subr.bf16.mxu0 0
        %2364 = vmatpush1.bf16.msra.mxu0 0
        %2365 = vmatprep.subr.bf16.mxu0 0
        %2366 = vmatpush1.bf16.msra.mxu0 0
        %2367 = vmatprep.subr.bf16.mxu0 0
        %2368 = vmatpush1.bf16.msra.mxu0 0
        %2369 = vmatprep.subr.bf16.mxu0 0
        %2370 = vmatpush1.bf16.msra.mxu0 0
        %2371 = vmatprep.subr.bf16.mxu0 0
        %2372 = vmatpush1.bf16.msra.mxu0 0
        %2373 = vmatprep.subr.bf16.mxu0 0
        %2374 = vmatpush1.bf16.msra.mxu0 0
        %2375 = vmatprep.subr.bf16.mxu0 0
        %2376 = vmatpush1.bf16.msra.mxu0 0
        %2377 = vmatprep.mubr.bf16.mxu0 0
        %2378 = vmatmul.mubr.bf16.gmra.mrb[0].mxu0 %v2344
        %v2379 = vpop.f32.mrb[0].mxu0
        %v2380 = vadd.f32 0.0, %v2379
        %v2381 = vpop.f32.mrb[0].mxu0
        %v2382 = vadd.f32 0.0, %v2381
        %v2383 = vpop.f32.mrb[0].mxu0
        %v2384 = vpop.f32.mrb[0].mxu0
        %2385 = vdwg.mxu0
        %2386 = vmatprep.subr.bf16.mxu0 %v783
        %2387 = vmatpush1.bf16.msra.mxu0 %v782
        %2388 = vmatprep.subr.bf16.mxu0 %v787
        %2389 = vmatpush1.bf16.msra.mxu0 %v786
        %2390 = vmatprep.subr.bf16.mxu0 %v791
        %2391 = vmatpush1.bf16.msra.mxu0 %v790
        %2392 = vmatprep.subr.bf16.mxu0 %v795
        %2393 = vmatpush1.bf16.msra.mxu0 %v794
        %2394 = vmatprep.subr.bf16.mxu0 %v799
        %2395 = vmatpush1.bf16.msra.mxu0 %v798
        %2396 = vmatprep.subr.bf16.mxu0 %v803
        %2397 = vmatpush1.bf16.msra.mxu0 %v802
        %2398 = vmatprep.subr.bf16.mxu0 %v807
        %2399 = vmatpush1.bf16.msra.mxu0 %v806
        %2400 = vmatprep.subr.bf16.mxu0 %v811
        %2401 = vmatpush1.bf16.msra.mxu0 %v810
        %2402 = vmatprep.subr.bf16.mxu0 0
        %2403 = vmatpush1.bf16.msra.mxu0 0
        %2404 = vmatprep.subr.bf16.mxu0 0
        %2405 = vmatpush1.bf16.msra.mxu0 0
        %2406 = vmatprep.subr.bf16.mxu0 0
        %2407 = vmatpush1.bf16.msra.mxu0 0
        %2408 = vmatprep.subr.bf16.mxu0 0
        %2409 = vmatpush1.bf16.msra.mxu0 0
        %2410 = vmatprep.subr.bf16.mxu0 0
        %2411 = vmatpush1.bf16.msra.mxu0 0
        %2412 = vmatprep.subr.bf16.mxu0 0
        %2413 = vmatpush1.bf16.msra.mxu0 0
        %2414 = vmatprep.subr.bf16.mxu0 0
        %2415 = vmatpush1.bf16.msra.mxu0 0
        %2416 = vmatprep.subr.bf16.mxu0 0
        %2417 = vmatpush1.bf16.msra.mxu0 0
        %2418 = vmatprep.mubr.bf16.mxu0 0
        %2419 = vmatmul.mubr.bf16.gmra.mrb[0].mxu0 %v2344
        %v2420 = vpop.f32.mrb[0].mxu0
        %v2421 = vadd.f32 0.0, %v2420
        %v2422 = vpop.f32.mrb[0].mxu0
        %v2423 = vadd.f32 0.0, %v2422
        %v2424 = vpop.f32.mrb[0].mxu0
        %v2425 = vpop.f32.mrb[0].mxu0
        %2426 = vdwg.mxu0
        %v2431 = vcombine.low %v2380, %v2382
        %v2432 = vcombine.low %v2421, %v2423
        %v2434 = vunpack.c.l.s4 1983009808
        %v2435 = vunpack.c.0.s8 %v2434
        %v2436 = vlaneseq
        %v2437 = vshrl.u32 %v2436, 7
        %v2438 = vsub.s32 %v2435, %v2437
        %v2439 = vrot.slane %v2431, %v2438
        %v2441 = vunpack.c.l.s4 1983009808
        %v2442 = vunpack.c.0.s8 %v2441
        %v2443 = vlaneseq
        %v2444 = vshrl.u32 %v2443, 7
        %v2445 = vsub.s32 %v2442, %v2444
        %v2446 = vrot.slane %v2432, %v2445
        %v2447 = vcombine.low %v2439, %v2446
        %v2449 = vadd.f32 %v2343, %v2447
        %2450 = vmatprep.subr.bf16.mxu0 %v1046
        %2451 = vmatpush1.bf16.msra.mxu0 %v1045
        %2452 = vmatprep.subr.bf16.mxu0 %v1050
        %2453 = vmatpush1.bf16.msra.mxu0 %v1049
        %2454 = vmatprep.subr.bf16.mxu0 %v1054
        %2455 = vmatpush1.bf16.msra.mxu0 %v1053
        %2456 = vmatprep.subr.bf16.mxu0 %v1058
        %2457 = vmatpush1.bf16.msra.mxu0 %v1057
        %2458 = vmatprep.subr.bf16.mxu0 %v1062
        %2459 = vmatpush1.bf16.msra.mxu0 %v1061
        %2460 = vmatprep.subr.bf16.mxu0 %v1066
        %2461 = vmatpush1.bf16.msra.mxu0 %v1065
        %2462 = vmatprep.subr.bf16.mxu0 %v1070
        %2463 = vmatpush1.bf16.msra.mxu0 %v1069
        %2464 = vmatprep.subr.bf16.mxu0 %v1074
        %2465 = vmatpush1.bf16.msra.mxu0 %v1073
        %2466 = vmatprep.subr.bf16.mxu0 0
        %2467 = vmatpush1.bf16.msra.mxu0 0
        %2468 = vmatprep.subr.bf16.mxu0 0
        %2469 = vmatpush1.bf16.msra.mxu0 0
        %2470 = vmatprep.subr.bf16.mxu0 0
        %2471 = vmatpush1.bf16.msra.mxu0 0
        %2472 = vmatprep.subr.bf16.mxu0 0
        %2473 = vmatpush1.bf16.msra.mxu0 0
        %2474 = vmatprep.subr.bf16.mxu0 0
        %2475 = vmatpush1.bf16.msra.mxu0 0
        %2476 = vmatprep.subr.bf16.mxu0 0
        %2477 = vmatpush1.bf16.msra.mxu0 0
        %2478 = vmatprep.subr.bf16.mxu0 0
        %2479 = vmatpush1.bf16.msra.mxu0 0
        %2480 = vmatprep.subr.bf16.mxu0 0
        %2481 = vmatpush1.bf16.msra.mxu0 0
        %2482 = vmatprep.mubr.bf16.mxu0 0
        %2483 = vmatmul.mubr.bf16.gmra.mrb[0].mxu0 %v2169
        %v2484 = vpop.f32.mrb[0].mxu0
        %v2485 = vadd.f32 0.0, %v2484
        %v2486 = vpop.f32.mrb[0].mxu0
        %v2487 = vadd.f32 0.0, %v2486
        %v2488 = vpop.f32.mrb[0].mxu0
        %v2489 = vpop.f32.mrb[0].mxu0
        %2490 = vdwg.mxu0
        %2491 = vmatprep.subr.bf16.mxu0 %v1048
        %2492 = vmatpush1.bf16.msra.mxu0 %v1047
        %2493 = vmatprep.subr.bf16.mxu0 %v1052
        %2494 = vmatpush1.bf16.msra.mxu0 %v1051
        %2495 = vmatprep.subr.bf16.mxu0 %v1056
        %2496 = vmatpush1.bf16.msra.mxu0 %v1055
        %2497 = vmatprep.subr.bf16.mxu0 %v1060
        %2498 = vmatpush1.bf16.msra.mxu0 %v1059
        %2499 = vmatprep.subr.bf16.mxu0 %v1064
        %2500 = vmatpush1.bf16.msra.mxu0 %v1063
        %2501 = vmatprep.subr.bf16.mxu0 %v1068
        %2502 = vmatpush1.bf16.msra.mxu0 %v1067
        %2503 = vmatprep.subr.bf16.mxu0 %v1072
        %2504 = vmatpush1.bf16.msra.mxu0 %v1071
        %2505 = vmatprep.subr.bf16.mxu0 %v1076
        %2506 = vmatpush1.bf16.msra.mxu0 %v1075
        %2507 = vmatprep.subr.bf16.mxu0 0
        %2508 = vmatpush1.bf16.msra.mxu0 0
        %2509 = vmatprep.subr.bf16.mxu0 0
        %2510 = vmatpush1.bf16.msra.mxu0 0
        %2511 = vmatprep.subr.bf16.mxu0 0
        %2512 = vmatpush1.bf16.msra.mxu0 0
        %2513 = vmatprep.subr.bf16.mxu0 0
        %2514 = vmatpush1.bf16.msra.mxu0 0
        %2515 = vmatprep.subr.bf16.mxu0 0
        %2516 = vmatpush1.bf16.msra.mxu0 0
        %2517 = vmatprep.subr.bf16.mxu0 0
        %2518 = vmatpush1.bf16.msra.mxu0 0
        %2519 = vmatprep.subr.bf16.mxu0 0
        %2520 = vmatpush1.bf16.msra.mxu0 0
        %2521 = vmatprep.subr.bf16.mxu0 0
        %2522 = vmatpush1.bf16.msra.mxu0 0
        %2523 = vmatprep.mubr.bf16.mxu0 0
        %2524 = vmatmul.mubr.bf16.gmra.mrb[0].mxu0 %v2169
        %v2525 = vpop.f32.mrb[0].mxu0
        %v2526 = vadd.f32 0.0, %v2525
        %v2527 = vpop.f32.mrb[0].mxu0
        %v2528 = vadd.f32 0.0, %v2527
        %v2529 = vpop.f32.mrb[0].mxu0
        %v2530 = vpop.f32.mrb[0].mxu0
        %2531 = vdwg.mxu0
        %v2536 = vcombine.low %v2485, %v2487
        %v2537 = vcombine.low %v2526, %v2528
        %v2539 = vunpack.c.l.s4 1983009808
        %v2540 = vunpack.c.0.s8 %v2539
        %v2541 = vlaneseq
        %v2542 = vshrl.u32 %v2541, 7
        %v2543 = vsub.s32 %v2540, %v2542
        %v2544 = vrot.slane %v2536, %v2543
        %v2546 = vunpack.c.l.s4 1983009808
        %v2547 = vunpack.c.0.s8 %v2546
        %v2548 = vlaneseq
        %v2549 = vshrl.u32 %v2548, 7
        %v2550 = vsub.s32 %v2547, %v2549
        %v2551 = vrot.slane %v2537, %v2550
        %v2552 = vcombine.low %v2544, %v2551
        %v2554 = vadd.f32 %v2449, %v2552
        %v2555 = vxor.u32 %v2554, 2147483648
        %v2556 = vmul.f32 %v2555, 1.442695
        %v2557 = vpow.pop %v2556
        %v2558 = vadd.f32 %v2557, 1.0
        %v2559 = vrcp.pop %v2558
        %v2560 = vmul.f32 1.0, %v2559
        %v2562 = vrot.slane %v2554, 2
        %v2564 = vxor.u32 %v2562, 2147483648
        %v2565 = vmul.f32 %v2564, 1.442695
        %v2566 = vpow.pop %v2565
        %v2567 = vadd.f32 %v2566, 1.0
        %v2568 = vrcp.pop %v2567
        %v2569 = vmul.f32 1.0, %v2568
        %v2570 = vrot.slane %v2554, 4
        %v2572 = vtanh.pop %v2570
        %v2573 = vrot.slane %v2554, 6
        %v2575 = vxor.u32 %v2573, 2147483648
        %v2576 = vmul.f32 %v2575, 1.442695
        %v2577 = vpow.pop %v2576
        %v2578 = vadd.f32 %v2577, 1.0
        %v2579 = vrcp.pop %v2578
        %v2580 = vmul.f32 1.0, %v2579
        %v2581 = vmul.f32 %v2569, %v2168
        %v2582 = vmul.f32 %v2560, %v2572
        %v2583 = vadd.f32 %v2581, %v2582
        %v2584 = vtanh.pop %v2583
        %v2585 = vmul.f32 %v2580, %v2584
        %v2586 = vpack.c.bf16 %v2585, %v2585
        %2587 = vmatprep.subr.bf16.mxu0 %v1306
        %2588 = vmatpush1.bf16.msra.mxu0 %v1305
        %2589 = vmatprep.subr.bf16.mxu0 %v1308
        %2590 = vmatpush1.bf16.msra.mxu0 %v1307
        %2591 = vmatprep.subr.bf16.mxu0 %v1310
        %2592 = vmatpush1.bf16.msra.mxu0 %v1309
        %2593 = vmatprep.subr.bf16.mxu0 %v1312
        %2594 = vmatpush1.bf16.msra.mxu0 %v1311
        %2595 = vmatprep.subr.bf16.mxu0 %v1314
        %2596 = vmatpush1.bf16.msra.mxu0 %v1313
        %2597 = vmatprep.subr.bf16.mxu0 %v1316
        %2598 = vmatpush1.bf16.msra.mxu0 %v1315
        %2599 = vmatprep.subr.bf16.mxu0 %v1318
        %2600 = vmatpush1.bf16.msra.mxu0 %v1317
        %2601 = vmatprep.subr.bf16.mxu0 %v1320
        %2602 = vmatpush1.bf16.msra.mxu0 %v1319
        %2603 = vmatprep.subr.bf16.mxu0 0
        %2604 = vmatpush1.bf16.msra.mxu0 0
        %2605 = vmatprep.subr.bf16.mxu0 0
        %2606 = vmatpush1.bf16.msra.mxu0 0
        %2607 = vmatprep.subr.bf16.mxu0 0
        %2608 = vmatpush1.bf16.msra.mxu0 0
        %2609 = vmatprep.subr.bf16.mxu0 0
        %2610 = vmatpush1.bf16.msra.mxu0 0
        %2611 = vmatprep.subr.bf16.mxu0 0
        %2612 = vmatpush1.bf16.msra.mxu0 0
        %2613 = vmatprep.subr.bf16.mxu0 0
        %2614 = vmatpush1.bf16.msra.mxu0 0
        %2615 = vmatprep.subr.bf16.mxu0 0
        %2616 = vmatpush1.bf16.msra.mxu0 0
        %2617 = vmatprep.subr.bf16.mxu0 0
        %2618 = vmatpush1.bf16.msra.mxu0 0
        %2619 = vmatprep.mubr.bf16.mxu0 0
        %2620 = vmatmul.mubr.bf16.gmra.mrb[0].mxu0 %v2586
        %v2621 = vpop.f32.mrb[0].mxu0
        %v2622 = vadd.f32 %v1250, %v2621
        %v2623 = vpop.f32.mrb[0].mxu0
        %v2624 = vadd.f32 %v1254, %v2623
        %v2625 = vpop.f32.mrb[0].mxu0
        %v2626 = vpop.f32.mrb[0].mxu0
        %2627 = vdwg.mxu0
        %v2628 = vsel %vm1378, %v2622, -inf
        %v2629 = vsel %vm1378, %v2624, -inf
        %v2630 = vmax.f32 %v2628, %v2629
        %2631 = vmax.xlane.f32.xlu0 %v2630
        %v2632 = vpop.xlane.xlu0 %2631
        %v2633 = vsub.f32 %v2622, %v2632
        %v2634 = vsub.f32 %v2624, %v2632
        %v2635 = vmul.f32 %v2633, 1.442695
        %v2636 = vpow.pop %v2635
        %v2637 = vmul.f32 %v2634, 1.442695
        %v2638 = vpow.pop %v2637
        %v2639 = vsel %vm1378, %v2636, 0.0
        %v2640 = vsel %vm1378, %v2638, 0.0
        %v2641 = vadd.f32 %v2639, %v2640
        %2642 = vadd.xlane.f32.xlu0 %v2641
        %v2643 = vpop.xlane.xlu0 %2642
        %v2644 = vrcp.pop %v2643
        %v2645 = vmul.f32 %v2636, %v2644
        %v2646 = vmul.f32 %v2638, %v2644
        %v2649 = vcombine.low %v2645, %v2646
        %v2651 = vunpack.c.l.s4 1983009808
        %v2652 = vunpack.c.0.s8 %v2651
        %v2653 = vlaneseq
        %v2654 = vshrl.u32 %v2653, 7
        %v2655 = vsub.s32 %v2652, %v2654
        %v2656 = vrot.slane %v2649, %v2655
        %s2658 = scalar_lea.vmem %s403, 12 [#allocation9]
        %2659 = vst [vmem:[%s2658] sm:$0xf] %v2656
        %s2660 = scalar_lea.vmem %s410, 6 [#allocation10]
        %2661 = vst [vmem:[%s2660] sm:$0x3] %v2585
        %2662 = vst [vmem:[#allocation2] sm:$0x3] %v2585
        %s2663 = sand.u32 %s232, 1
        %s2664 = scalar_lea.sflag [#allocation5], %s2663
        %s2665 = sand.u32 %s232, 1
        %s2666 = smul.addr %s2665, 16
        %s2667 = scalar_lea.vmem [#allocation9], %s2666
        %s2668 = sand.u32 %s258, 1
        %s2669 = scalar_lea.sflag [#allocation11], %s2668
        %s2670 = sand.u32 %s258, 1
        %s2671 = smul.addr %s2670, 8
        %s2672 = scalar_lea.vmem [#allocation10], %s2671
        // Predicated region
        $region73: #{tpu_custom_call.1} parent=55 // pred_check
          %p2673 = pneg %p242
        $region74: #{tpu_custom_call.1} parent=55 // pred_check_branch
          %2675 = sbr.rel (%p2673) target = $region76
        $region75: #{tpu_custom_call.1} parent=55 // pred_region
          %s2676 = smul.u32 4, %s30
          %s2678 = ssub.s32 256, 256
          %2679 = vsyncadd %s2664, %s2678
          %s2680 = smul.addr %s2676, 2
          %s2681 = smul.addr %s2680, 32
          %s2682 = scalar_lea.hbm %s9, %s2681
          %s2683 = sshll.u32 %s2667, 4
          %s2684 = int_to_ptr.vmem [resolvable:$true] %s2683
          %2689 = dma.vmem_to_hbm [thread:$0]  %s2684, 256, %s2682, %s2664, 64, 64, 4
        $region76: #{tpu_custom_call.1} parent=55 // pred_fallthru
          _
        // Predicated region
        $region77: #{tpu_custom_call.1} parent=55 // pred_check
          %p2690 = pneg %p268
        $region78: #{tpu_custom_call.1} parent=55 // pred_check_branch
          %2692 = sbr.rel (%p2690) target = $region80
        $region79: #{tpu_custom_call.1} parent=55 // pred_region
          %s2693 = smul.u32 4, %s30
          %s2695 = ssub.s32 128, 128
          %2696 = vsyncadd %s2669, %s2695
          %s2697 = smul.addr %s2693, 32
          %s2698 = scalar_lea.hbm %s10, %s2697
          %s2699 = sshll.u32 %s2672, 4
          %s2700 = int_to_ptr.vmem [resolvable:$true] %s2699
          %2705 = dma.vmem_to_hbm [thread:$0]  %s2700, 128, %s2698, %s2669, 32, 32, 2
        $region80: #{tpu_custom_call.1} parent=55 // pred_fallthru
          _
      $region56: #{tpu_custom_call.1} parent=5 // pred_fallthru
        _
      %p2706 = scmp.le.s32.totalorder 2, %s25
      // Predicated region
      $region81: #{tpu_custom_call.1} parent=5 // pred_check
        %p2707 = pneg %p2706
      $region82: #{tpu_custom_call.1} parent=5 // pred_check_branch
        %2709 = sbr.rel (%p2707) target = $region84
      $region83: #{tpu_custom_call.1} parent=5 // pred_region
        %s2710 = ssub.s32 %s25, 2
        // Predicated region
        $region85: #{tpu_custom_call.1} parent=83 // pred_check
          %p2711 = pneg %p248
        $region86: #{tpu_custom_call.1} parent=83 // pred_check_branch
          %2713 = sbr.rel (%p2711) target = $region88
        $region87: #{tpu_custom_call.1} parent=83 // pred_region
          %s2714 = sand.u32 %s233, 1
          %s2715 = scalar_lea.sflag [#allocation5], %s2714
          %s2716 = sand.u32 %s233, 1
          %s2717 = smul.addr %s2716, 16
          %s2718 = scalar_lea.vmem [#allocation9], %s2717
          %2719 = dma.done %s2715, 256
        $region88: #{tpu_custom_call.1} parent=83 // pred_fallthru
          _
        // Predicated region
        $region89: #{tpu_custom_call.1} parent=83 // pred_check
          %p2720 = pneg %p274
        $region90: #{tpu_custom_call.1} parent=83 // pred_check_branch
          %2722 = sbr.rel (%p2720) target = $region92
        $region91: #{tpu_custom_call.1} parent=83 // pred_region
          %s2723 = sand.u32 %s259, 1
          %s2724 = scalar_lea.sflag [#allocation11], %s2723
          %s2725 = sand.u32 %s259, 1
          %s2726 = smul.addr %s2725, 8
          %s2727 = scalar_lea.vmem [#allocation10], %s2726
          %2728 = dma.done %s2724, 128
        $region92: #{tpu_custom_call.1} parent=83 // pred_fallthru
          _
      $region84: #{tpu_custom_call.1} parent=5 // pred_fallthru
        _
    $region6: #{tpu_custom_call.1} parent=1 // loop_footer
      %s29 = sadd.s32 1, %s25
    $region7: #{tpu_custom_call.1} parent=1 // loop_footer_branch
      %24 = sbr.rel target = $region3
    $region8: #{tpu_custom_call.1} parent=1 // loop_exit
      _
    %2729 = vsyncpa [#allocation4], 1
    %s2730 = scalar_lea.sflag [#allocation4], 1
    %2731 = vsyncpa %s2730, 1
    %2732 = vsyncpa [#allocation7], 1
    %2733 = vsyncpa [#allocation5], 1
    %s2734 = scalar_lea.sflag [#allocation5], 1
    %2735 = vsyncpa %s2734, 1
    %2736 = vsyncpa [#allocation11], 1
    %s2737 = scalar_lea.sflag [#allocation11], 1
    %2738 = vsyncpa %s2737, 1

</llo_original>
